<compile_context>
chip_gen: v7x
topology: tpu7x:2x2x1
jax: 0.10.0
libtpu: 0.0.40
codegen_flags: <defaults>
</compile_context>

<pallas_src>
import functools

import jax
import jax.numpy as jnp
from jax.experimental import pallas as pl
from jax.experimental.pallas import tpu as pltpu


def _layernorm(v, gamma, beta, eps=1e-5):
    mu = jnp.mean(v, axis=-1, keepdims=True)
    var = jnp.mean((v - mu) ** 2, axis=-1, keepdims=True)
    return (v - mu) * jax.lax.rsqrt(var + eps) * gamma + beta


def block_kernel(x_ref, wqkv_ref, g1_ref, b1_ref, g2_ref, b2_ref,
                 w_fc1_ref, bias_fc1_ref, w_fc2_ref, bias_fc2_ref,
                 out_ref, *, n_heads, head_size, batch_block, seq_len,
                 matmul_dtype):
    md = matmul_dtype
    H, hs, T, bb = n_heads, head_size, seq_len, batch_block

    x = x_ref[...].astype(jnp.float32)                        # (bb*T, E)

    # ---- norm1 (f32) ----
    y = _layernorm(x, g1_ref[...], b1_ref[...])                # (bb*T, E)

    # ---- fused Q/K/V projection for all heads; weight columns are grouped
    #      [Q_all | K_all | V_all], each per-head contiguous; 1/sqrt(hs) pre-folded into Q.
    qkv = jnp.dot(y.astype(md), wqkv_ref[...],
                  preferred_element_type=jnp.float32)          # (bb*T, 3*H*hs)

    # One head-major relayout for all of q/k/v: (bb*T, 3H, hs) -> (3H, bb*T, hs).
    # Column group index j//hs enumerates [q_h0..q_hH-1, k_h0.., v_h0..] by construction.
    qkv3 = jnp.transpose(qkv.reshape(bb * T, 3 * H, hs), (1, 0, 2)).astype(md)
    q = qkv3[0 * H:1 * H].reshape(H * bb, T, hs)               # (H*bb, T, hs)
    k = qkv3[1 * H:2 * H].reshape(H * bb, T, hs)
    v = qkv3[2 * H:3 * H].reshape(H * bb, T, hs)

    # ---- additive causal mask (0 on/below diagonal, -1e30 above), shared by all
    #      (head, batch) pairs; diagonal is never masked so row max stays finite.
    row = jax.lax.broadcasted_iota(jnp.int32, (T, T), 0)
    col = jax.lax.broadcasted_iota(jnp.int32, (T, T), 1)
    mask = jnp.where(row >= col, 0.0, -1e30).astype(jnp.float32)[None]   # (1, T, T)

    # ---- one batched causal self-attention over all heads (heads SUMMED afterwards) ----
    s = jnp.einsum('bqd,bkd->bqk', q, k,
                   preferred_element_type=jnp.float32)         # (H*bb, T, T)
    s = s + mask
    s = s - jnp.max(s, axis=-1, keepdims=True)
    p = jnp.exp(s)
    p = p * pl.reciprocal(jnp.sum(p, axis=-1, keepdims=True), approx=True)
    attn = jnp.einsum('bqk,bkd->bqd', p.astype(md), v,
                      preferred_element_type=jnp.float32)      # (H*bb, T, hs)
    attn_sum = jnp.sum(attn.reshape(H, bb * T, hs), axis=0)    # heads summed -> (bb*T, hs)

    # ---- residual 1 (requires head_size == n_embedding, as in the PyTorch module) ----
    y1 = attn_sum + x                                          # (bb*T, E)

    # ---- norm2 + FFN: Linear(E,4E) -> ReLU -> Linear(4E,E) ----
    y2 = _layernorm(y1, g2_ref[...], b2_ref[...])
    h1 = jnp.dot(y2.astype(md), w_fc1_ref[...],
                 preferred_element_type=jnp.float32) + bias_fc1_ref[...]
    h1 = jnp.maximum(h1, 0.0)
    ffn = jnp.dot(h1.astype(md), w_fc2_ref[...],
                  preferred_element_type=jnp.float32) + bias_fc2_ref[...]

    # ---- residual 2 ----
    out_ref[...] = (ffn + y1).astype(out_ref.dtype)


def _tpu_budgets():
    """(target MXU rows per step, vmem_limit_bytes) tuned per TPU generation."""
    vmem_bytes = None
    try:
        info = pltpu.get_tpu_info()
        vmem_bytes = getattr(info, "vmem_capacity_bytes", None)
    except Exception:
        vmem_bytes = None
    if vmem_bytes is None:
        vmem_bytes = 64 * 1024 * 1024              # conservative: v7x per-TC VMEM
    if vmem_bytes >= 96 * 1024 * 1024:             # v5e / v6e: 128 MiB physical VMEM
        return 256, 100 * 1024 * 1024
    return 128, 48 * 1024 * 1024                   # v7x: 64 MiB physical per TC


def _pick_batch_block(B, T, target_rows):
    """Fold batch rows per grid step to fill the MXU M dimension, while keeping the
    grid step count even (and >= 2) when possible so both v7x TensorCores get work."""
    bb = max(1, min(B, max(1, target_rows // max(T, 1))))
    while bb > 1 and B % bb:
        bb -= 1
    if B >= 2:
        while bb > 1 and (B // bb) % 2:
            bb -= 1
            while bb > 1 and B % bb:
                bb -= 1
    return bb


def block_forward(x, params, *, matmul_dtype=jnp.bfloat16, batch_block=None,
                  single_buffer_weights=True, vmem_limit_bytes=None):
    B, T, E = x.shape
    wq, wk, wv = params["wq"], params["wk"], params["wv"]          # (H, E, hs)
    H, _, hs = wq.shape
    assert hs == E, (
        f"Block requires head_size == n_embedding (MultiHead sums head outputs and "
        f"adds the residual); got head_size={hs}, n_embedding={E}")
    # NOTE: for production shapes, E / 4E / H*hs should be multiples of 128 and
    # batch_block*T a multiple of 8 (16 for bf16) to keep all stores lane-dense.

    target_rows, default_vmem = _tpu_budgets()
    if vmem_limit_bytes is None:
        vmem_limit_bytes = default_vmem

    # Fused QKV weight, GROUPED layout [Q_all | K_all | V_all], per-head contiguous;
    # fold 1/sqrt(hs) into the Q columns so no per-score scaling is needed in-kernel.
    scale = hs ** -0.5

    def group(w):  # (H, E, hs) -> (E, H*hs) with per-head contiguous columns
        return jnp.transpose(w, (1, 0, 2)).reshape(E, H * hs)

    w_qkv = jnp.concatenate([group(wq) * scale, group(wk), group(wv)], axis=-1)  # (E, 3*H*hs)

    g1, b1 = params["g1"], params["b1"]                            # (1, E)
    g2, b2 = params["g2"], params["b2"]                            # (1, E)
    w_fc1, bias_fc1 = params["w_fc1"], params["bias_fc1"]          # (E, 4E), (1, 4E)
    w_fc2, bias_fc2 = params["w_fc2"], params["bias_fc2"]          # (4E, E), (1, E)

    if jnp.dtype(matmul_dtype) != jnp.dtype(jnp.float32):
        # bf16 MXU inputs: 2-4x MXU throughput, half the weight DMA / VMEM residency.
        w_qkv = w_qkv.astype(matmul_dtype)
        w_fc1 = w_fc1.astype(matmul_dtype)
        w_fc2 = w_fc2.astype(matmul_dtype)

    bb = _pick_batch_block(B, T, target_rows) if batch_block is None else batch_block
    assert B % bb == 0, f"batch_block {bb} must divide B={B}"
    grid = (B // bb,)

    x2d = x.reshape(B * T, E)

    def const_spec(shape):
        idx = lambda b: (0,) * len(shape)
        if single_buffer_weights:
            # Weights never change across grid steps -> a single VMEM buffer suffices.
            return pl.BlockSpec(shape, idx, pipeline_mode=pl.Buffered(1))
        return pl.BlockSpec(shape, idx)

    kernel = functools.partial(
        block_kernel, n_heads=H, head_size=hs, batch_block=bb, seq_len=T,
        matmul_dtype=matmul_dtype)

    out2d = pl.pallas_call(
        kernel,
        out_shape=jax.ShapeDtypeStruct((B * T, E), x.dtype),
        grid_spec=pltpu.PrefetchScalarGridSpec(
            num_scalar_prefetch=0,
            grid=grid,
            in_specs=[
                pl.BlockSpec((bb * T, E), lambda b: (b, 0)),        # x rows
                const_spec((E, 3 * H * hs)),                        # fused QKV weight
                const_spec((1, E)), const_spec((1, E)),             # ln1 gamma/beta
                const_spec((1, E)), const_spec((1, E)),             # ln2 gamma/beta
                const_spec((E, 4 * E)), const_spec((1, 4 * E)),     # fc1 w, b
                const_spec((4 * E, E)), const_spec((1, E)),         # fc2 w, b
            ],
            out_specs=pl.BlockSpec((bb * T, E), lambda b: (b, 0)),
        ),
        compiler_params=pltpu.CompilerParams(
            dimension_semantics=("parallel",),
            vmem_limit_bytes=vmem_limit_bytes,
        ),
    )(x2d, w_qkv, g1, b1, g2, b2, w_fc1, bias_fc1, w_fc2, bias_fc2)

    return out2d.reshape(B, T, E)


def block_reference(x, params):
    # pure-JAX reference with identical semantics (for verification)
    wq, wk, wv = params["wq"], params["wk"], params["wv"]
    g1, b1, g2, b2 = params["g1"], params["b1"], params["g2"], params["b2"]
    w_fc1, bias_fc1 = params["w_fc1"], params["bias_fc1"]
    w_fc2, bias_fc2 = params["w_fc2"], params["bias_fc2"]
    B, T, E = x.shape
    H, _, hs = wq.shape

    y = _layernorm(x, g1[0], b1[0])
    causal = jnp.tril(jnp.ones((T, T), bool))
    attn_sum = jnp.zeros((B, T, hs), jnp.float32)
    for h in range(H):
        q = y @ wq[h]
        k = y @ wk[h]
        v = y @ wv[h]
        a = (q @ jnp.swapaxes(k, -1, -2)) * (hs ** -0.5)
        a = jnp.where(causal[None], a, -jnp.inf)
        p = jax.nn.softmax(a, axis=-1)
        attn_sum = attn_sum + p @ v
    y = attn_sum + x
    y2 = _layernorm(y, g2[0], b2[0])
    h1 = jax.nn.relu(y2 @ w_fc1 + bias_fc1[0])
    return (h1 @ w_fc2 + bias_fc2[0]) + y


if __name__ == "__main__":
    # small shapes consistent with the module; head_size == n_embedding required
    B, T, E, H = 4, 8, 32, 2
    head_size = E

    key = jax.random.PRNGKey(0)
    keys = jax.random.split(key, 8)
    s = 0.1
    params = {
        "wq": jax.random.normal(keys[0], (H, E, head_size), jnp.float32) * s,
        "wk": jax.random.normal(keys[1], (H, E, head_size), jnp.float32) * s,
        "wv": jax.random.normal(keys[2], (H, E, head_size), jnp.float32) * s,
        "g1": jnp.ones((1, E), jnp.float32),
        "b1": jnp.zeros((1, E), jnp.float32),
        "g2": jnp.ones((1, E), jnp.float32),
        "b2": jnp.zeros((1, E), jnp.float32),
        "w_fc1": jax.random.normal(keys[3], (E, 4 * E), jnp.float32) * s,
        "bias_fc1": jax.random.normal(keys[4], (1, 4 * E), jnp.float32) * s,
        "w_fc2": jax.random.normal(keys[5], (4 * E, E), jnp.float32) * s,
        "bias_fc2": jax.random.normal(keys[6], (1, E), jnp.float32) * s,
    }
    x = jax.random.normal(keys[7], (B, T, E), jnp.float32)

    ref = block_reference(x, params)

    # Default path: bf16 MXU inputs, single-buffered weights. If pl.Buffered(1)
    # weight specs are not supported by this jax build, fall back to default buffering.
    out, chosen, last_err = None, {}, None
    for cfg in ({}, {"single_buffer_weights": False}):
        try:
            out = jax.block_until_ready(block_forward(x, params, **cfg))
            chosen = cfg
            break
        except Exception as e:  # fallback only on spec/lowering support issues
            last_err = e
    if out is None:
        raise last_err

    assert out.shape == (B, T, E)
    # bf16 MXU inputs (f32 accumulation): loose tolerance vs the f32 reference.
    assert jnp.allclose(out, ref, atol=7e-2, rtol=7e-2), "bf16 kernel mismatch vs reference"

    # f32 MXU-input path: tighter tolerance (approx reciprocal in softmax only).
    out_f32 = jax.block_until_ready(
        block_forward(x, params, matmul_dtype=jnp.float32, **chosen))
    assert jnp.allclose(out_f32, ref, atol=5e-3, rtol=5e-3), "f32 kernel mismatch vs reference"

    print("KERNEL_OK")
</pallas_src>

<mosaic_0001>
module attributes {stable_mosaic.version = 11 : i64} {
  func.func @block_kernel(%arg0: i32, %arg1: memref<16x32xf32, #tpu.memory_space<vmem>>, %arg2: memref<32x192xbf16, #tpu.memory_space<vmem>>, %arg3: memref<1x32xf32, #tpu.memory_space<vmem>>, %arg4: memref<1x32xf32, #tpu.memory_space<vmem>>, %arg5: memref<1x32xf32, #tpu.memory_space<vmem>>, %arg6: memref<1x32xf32, #tpu.memory_space<vmem>>, %arg7: memref<32x128xbf16, #tpu.memory_space<vmem>>, %arg8: memref<1x128xf32, #tpu.memory_space<vmem>>, %arg9: memref<128x32xbf16, #tpu.memory_space<vmem>>, %arg10: memref<1x32xf32, #tpu.memory_space<vmem>>, %arg11: memref<16x32xf32, #tpu.memory_space<vmem>>) attributes {dimension_semantics = [#tpu.dimension_semantics<parallel>], iteration_bounds = array<i64: 2>, scalar_prefetch = 0 : i64, scratch_operands = 0 : i64, tpu.core_type = #tpu.core_type<tc>, window_params = [{transform_indices = @transform_0, window_bounds = array<i64: 16, 32>}, {pipeline_mode = #tpu.pipeline_mode<synchronous>, transform_indices = @transform_1, window_bounds = array<i64: 32, 192>}, {pipeline_mode = #tpu.pipeline_mode<synchronous>, transform_indices = @transform_2, window_bounds = array<i64: 1, 32>}, {pipeline_mode = #tpu.pipeline_mode<synchronous>, transform_indices = @transform_3, window_bounds = array<i64: 1, 32>}, {pipeline_mode = #tpu.pipeline_mode<synchronous>, transform_indices = @transform_4, window_bounds = array<i64: 1, 32>}, {pipeline_mode = #tpu.pipeline_mode<synchronous>, transform_indices = @transform_5, window_bounds = array<i64: 1, 32>}, {pipeline_mode = #tpu.pipeline_mode<synchronous>, transform_indices = @transform_6, window_bounds = array<i64: 32, 128>}, {pipeline_mode = #tpu.pipeline_mode<synchronous>, transform_indices = @transform_7, window_bounds = array<i64: 1, 128>}, {pipeline_mode = #tpu.pipeline_mode<synchronous>, transform_indices = @transform_8, window_bounds = array<i64: 128, 32>}, {pipeline_mode = #tpu.pipeline_mode<synchronous>, transform_indices = @transform_9, window_bounds = array<i64: 1, 32>}, {transform_indices = @transform_10, window_bounds = array<i64: 16, 32>}]} {
    %c0 = arith.constant 0 : index
    %c0_0 = arith.constant 0 : index
    %0 = vector.load %arg1[%c0, %c0_0] : memref<16x32xf32, #tpu.memory_space<vmem>>, vector<16x32xf32>
    %c0_1 = arith.constant 0 : index
    %c0_2 = arith.constant 0 : index
    %1 = vector.load %arg3[%c0_1, %c0_2] : memref<1x32xf32, #tpu.memory_space<vmem>>, vector<1x32xf32>
    %c0_3 = arith.constant 0 : index
    %c0_4 = arith.constant 0 : index
    %2 = vector.load %arg4[%c0_3, %c0_4] : memref<1x32xf32, #tpu.memory_space<vmem>>, vector<1x32xf32>
    %cst = arith.constant dense<0.000000e+00> : vector<16xf32>
    %3 = vector.multi_reduction <add>, %0, %cst [1] : vector<16x32xf32> to vector<16xf32>
    %4 = vector.shape_cast %3 : vector<16xf32> to vector<16x1xf32>
    %cst_5 = arith.constant 3.200000e+01 : f32
    %5 = vector.broadcast %cst_5 : f32 to vector<16x1xf32>
    %6 = arith.divf %4, %5 : vector<16x1xf32>
    %7 = vector.broadcast %6 : vector<16x1xf32> to vector<16x32xf32>
    %8 = arith.subf %0, %7 : vector<16x32xf32>
    %9 = arith.mulf %8, %8 : vector<16x32xf32>
    %cst_6 = arith.constant dense<0.000000e+00> : vector<16xf32>
    %10 = vector.multi_reduction <add>, %9, %cst_6 [1] : vector<16x32xf32> to vector<16xf32>
    %11 = vector.shape_cast %10 : vector<16xf32> to vector<16x1xf32>
    %cst_7 = arith.constant 3.200000e+01 : f32
    %12 = vector.broadcast %cst_7 : f32 to vector<16x1xf32>
    %13 = arith.divf %11, %12 : vector<16x1xf32>
    %14 = vector.broadcast %6 : vector<16x1xf32> to vector<16x32xf32>
    %15 = arith.subf %0, %14 : vector<16x32xf32>
    %cst_8 = arith.constant 9.99999974E-6 : f32
    %16 = vector.broadcast %cst_8 : f32 to vector<16x1xf32>
    %17 = arith.addf %13, %16 : vector<16x1xf32>
    %18 = math.rsqrt %17 : vector<16x1xf32>
    %19 = vector.broadcast %18 : vector<16x1xf32> to vector<16x32xf32>
    %20 = arith.mulf %15, %19 : vector<16x32xf32>
    %21 = vector.broadcast %1 : vector<1x32xf32> to vector<16x32xf32>
    %22 = arith.mulf %20, %21 : vector<16x32xf32>
    %23 = vector.broadcast %2 : vector<1x32xf32> to vector<16x32xf32>
    %24 = arith.addf %22, %23 : vector<16x32xf32>
    %25 = arith.truncf %24 : vector<16x32xf32> to vector<16x32xbf16>
    %c0_9 = arith.constant 0 : index
    %c0_10 = arith.constant 0 : index
    %26 = vector.load %arg2[%c0_9, %c0_10] : memref<32x192xbf16, #tpu.memory_space<vmem>>, vector<32x192xbf16>
    %cst_11 = arith.constant dense<0.000000e+00> : vector<16x192xf32>
    %27 = tpu.matmul %25, %26, %cst_11 {dimension_numbers = #tpu.dot_dimension_numbers<[1], [0], [0], [1], [0, 0, 1, 1], [], []>} : vector<16x32xbf16>, vector<32x192xbf16>, vector<16x192xf32> -> vector<16x192xf32>
    %28 = vector.shape_cast %27 : vector<16x192xf32> to vector<16x6x32xf32>
    %29 = tpu.transpose %28, [1, 0, 2] : vector<16x6x32xf32> -> vector<6x16x32xf32>
    %30 = arith.truncf %29 : vector<6x16x32xf32> to vector<6x16x32xbf16>
    %31 = vector.extract_strided_slice %30 {offsets = [0, 0, 0], sizes = [2, 16, 32], strides = [1, 1, 1]} : vector<6x16x32xbf16> to vector<2x16x32xbf16>
    %32 = vector.shape_cast %31 : vector<2x16x32xbf16> to vector<4x8x32xbf16>
    %33 = vector.extract_strided_slice %30 {offsets = [2, 0, 0], sizes = [2, 16, 32], strides = [1, 1, 1]} : vector<6x16x32xbf16> to vector<2x16x32xbf16>
    %34 = vector.shape_cast %33 : vector<2x16x32xbf16> to vector<4x8x32xbf16>
    %35 = vector.extract_strided_slice %30 {offsets = [4, 0, 0], sizes = [2, 16, 32], strides = [1, 1, 1]} : vector<6x16x32xbf16> to vector<2x16x32xbf16>
    %36 = vector.shape_cast %35 : vector<2x16x32xbf16> to vector<4x8x32xbf16>
    %37 = tpu.iota {dimensions = array<i32: 0>} : vector<8x8xi32>
    %38 = tpu.iota {dimensions = array<i32: 1>} : vector<8x8xi32>
    %39 = arith.cmpi sge, %37, %38 : vector<8x8xi32>
    %cst_12 = arith.constant 0.000000e+00 : f32
    %cst_13 = arith.constant -1.000000e+30 : f32
    %40 = vector.broadcast %cst_12 : f32 to vector<8x8xf32>
    %41 = vector.broadcast %cst_13 : f32 to vector<8x8xf32>
    %42 = arith.select %39, %40, %41 : vector<8x8xi1>, vector<8x8xf32>
    %43 = vector.shape_cast %42 : vector<8x8xf32> to vector<1x8x8xf32>
    "tpu.trace_start"() <{level = 10 : i32, message = "bqd,bkd->bqk"}> : () -> ()
    %cst_14 = arith.constant dense<0.000000e+00> : vector<4x8x8xf32>
    %44 = tpu.matmul %32, %34, %cst_14 {dimension_numbers = #tpu.dot_dimension_numbers<[2], [2], [1], [1], [0, 0, 0, 1, 1, 1], [0], [0]>} : vector<4x8x32xbf16>, vector<4x8x32xbf16>, vector<4x8x8xf32> -> vector<4x8x8xf32>
    "tpu.trace_stop"() : () -> ()
    %45 = vector.broadcast %43 : vector<1x8x8xf32> to vector<4x8x8xf32>
    %46 = arith.addf %44, %45 : vector<4x8x8xf32>
    %cst_15 = arith.constant dense<0xFF800000> : vector<4x8xf32>
    %47 = vector.multi_reduction <maximumf>, %46, %cst_15 [2] : vector<4x8x8xf32> to vector<4x8xf32>
    %48 = vector.shape_cast %47 : vector<4x8xf32> to vector<4x8x1xf32>
    %49 = vector.broadcast %48 : vector<4x8x1xf32> to vector<4x8x8xf32>
    %50 = arith.subf %46, %49 : vector<4x8x8xf32>
    %51 = math.exp %50 : vector<4x8x8xf32>
    %cst_16 = arith.constant dense<0.000000e+00> : vector<4x8xf32>
    %52 = vector.multi_reduction <add>, %51, %cst_16 [2] : vector<4x8x8xf32> to vector<4x8xf32>
    %53 = vector.shape_cast %52 : vector<4x8xf32> to vector<4x8x1xf32>
    %54 = tpu.reciprocal %53 {approx = true} : vector<4x8x1xf32> -> vector<4x8x1xf32>
    %55 = vector.broadcast %54 : vector<4x8x1xf32> to vector<4x8x8xf32>
    %56 = arith.mulf %51, %55 : vector<4x8x8xf32>
    %57 = arith.truncf %56 : vector<4x8x8xf32> to vector<4x8x8xbf16>
    "tpu.trace_start"() <{level = 10 : i32, message = "bqk,bkd->bqd"}> : () -> ()
    %cst_17 = arith.constant dense<0.000000e+00> : vector<4x8x32xf32>
    %58 = tpu.matmul %57, %36, %cst_17 {dimension_numbers = #tpu.dot_dimension_numbers<[2], [1], [1], [2], [0, 0, 0, 1, 1, 2], [0], [0]>} : vector<4x8x8xbf16>, vector<4x8x32xbf16>, vector<4x8x32xf32> -> vector<4x8x32xf32>
    "tpu.trace_stop"() : () -> ()
    %59 = vector.shape_cast %58 : vector<4x8x32xf32> to vector<2x16x32xf32>
    %cst_18 = arith.constant dense<0.000000e+00> : vector<16x32xf32>
    %60 = vector.multi_reduction <add>, %59, %cst_18 [0] : vector<2x16x32xf32> to vector<16x32xf32>
    %61 = arith.addf %60, %0 : vector<16x32xf32>
    %c0_19 = arith.constant 0 : index
    %c0_20 = arith.constant 0 : index
    %62 = vector.load %arg5[%c0_19, %c0_20] : memref<1x32xf32, #tpu.memory_space<vmem>>, vector<1x32xf32>
    %c0_21 = arith.constant 0 : index
    %c0_22 = arith.constant 0 : index
    %63 = vector.load %arg6[%c0_21, %c0_22] : memref<1x32xf32, #tpu.memory_space<vmem>>, vector<1x32xf32>
    %cst_23 = arith.constant dense<0.000000e+00> : vector<16xf32>
    %64 = vector.multi_reduction <add>, %61, %cst_23 [1] : vector<16x32xf32> to vector<16xf32>
    %65 = vector.shape_cast %64 : vector<16xf32> to vector<16x1xf32>
    %cst_24 = arith.constant 3.200000e+01 : f32
    %66 = vector.broadcast %cst_24 : f32 to vector<16x1xf32>
    %67 = arith.divf %65, %66 : vector<16x1xf32>
    %68 = vector.broadcast %67 : vector<16x1xf32> to vector<16x32xf32>
    %69 = arith.subf %61, %68 : vector<16x32xf32>
    %70 = arith.mulf %69, %69 : vector<16x32xf32>
    %cst_25 = arith.constant dense<0.000000e+00> : vector<16xf32>
    %71 = vector.multi_reduction <add>, %70, %cst_25 [1] : vector<16x32xf32> to vector<16xf32>
    %72 = vector.shape_cast %71 : vector<16xf32> to vector<16x1xf32>
    %cst_26 = arith.constant 3.200000e+01 : f32
    %73 = vector.broadcast %cst_26 : f32 to vector<16x1xf32>
    %74 = arith.divf %72, %73 : vector<16x1xf32>
    %75 = vector.broadcast %67 : vector<16x1xf32> to vector<16x32xf32>
    %76 = arith.subf %61, %75 : vector<16x32xf32>
    %cst_27 = arith.constant 9.99999974E-6 : f32
    %77 = vector.broadcast %cst_27 : f32 to vector<16x1xf32>
    %78 = arith.addf %74, %77 : vector<16x1xf32>
    %79 = math.rsqrt %78 : vector<16x1xf32>
    %80 = vector.broadcast %79 : vector<16x1xf32> to vector<16x32xf32>
    %81 = arith.mulf %76, %80 : vector<16x32xf32>
    %82 = vector.broadcast %62 : vector<1x32xf32> to vector<16x32xf32>
    %83 = arith.mulf %81, %82 : vector<16x32xf32>
    %84 = vector.broadcast %63 : vector<1x32xf32> to vector<16x32xf32>
    %85 = arith.addf %83, %84 : vector<16x32xf32>
    %86 = arith.truncf %85 : vector<16x32xf32> to vector<16x32xbf16>
    %c0_28 = arith.constant 0 : index
    %c0_29 = arith.constant 0 : index
    %87 = vector.load %arg7[%c0_28, %c0_29] : memref<32x128xbf16, #tpu.memory_space<vmem>>, vector<32x128xbf16>
    %cst_30 = arith.constant dense<0.000000e+00> : vector<16x128xf32>
    %88 = tpu.matmul %86, %87, %cst_30 {dimension_numbers = #tpu.dot_dimension_numbers<[1], [0], [0], [1], [0, 0, 1, 1], [], []>} : vector<16x32xbf16>, vector<32x128xbf16>, vector<16x128xf32> -> vector<16x128xf32>
    %c0_31 = arith.constant 0 : index
    %c0_32 = arith.constant 0 : index
    %89 = vector.load %arg8[%c0_31, %c0_32] : memref<1x128xf32, #tpu.memory_space<vmem>>, vector<1x128xf32>
    %90 = vector.broadcast %89 : vector<1x128xf32> to vector<16x128xf32>
    %91 = arith.addf %88, %90 : vector<16x128xf32>
    %cst_33 = arith.constant 0.000000e+00 : f32
    %92 = vector.broadcast %cst_33 : f32 to vector<16x128xf32>
    %93 = arith.maximumf %91, %92 : vector<16x128xf32>
    %94 = arith.truncf %93 : vector<16x128xf32> to vector<16x128xbf16>
    %c0_34 = arith.constant 0 : index
    %c0_35 = arith.constant 0 : index
    %95 = vector.load %arg9[%c0_34, %c0_35] : memref<128x32xbf16, #tpu.memory_space<vmem>>, vector<128x32xbf16>
    %cst_36 = arith.constant dense<0.000000e+00> : vector<16x32xf32>
    %96 = tpu.matmul %94, %95, %cst_36 {dimension_numbers = #tpu.dot_dimension_numbers<[1], [0], [0], [1], [0, 0, 1, 1], [], []>} : vector<16x128xbf16>, vector<128x32xbf16>, vector<16x32xf32> -> vector<16x32xf32>
    %c0_37 = arith.constant 0 : index
    %c0_38 = arith.constant 0 : index
    %97 = vector.load %arg10[%c0_37, %c0_38] : memref<1x32xf32, #tpu.memory_space<vmem>>, vector<1x32xf32>
    %98 = vector.broadcast %97 : vector<1x32xf32> to vector<16x32xf32>
    %99 = arith.addf %96, %98 : vector<16x32xf32>
    %100 = arith.addf %99, %61 : vector<16x32xf32>
    %c0_39 = arith.constant 0 : index
    %c0_40 = arith.constant 0 : index
    %101 = vector.load %arg11[%c0_39, %c0_40] : memref<16x32xf32, #tpu.memory_space<vmem>>, vector<16x32xf32>
    tpu.vector_store %arg11[%c0_39, %c0_40], %100 {strides = array<i32>} : memref<16x32xf32, #tpu.memory_space<vmem>>, vector<16x32xf32>,
    return
  }
  func.func @transform_0(%arg0: i32) -> (i32, i32) {
    %c0_i32 = arith.constant 0 : i32
    %c0_i32_0 = arith.constant 0 : i32
    return %arg0, %c0_i32 : i32, i32
  }
  func.func @transform_1(%arg0: i32) -> (i32, i32) {
    %c0_i32 = arith.constant 0 : i32
    %c0_i32_0 = arith.constant 0 : i32
    %c0_i32_1 = arith.constant 0 : i32
    return %c0_i32, %c0_i32_0 : i32, i32
  }
  func.func @transform_2(%arg0: i32) -> (i32, i32) {
    %c0_i32 = arith.constant 0 : i32
    %c0_i32_0 = arith.constant 0 : i32
    %c0_i32_1 = arith.constant 0 : i32
    return %c0_i32, %c0_i32_0 : i32, i32
  }
  func.func @transform_3(%arg0: i32) -> (i32, i32) {
    %c0_i32 = arith.constant 0 : i32
    %c0_i32_0 = arith.constant 0 : i32
    %c0_i32_1 = arith.constant 0 : i32
    return %c0_i32, %c0_i32_0 : i32, i32
  }
  func.func @transform_4(%arg0: i32) -> (i32, i32) {
    %c0_i32 = arith.constant 0 : i32
    %c0_i32_0 = arith.constant 0 : i32
    %c0_i32_1 = arith.constant 0 : i32
    return %c0_i32, %c0_i32_0 : i32, i32
  }
  func.func @transform_5(%arg0: i32) -> (i32, i32) {
    %c0_i32 = arith.constant 0 : i32
    %c0_i32_0 = arith.constant 0 : i32
    %c0_i32_1 = arith.constant 0 : i32
    return %c0_i32, %c0_i32_0 : i32, i32
  }
  func.func @transform_6(%arg0: i32) -> (i32, i32) {
    %c0_i32 = arith.constant 0 : i32
    %c0_i32_0 = arith.constant 0 : i32
    %c0_i32_1 = arith.constant 0 : i32
    return %c0_i32, %c0_i32_0 : i32, i32
  }
  func.func @transform_7(%arg0: i32) -> (i32, i32) {
    %c0_i32 = arith.constant 0 : i32
    %c0_i32_0 = arith.constant 0 : i32
    %c0_i32_1 = arith.constant 0 : i32
    return %c0_i32, %c0_i32_0 : i32, i32
  }
  func.func @transform_8(%arg0: i32) -> (i32, i32) {
    %c0_i32 = arith.constant 0 : i32
    %c0_i32_0 = arith.constant 0 : i32
    %c0_i32_1 = arith.constant 0 : i32
    return %c0_i32, %c0_i32_0 : i32, i32
  }
  func.func @transform_9(%arg0: i32) -> (i32, i32) {
    %c0_i32 = arith.constant 0 : i32
    %c0_i32_0 = arith.constant 0 : i32
    %c0_i32_1 = arith.constant 0 : i32
    return %c0_i32, %c0_i32_0 : i32, i32
  }
  func.func @transform_10(%arg0: i32) -> (i32, i32) {
    %c0_i32 = arith.constant 0 : i32
    %c0_i32_0 = arith.constant 0 : i32
    return %arg0, %c0_i32 : i32, i32
  }
}

module attributes {stable_mosaic.version = 11 : i64} {
  func.func @block_kernel(%arg0: i32, %arg1: memref<16x32xf32, #tpu.memory_space<vmem>>, %arg2: memref<32x192xbf16, #tpu.memory_space<vmem>>, %arg3: memref<1x32xf32, #tpu.memory_space<vmem>>, %arg4: memref<1x32xf32, #tpu.memory_space<vmem>>, %arg5: memref<1x32xf32, #tpu.memory_space<vmem>>, %arg6: memref<1x32xf32, #tpu.memory_space<vmem>>, %arg7: memref<32x128xbf16, #tpu.memory_space<vmem>>, %arg8: memref<1x128xf32, #tpu.memory_space<vmem>>, %arg9: memref<128x32xbf16, #tpu.memory_space<vmem>>, %arg10: memref<1x32xf32, #tpu.memory_space<vmem>>, %arg11: memref<16x32xf32, #tpu.memory_space<vmem>>) attributes {dimension_semantics = [#tpu.dimension_semantics<parallel>], iteration_bounds = array<i64: 2>, scalar_prefetch = 0 : i64, scratch_operands = 0 : i64, tpu.core_type = #tpu.core_type<tc>, window_params = [{transform_indices = @transform_0, window_bounds = array<i64: 16, 32>}, {pipeline_mode = #tpu.pipeline_mode<synchronous>, transform_indices = @transform_1, window_bounds = array<i64: 32, 192>}, {pipeline_mode = #tpu.pipeline_mode<synchronous>, transform_indices = @transform_2, window_bounds = array<i64: 1, 32>}, {pipeline_mode = #tpu.pipeline_mode<synchronous>, transform_indices = @transform_3, window_bounds = array<i64: 1, 32>}, {pipeline_mode = #tpu.pipeline_mode<synchronous>, transform_indices = @transform_4, window_bounds = array<i64: 1, 32>}, {pipeline_mode = #tpu.pipeline_mode<synchronous>, transform_indices = @transform_5, window_bounds = array<i64: 1, 32>}, {pipeline_mode = #tpu.pipeline_mode<synchronous>, transform_indices = @transform_6, window_bounds = array<i64: 32, 128>}, {pipeline_mode = #tpu.pipeline_mode<synchronous>, transform_indices = @transform_7, window_bounds = array<i64: 1, 128>}, {pipeline_mode = #tpu.pipeline_mode<synchronous>, transform_indices = @transform_8, window_bounds = array<i64: 128, 32>}, {pipeline_mode = #tpu.pipeline_mode<synchronous>, transform_indices = @transform_9, window_bounds = array<i64: 1, 32>}, {transform_indices = @transform_10, window_bounds = array<i64: 16, 32>}]} {
    %c0 = arith.constant 0 : index
    %c0_0 = arith.constant 0 : index
    %0 = vector.load %arg1[%c0, %c0_0] : memref<16x32xf32, #tpu.memory_space<vmem>>, vector<16x32xf32>
    %c0_1 = arith.constant 0 : index
    %c0_2 = arith.constant 0 : index
    %1 = vector.load %arg3[%c0_1, %c0_2] : memref<1x32xf32, #tpu.memory_space<vmem>>, vector<1x32xf32>
    %c0_3 = arith.constant 0 : index
    %c0_4 = arith.constant 0 : index
    %2 = vector.load %arg4[%c0_3, %c0_4] : memref<1x32xf32, #tpu.memory_space<vmem>>, vector<1x32xf32>
    %cst = arith.constant dense<0.000000e+00> : vector<16xf32>
    %3 = vector.multi_reduction <add>, %0, %cst [1] : vector<16x32xf32> to vector<16xf32>
    %4 = vector.shape_cast %3 : vector<16xf32> to vector<16x1xf32>
    %cst_5 = arith.constant 3.200000e+01 : f32
    %5 = vector.broadcast %cst_5 : f32 to vector<16x1xf32>
    %6 = arith.divf %4, %5 : vector<16x1xf32>
    %7 = vector.broadcast %6 : vector<16x1xf32> to vector<16x32xf32>
    %8 = arith.subf %0, %7 : vector<16x32xf32>
    %9 = arith.mulf %8, %8 : vector<16x32xf32>
    %cst_6 = arith.constant dense<0.000000e+00> : vector<16xf32>
    %10 = vector.multi_reduction <add>, %9, %cst_6 [1] : vector<16x32xf32> to vector<16xf32>
    %11 = vector.shape_cast %10 : vector<16xf32> to vector<16x1xf32>
    %cst_7 = arith.constant 3.200000e+01 : f32
    %12 = vector.broadcast %cst_7 : f32 to vector<16x1xf32>
    %13 = arith.divf %11, %12 : vector<16x1xf32>
    %14 = vector.broadcast %6 : vector<16x1xf32> to vector<16x32xf32>
    %15 = arith.subf %0, %14 : vector<16x32xf32>
    %cst_8 = arith.constant 9.99999974E-6 : f32
    %16 = vector.broadcast %cst_8 : f32 to vector<16x1xf32>
    %17 = arith.addf %13, %16 : vector<16x1xf32>
    %18 = math.rsqrt %17 : vector<16x1xf32>
    %19 = vector.broadcast %18 : vector<16x1xf32> to vector<16x32xf32>
    %20 = arith.mulf %15, %19 : vector<16x32xf32>
    %21 = vector.broadcast %1 : vector<1x32xf32> to vector<16x32xf32>
    %22 = arith.mulf %20, %21 : vector<16x32xf32>
    %23 = vector.broadcast %2 : vector<1x32xf32> to vector<16x32xf32>
    %24 = arith.addf %22, %23 : vector<16x32xf32>
    %25 = arith.truncf %24 : vector<16x32xf32> to vector<16x32xbf16>
    %c0_9 = arith.constant 0 : index
    %c0_10 = arith.constant 0 : index
    %26 = vector.load %arg2[%c0_9, %c0_10] : memref<32x192xbf16, #tpu.memory_space<vmem>>, vector<32x192xbf16>
    %cst_11 = arith.constant dense<0.000000e+00> : vector<16x192xf32>
    %27 = tpu.matmul %25, %26, %cst_11 {dimension_numbers = #tpu.dot_dimension_numbers<[1], [0], [0], [1], [0, 0, 1, 1], [], []>} : vector<16x32xbf16>, vector<32x192xbf16>, vector<16x192xf32> -> vector<16x192xf32>
    %28 = vector.shape_cast %27 : vector<16x192xf32> to vector<16x6x32xf32>
    %29 = tpu.transpose %28, [1, 0, 2] : vector<16x6x32xf32> -> vector<6x16x32xf32>
    %30 = arith.truncf %29 : vector<6x16x32xf32> to vector<6x16x32xbf16>
    %31 = vector.extract_strided_slice %30 {offsets = [0, 0, 0], sizes = [2, 16, 32], strides = [1, 1, 1]} : vector<6x16x32xbf16> to vector<2x16x32xbf16>
    %32 = vector.shape_cast %31 : vector<2x16x32xbf16> to vector<4x8x32xbf16>
    %33 = vector.extract_strided_slice %30 {offsets = [2, 0, 0], sizes = [2, 16, 32], strides = [1, 1, 1]} : vector<6x16x32xbf16> to vector<2x16x32xbf16>
    %34 = vector.shape_cast %33 : vector<2x16x32xbf16> to vector<4x8x32xbf16>
    %35 = vector.extract_strided_slice %30 {offsets = [4, 0, 0], sizes = [2, 16, 32], strides = [1, 1, 1]} : vector<6x16x32xbf16> to vector<2x16x32xbf16>
    %36 = vector.shape_cast %35 : vector<2x16x32xbf16> to vector<4x8x32xbf16>
    %37 = tpu.iota {dimensions = array<i32: 0>} : vector<8x8xi32>
    %38 = tpu.iota {dimensions = array<i32: 1>} : vector<8x8xi32>
    %39 = arith.cmpi sge, %37, %38 : vector<8x8xi32>
    %cst_12 = arith.constant 0.000000e+00 : f32
    %cst_13 = arith.constant -1.000000e+30 : f32
    %40 = vector.broadcast %cst_12 : f32 to vector<8x8xf32>
    %41 = vector.broadcast %cst_13 : f32 to vector<8x8xf32>
    %42 = arith.select %39, %40, %41 : vector<8x8xi1>, vector<8x8xf32>
    %43 = vector.shape_cast %42 : vector<8x8xf32> to vector<1x8x8xf32>
    "tpu.trace_start"() <{level = 10 : i32, message = "bqd,bkd->bqk"}> : () -> ()
    %cst_14 = arith.constant dense<0.000000e+00> : vector<4x8x8xf32>
    %44 = tpu.matmul %32, %34, %cst_14 {dimension_numbers = #tpu.dot_dimension_numbers<[2], [2], [1], [1], [0, 0, 0, 1, 1, 1], [0], [0]>} : vector<4x8x32xbf16>, vector<4x8x32xbf16>, vector<4x8x8xf32> -> vector<4x8x8xf32>
    "tpu.trace_stop"() : () -> ()
    %45 = vector.broadcast %43 : vector<1x8x8xf32> to vector<4x8x8xf32>
    %46 = arith.addf %44, %45 : vector<4x8x8xf32>
    %cst_15 = arith.constant dense<0xFF800000> : vector<4x8xf32>
    %47 = vector.multi_reduction <maximumf>, %46, %cst_15 [2] : vector<4x8x8xf32> to vector<4x8xf32>
    %48 = vector.shape_cast %47 : vector<4x8xf32> to vector<4x8x1xf32>
    %49 = vector.broadcast %48 : vector<4x8x1xf32> to vector<4x8x8xf32>
    %50 = arith.subf %46, %49 : vector<4x8x8xf32>
    %51 = math.exp %50 : vector<4x8x8xf32>
    %cst_16 = arith.constant dense<0.000000e+00> : vector<4x8xf32>
    %52 = vector.multi_reduction <add>, %51, %cst_16 [2] : vector<4x8x8xf32> to vector<4x8xf32>
    %53 = vector.shape_cast %52 : vector<4x8xf32> to vector<4x8x1xf32>
    %54 = tpu.reciprocal %53 {approx = true} : vector<4x8x1xf32> -> vector<4x8x1xf32>
    %55 = vector.broadcast %54 : vector<4x8x1xf32> to vector<4x8x8xf32>
    %56 = arith.mulf %51, %55 : vector<4x8x8xf32>
    %57 = arith.truncf %56 : vector<4x8x8xf32> to vector<4x8x8xbf16>
    "tpu.trace_start"() <{level = 10 : i32, message = "bqk,bkd->bqd"}> : () -> ()
    %cst_17 = arith.constant dense<0.000000e+00> : vector<4x8x32xf32>
    %58 = tpu.matmul %57, %36, %cst_17 {dimension_numbers = #tpu.dot_dimension_numbers<[2], [1], [1], [2], [0, 0, 0, 1, 1, 2], [0], [0]>} : vector<4x8x8xbf16>, vector<4x8x32xbf16>, vector<4x8x32xf32> -> vector<4x8x32xf32>
    "tpu.trace_stop"() : () -> ()
    %59 = vector.shape_cast %58 : vector<4x8x32xf32> to vector<2x16x32xf32>
    %cst_18 = arith.constant dense<0.000000e+00> : vector<16x32xf32>
    %60 = vector.multi_reduction <add>, %59, %cst_18 [0] : vector<2x16x32xf32> to vector<16x32xf32>
    %61 = arith.addf %60, %0 : vector<16x32xf32>
    %c0_19 = arith.constant 0 : index
    %c0_20 = arith.constant 0 : index
    %62 = vector.load %arg5[%c0_19, %c0_20] : memref<1x32xf32, #tpu.memory_space<vmem>>, vector<1x32xf32>
    %c0_21 = arith.constant 0 : index
    %c0_22 = arith.constant 0 : index
    %63 = vector.load %arg6[%c0_21, %c0_22] : memref<1x32xf32, #tpu.memory_space<vmem>>, vector<1x32xf32>
    %cst_23 = arith.constant dense<0.000000e+00> : vector<16xf32>
    %64 = vector.multi_reduction <add>, %61, %cst_23 [1] : vector<16x32xf32> to vector<16xf32>
    %65 = vector.shape_cast %64 : vector<16xf32> to vector<16x1xf32>
    %cst_24 = arith.constant 3.200000e+01 : f32
    %66 = vector.broadcast %cst_24 : f32 to vector<16x1xf32>
    %67 = arith.divf %65, %66 : vector<16x1xf32>
    %68 = vector.broadcast %67 : vector<16x1xf32> to vector<16x32xf32>
    %69 = arith.subf %61, %68 : vector<16x32xf32>
    %70 = arith.mulf %69, %69 : vector<16x32xf32>
    %cst_25 = arith.constant dense<0.000000e+00> : vector<16xf32>
    %71 = vector.multi_reduction <add>, %70, %cst_25 [1] : vector<16x32xf32> to vector<16xf32>
    %72 = vector.shape_cast %71 : vector<16xf32> to vector<16x1xf32>
    %cst_26 = arith.constant 3.200000e+01 : f32
    %73 = vector.broadcast %cst_26 : f32 to vector<16x1xf32>
    %74 = arith.divf %72, %73 : vector<16x1xf32>
    %75 = vector.broadcast %67 : vector<16x1xf32> to vector<16x32xf32>
    %76 = arith.subf %61, %75 : vector<16x32xf32>
    %cst_27 = arith.constant 9.99999974E-6 : f32
    %77 = vector.broadcast %cst_27 : f32 to vector<16x1xf32>
    %78 = arith.addf %74, %77 : vector<16x1xf32>
    %79 = math.rsqrt %78 : vector<16x1xf32>
    %80 = vector.broadcast %79 : vector<16x1xf32> to vector<16x32xf32>
    %81 = arith.mulf %76, %80 : vector<16x32xf32>
    %82 = vector.broadcast %62 : vector<1x32xf32> to vector<16x32xf32>
    %83 = arith.mulf %81, %82 : vector<16x32xf32>
    %84 = vector.broadcast %63 : vector<1x32xf32> to vector<16x32xf32>
    %85 = arith.addf %83, %84 : vector<16x32xf32>
    %86 = arith.truncf %85 : vector<16x32xf32> to vector<16x32xbf16>
    %c0_28 = arith.constant 0 : index
    %c0_29 = arith.constant 0 : index
    %87 = vector.load %arg7[%c0_28, %c0_29] : memref<32x128xbf16, #tpu.memory_space<vmem>>, vector<32x128xbf16>
    %cst_30 = arith.constant dense<0.000000e+00> : vector<16x128xf32>
    %88 = tpu.matmul %86, %87, %cst_30 {dimension_numbers = #tpu.dot_dimension_numbers<[1], [0], [0], [1], [0, 0, 1, 1], [], []>} : vector<16x32xbf16>, vector<32x128xbf16>, vector<16x128xf32> -> vector<16x128xf32>
    %c0_31 = arith.constant 0 : index
    %c0_32 = arith.constant 0 : index
    %89 = vector.load %arg8[%c0_31, %c0_32] : memref<1x128xf32, #tpu.memory_space<vmem>>, vector<1x128xf32>
    %90 = vector.broadcast %89 : vector<1x128xf32> to vector<16x128xf32>
    %91 = arith.addf %88, %90 : vector<16x128xf32>
    %cst_33 = arith.constant 0.000000e+00 : f32
    %92 = vector.broadcast %cst_33 : f32 to vector<16x128xf32>
    %93 = arith.maximumf %91, %92 : vector<16x128xf32>
    %94 = arith.truncf %93 : vector<16x128xf32> to vector<16x128xbf16>
    %c0_34 = arith.constant 0 : index
    %c0_35 = arith.constant 0 : index
    %95 = vector.load %arg9[%c0_34, %c0_35] : memref<128x32xbf16, #tpu.memory_space<vmem>>, vector<128x32xbf16>
    %cst_36 = arith.constant dense<0.000000e+00> : vector<16x32xf32>
    %96 = tpu.matmul %94, %95, %cst_36 {dimension_numbers = #tpu.dot_dimension_numbers<[1], [0], [0], [1], [0, 0, 1, 1], [], []>} : vector<16x128xbf16>, vector<128x32xbf16>, vector<16x32xf32> -> vector<16x32xf32>
    %c0_37 = arith.constant 0 : index
    %c0_38 = arith.constant 0 : index
    %97 = vector.load %arg10[%c0_37, %c0_38] : memref<1x32xf32, #tpu.memory_space<vmem>>, vector<1x32xf32>
    %98 = vector.broadcast %97 : vector<1x32xf32> to vector<16x32xf32>
    %99 = arith.addf %96, %98 : vector<16x32xf32>
    %100 = arith.addf %99, %61 : vector<16x32xf32>
    %c0_39 = arith.constant 0 : index
    %c0_40 = arith.constant 0 : index
    %101 = vector.load %arg11[%c0_39, %c0_40] : memref<16x32xf32, #tpu.memory_space<vmem>>, vector<16x32xf32>
    tpu.vector_store %arg11[%c0_39, %c0_40], %100 {strides = array<i32>} : memref<16x32xf32, #tpu.memory_space<vmem>>, vector<16x32xf32>,
    return
  }
  func.func @transform_0(%arg0: i32) -> (i32, i32) {
    %c0_i32 = arith.constant 0 : i32
    %c0_i32_0 = arith.constant 0 : i32
    return %arg0, %c0_i32 : i32, i32
  }
  func.func @transform_1(%arg0: i32) -> (i32, i32) {
    %c0_i32 = arith.constant 0 : i32
    %c0_i32_0 = arith.constant 0 : i32
    %c0_i32_1 = arith.constant 0 : i32
    return %c0_i32, %c0_i32_0 : i32, i32
  }
  func.func @transform_2(%arg0: i32) -> (i32, i32) {
    %c0_i32 = arith.constant 0 : i32
    %c0_i32_0 = arith.constant 0 : i32
    %c0_i32_1 = arith.constant 0 : i32
    return %c0_i32, %c0_i32_0 : i32, i32
  }
  func.func @transform_3(%arg0: i32) -> (i32, i32) {
    %c0_i32 = arith.constant 0 : i32
    %c0_i32_0 = arith.constant 0 : i32
    %c0_i32_1 = arith.constant 0 : i32
    return %c0_i32, %c0_i32_0 : i32, i32
  }
  func.func @transform_4(%arg0: i32) -> (i32, i32) {
    %c0_i32 = arith.constant 0 : i32
    %c0_i32_0 = arith.constant 0 : i32
    %c0_i32_1 = arith.constant 0 : i32
    return %c0_i32, %c0_i32_0 : i32, i32
  }
  func.func @transform_5(%arg0: i32) -> (i32, i32) {
    %c0_i32 = arith.constant 0 : i32
    %c0_i32_0 = arith.constant 0 : i32
    %c0_i32_1 = arith.constant 0 : i32
    return %c0_i32, %c0_i32_0 : i32, i32
  }
  func.func @transform_6(%arg0: i32) -> (i32, i32) {
    %c0_i32 = arith.constant 0 : i32
    %c0_i32_0 = arith.constant 0 : i32
    %c0_i32_1 = arith.constant 0 : i32
    return %c0_i32, %c0_i32_0 : i32, i32
  }
  func.func @transform_7(%arg0: i32) -> (i32, i32) {
    %c0_i32 = arith.constant 0 : i32
    %c0_i32_0 = arith.constant 0 : i32
    %c0_i32_1 = arith.constant 0 : i32
    return %c0_i32, %c0_i32_0 : i32, i32
  }
  func.func @transform_8(%arg0: i32) -> (i32, i32) {
    %c0_i32 = arith.constant 0 : i32
    %c0_i32_0 = arith.constant 0 : i32
    %c0_i32_1 = arith.constant 0 : i32
    return %c0_i32, %c0_i32_0 : i32, i32
  }
  func.func @transform_9(%arg0: i32) -> (i32, i32) {
    %c0_i32 = arith.constant 0 : i32
    %c0_i32_0 = arith.constant 0 : i32
    %c0_i32_1 = arith.constant 0 : i32
    return %c0_i32, %c0_i32_0 : i32, i32
  }
  func.func @transform_10(%arg0: i32) -> (i32, i32) {
    %c0_i32 = arith.constant 0 : i32
    %c0_i32_0 = arith.constant 0 : i32
    return %arg0, %c0_i32 : i32, i32
  }
}

</mosaic_0001>

<llo_original>
// kernel: tpu_custom_call.1
$region0: #{tpu_custom_call.1}
  #allocation0 [shape = 'u32[]', space=smem, size = 0x4, offset = 0x4, fixed_abs, tag = 'smem constant byte address 0x4 - core index']
  #allocation1 [shape = 'u32[144,128]{1,0:T(1,128)}', space=vmem, size = 0x12000, scoped, tag = 'internal scratch']
  %s0 = inlined_call_operand.vmem [shape: f32[32,32], index: 0, kind: input, shape index: {}]
  %s1 = inlined_call_operand.vmem [shape: bf16[32,192], index: 1, kind: input, shape index: {}]
  %s2 = inlined_call_operand.vmem [shape: f32[1,32], index: 2, kind: input, shape index: {}]
  %s3 = inlined_call_operand.vmem [shape: f32[1,32], index: 3, kind: input, shape index: {}]
  %s4 = inlined_call_operand.vmem [shape: f32[1,32], index: 4, kind: input, shape index: {}]
  %s5 = inlined_call_operand.vmem [shape: f32[1,32], index: 5, kind: input, shape index: {}]
  %s6 = inlined_call_operand.vmem [shape: bf16[32,128], index: 6, kind: input, shape index: {}]
  %s7 = inlined_call_operand.vmem [shape: f32[1,128], index: 7, kind: input, shape index: {}]
  %s8 = inlined_call_operand.vmem [shape: bf16[128,32], index: 8, kind: input, shape index: {}]
  %s9 = inlined_call_operand.vmem [shape: f32[1,32], index: 9, kind: input, shape index: {}]
  %s10 = inlined_call_operand.hbm [shape: f32[32,32], index: 10, kind: output, shape index: {}]
  %s11 = sld [smem:[#allocation0]]
  $region73: #{tpu_custom_call.1} parent=0
    _
  %s13 = ssub.s32 1, %s11
  %s14 = scalar_select 0, %s13, %s11
  $region1: #{tpu_custom_call.1} parent=0
    #allocation2 [shape = 'u8[16384]{0}', space=vmem, size = 0x4000, scoped, tag = 'output window, operand 0']
    #allocation3 [shape = 's32[2]{0}', space=sflag, size = 0x8, scoped, tag = 'scoped memory for tpu_custom_call.1']
    %15 = vsyncpa [#allocation3], 0
    %s16 = scalar_lea.sflag [#allocation3], 1
    %17 = vsyncpa %s16, 0
    loop: start=0, step=1, limit=4
    $region2: #{tpu_custom_call.1} parent=1 // loop_pre_header
      _
    $region3: #{tpu_custom_call.1} parent=1 // loop_header
      %s19 = sphi 0, %s23
      %p20 = scmp.ge.s32.totalorder %s19, 4
      %s29 = sphi 0, %s31
      %s32 = sphi 0, %s29
      %s33 = sphi 0, %s32
      %s49 = sphi 0, %s33
      %s53 = sphi 0, %s53
      %s55 = sphi 0, %s53
      %s56 = sphi 0, %s55
      %s70 = sphi 0, %s56
      %s74 = sphi 0, %s74
      %s76 = sphi 0, %s74
      %s77 = sphi 0, %s76
      %s91 = sphi 0, %s77
      %s95 = sphi 0, %s95
      %s97 = sphi 0, %s95
      %s98 = sphi 0, %s97
      %s112 = sphi 0, %s98
      %s116 = sphi 0, %s116
      %s118 = sphi 0, %s116
      %s119 = sphi 0, %s118
      %s133 = sphi 0, %s119
      %s137 = sphi 0, %s137
      %s139 = sphi 0, %s137
      %s140 = sphi 0, %s139
      %s154 = sphi 0, %s140
      %s158 = sphi 0, %s158
      %s160 = sphi 0, %s158
      %s161 = sphi 0, %s160
      %s175 = sphi 0, %s161
      %s179 = sphi 0, %s179
      %s181 = sphi 0, %s179
      %s182 = sphi 0, %s181
      %s196 = sphi 0, %s182
      %s200 = sphi 0, %s200
      %s202 = sphi 0, %s200
      %s203 = sphi 0, %s202
      %s217 = sphi 0, %s203
      %s221 = sphi 0, %s221
      %s223 = sphi 0, %s221
      %s224 = sphi 0, %s223
      %s238 = sphi 0, %s224
      %s244 = sphi 0, %s246
      %s247 = sphi 0, %s244
      %s248 = sphi 0, %s247
      %s264 = sphi 0, %s248
    $region4: #{tpu_custom_call.1} parent=1 // loop_header_branch
      %22 = sbr.rel (%p20) target = $region8
    $region5: #{tpu_custom_call.1} parent=1 // loop_body
      %s24 = ssub.s32 %s19, 1
      %s25 = ssub.s32 %s19, 2
      %s26 = sadd.s32 %s19, 1
      %s27 = ssub.s32 %s19, %s26
      %p28 = scmp.eq.s32.totalorder %s27, 0
      %s30 = sadd.s32 %s29, 1
      %s31 = scalar_select %p28, %s29, %s30
      %p34 = pneg %p28
      %p35 = scmp.eq.s32.totalorder %s19, 1
      %p36 = por %p34, %p35
      %p37 = scmp.ne.s32.totalorder %s29, %s32
      %p38 = scmp.eq.s32.totalorder %s19, 0
      %p39 = por %p37, %p38
      %p40 = scmp.ne.s32.totalorder %s29, %s32
      %p41 = scmp.eq.s32.totalorder %s24, 1
      %p42 = por %p40, %p41
      %p43 = scmp.ne.s32.totalorder %s32, %s33
      %p44 = scmp.eq.s32.totalorder %s24, 0
      %p45 = por %p43, %p44
      %p46 = scmp.ne.s32.totalorder %s32, %s33
      %p47 = scmp.eq.s32.totalorder %s25, 1
      %p48 = por %p46, %p47
      %p50 = scmp.ne.s32.totalorder %s33, %s49
      %p51 = scmp.eq.s32.totalorder %s25, 0
      %p52 = por %p50, %p51
      %s54 = sadd.s32 %s53, 1
      %p57 = scmp.eq.s32.totalorder %s19, 1
      %p58 = scmp.ne.s32.totalorder %s53, %s55
      %p59 = scmp.eq.s32.totalorder %s19, 0
      %p60 = por %p58, %p59
      %p61 = scmp.ne.s32.totalorder %s53, %s55
      %p62 = scmp.eq.s32.totalorder %s24, 1
      %p63 = por %p61, %p62
      %p64 = scmp.ne.s32.totalorder %s55, %s56
      %p65 = scmp.eq.s32.totalorder %s24, 0
      %p66 = por %p64, %p65
      %p67 = scmp.ne.s32.totalorder %s55, %s56
      %p68 = scmp.eq.s32.totalorder %s25, 1
      %p69 = por %p67, %p68
      %p71 = scmp.ne.s32.totalorder %s56, %s70
      %p72 = scmp.eq.s32.totalorder %s25, 0
      %p73 = por %p71, %p72
      %s75 = sadd.s32 %s74, 1
      %p78 = scmp.eq.s32.totalorder %s19, 1
      %p79 = scmp.ne.s32.totalorder %s74, %s76
      %p80 = scmp.eq.s32.totalorder %s19, 0
      %p81 = por %p79, %p80
      %p82 = scmp.ne.s32.totalorder %s74, %s76
      %p83 = scmp.eq.s32.totalorder %s24, 1
      %p84 = por %p82, %p83
      %p85 = scmp.ne.s32.totalorder %s76, %s77
      %p86 = scmp.eq.s32.totalorder %s24, 0
      %p87 = por %p85, %p86
      %p88 = scmp.ne.s32.totalorder %s76, %s77
      %p89 = scmp.eq.s32.totalorder %s25, 1
      %p90 = por %p88, %p89
      %p92 = scmp.ne.s32.totalorder %s77, %s91
      %p93 = scmp.eq.s32.totalorder %s25, 0
      %p94 = por %p92, %p93
      %s96 = sadd.s32 %s95, 1
      %p99 = scmp.eq.s32.totalorder %s19, 1
      %p100 = scmp.ne.s32.totalorder %s95, %s97
      %p101 = scmp.eq.s32.totalorder %s19, 0
      %p102 = por %p100, %p101
      %p103 = scmp.ne.s32.totalorder %s95, %s97
      %p104 = scmp.eq.s32.totalorder %s24, 1
      %p105 = por %p103, %p104
      %p106 = scmp.ne.s32.totalorder %s97, %s98
      %p107 = scmp.eq.s32.totalorder %s24, 0
      %p108 = por %p106, %p107
      %p109 = scmp.ne.s32.totalorder %s97, %s98
      %p110 = scmp.eq.s32.totalorder %s25, 1
      %p111 = por %p109, %p110
      %p113 = scmp.ne.s32.totalorder %s98, %s112
      %p114 = scmp.eq.s32.totalorder %s25, 0
      %p115 = por %p113, %p114
      %s117 = sadd.s32 %s116, 1
      %p120 = scmp.eq.s32.totalorder %s19, 1
      %p121 = scmp.ne.s32.totalorder %s116, %s118
      %p122 = scmp.eq.s32.totalorder %s19, 0
      %p123 = por %p121, %p122
      %p124 = scmp.ne.s32.totalorder %s116, %s118
      %p125 = scmp.eq.s32.totalorder %s24, 1
      %p126 = por %p124, %p125
      %p127 = scmp.ne.s32.totalorder %s118, %s119
      %p128 = scmp.eq.s32.totalorder %s24, 0
      %p129 = por %p127, %p128
      %p130 = scmp.ne.s32.totalorder %s118, %s119
      %p131 = scmp.eq.s32.totalorder %s25, 1
      %p132 = por %p130, %p131
      %p134 = scmp.ne.s32.totalorder %s119, %s133
      %p135 = scmp.eq.s32.totalorder %s25, 0
      %p136 = por %p134, %p135
      %s138 = sadd.s32 %s137, 1
      %p141 = scmp.eq.s32.totalorder %s19, 1
      %p142 = scmp.ne.s32.totalorder %s137, %s139
      %p143 = scmp.eq.s32.totalorder %s19, 0
      %p144 = por %p142, %p143
      %p145 = scmp.ne.s32.totalorder %s137, %s139
      %p146 = scmp.eq.s32.totalorder %s24, 1
      %p147 = por %p145, %p146
      %p148 = scmp.ne.s32.totalorder %s139, %s140
      %p149 = scmp.eq.s32.totalorder %s24, 0
      %p150 = por %p148, %p149
      %p151 = scmp.ne.s32.totalorder %s139, %s140
      %p152 = scmp.eq.s32.totalorder %s25, 1
      %p153 = por %p151, %p152
      %p155 = scmp.ne.s32.totalorder %s140, %s154
      %p156 = scmp.eq.s32.totalorder %s25, 0
      %p157 = por %p155, %p156
      %s159 = sadd.s32 %s158, 1
      %p162 = scmp.eq.s32.totalorder %s19, 1
      %p163 = scmp.ne.s32.totalorder %s158, %s160
      %p164 = scmp.eq.s32.totalorder %s19, 0
      %p165 = por %p163, %p164
      %p166 = scmp.ne.s32.totalorder %s158, %s160
      %p167 = scmp.eq.s32.totalorder %s24, 1
      %p168 = por %p166, %p167
      %p169 = scmp.ne.s32.totalorder %s160, %s161
      %p170 = scmp.eq.s32.totalorder %s24, 0
      %p171 = por %p169, %p170
      %p172 = scmp.ne.s32.totalorder %s160, %s161
      %p173 = scmp.eq.s32.totalorder %s25, 1
      %p174 = por %p172, %p173
      %p176 = scmp.ne.s32.totalorder %s161, %s175
      %p177 = scmp.eq.s32.totalorder %s25, 0
      %p178 = por %p176, %p177
      %s180 = sadd.s32 %s179, 1
      %p183 = scmp.eq.s32.totalorder %s19, 1
      %p184 = scmp.ne.s32.totalorder %s179, %s181
      %p185 = scmp.eq.s32.totalorder %s19, 0
      %p186 = por %p184, %p185
      %p187 = scmp.ne.s32.totalorder %s179, %s181
      %p188 = scmp.eq.s32.totalorder %s24, 1
      %p189 = por %p187, %p188
      %p190 = scmp.ne.s32.totalorder %s181, %s182
      %p191 = scmp.eq.s32.totalorder %s24, 0
      %p192 = por %p190, %p191
      %p193 = scmp.ne.s32.totalorder %s181, %s182
      %p194 = scmp.eq.s32.totalorder %s25, 1
      %p195 = por %p193, %p194
      %p197 = scmp.ne.s32.totalorder %s182, %s196
      %p198 = scmp.eq.s32.totalorder %s25, 0
      %p199 = por %p197, %p198
      %s201 = sadd.s32 %s200, 1
      %p204 = scmp.eq.s32.totalorder %s19, 1
      %p205 = scmp.ne.s32.totalorder %s200, %s202
      %p206 = scmp.eq.s32.totalorder %s19, 0
      %p207 = por %p205, %p206
      %p208 = scmp.ne.s32.totalorder %s200, %s202
      %p209 = scmp.eq.s32.totalorder %s24, 1
      %p210 = por %p208, %p209
      %p211 = scmp.ne.s32.totalorder %s202, %s203
      %p212 = scmp.eq.s32.totalorder %s24, 0
      %p213 = por %p211, %p212
      %p214 = scmp.ne.s32.totalorder %s202, %s203
      %p215 = scmp.eq.s32.totalorder %s25, 1
      %p216 = por %p214, %p215
      %p218 = scmp.ne.s32.totalorder %s203, %s217
      %p219 = scmp.eq.s32.totalorder %s25, 0
      %p220 = por %p218, %p219
      %s222 = sadd.s32 %s221, 1
      %p225 = scmp.eq.s32.totalorder %s19, 1
      %p226 = scmp.ne.s32.totalorder %s221, %s223
      %p227 = scmp.eq.s32.totalorder %s19, 0
      %p228 = por %p226, %p227
      %p229 = scmp.ne.s32.totalorder %s221, %s223
      %p230 = scmp.eq.s32.totalorder %s24, 1
      %p231 = por %p229, %p230
      %p232 = scmp.ne.s32.totalorder %s223, %s224
      %p233 = scmp.eq.s32.totalorder %s24, 0
      %p234 = por %p232, %p233
      %p235 = scmp.ne.s32.totalorder %s223, %s224
      %p236 = scmp.eq.s32.totalorder %s25, 1
      %p237 = por %p235, %p236
      %p239 = scmp.ne.s32.totalorder %s224, %s238
      %p240 = scmp.eq.s32.totalorder %s25, 0
      %p241 = por %p239, %p240
      %s242 = ssub.s32 %s19, %s26
      %p243 = scmp.eq.s32.totalorder %s242, 0
      %s245 = sadd.s32 %s244, 1
      %s246 = scalar_select %p243, %s244, %s245
      %p249 = pneg %p243
      %p250 = scmp.eq.s32.totalorder %s19, 1
      %p251 = por %p249, %p250
      %p252 = scmp.ne.s32.totalorder %s244, %s247
      %p253 = scmp.eq.s32.totalorder %s19, 0
      %p254 = por %p252, %p253
      %p255 = scmp.ne.s32.totalorder %s244, %s247
      %p256 = scmp.eq.s32.totalorder %s24, 1
      %p257 = por %p255, %p256
      %p258 = scmp.ne.s32.totalorder %s247, %s248
      %p259 = scmp.eq.s32.totalorder %s24, 0
      %p260 = por %p258, %p259
      %p261 = scmp.ne.s32.totalorder %s247, %s248
      %p262 = scmp.eq.s32.totalorder %s25, 1
      %p263 = por %p261, %p262
      %p265 = scmp.ne.s32.totalorder %s248, %s264
      %p266 = scmp.eq.s32.totalorder %s25, 0
      %p267 = por %p265, %p266
      %p268 = scmp.le.s32.totalorder 1, %s19
      %p269 = scmp.lt.s32.totalorder %s19, 3
      %p270 = pnand %p268, %p269
      %p271 = pneg %p270
      // Predicated region
      $region9: #{tpu_custom_call.1} parent=5 // pred_check
        _
      $region10: #{tpu_custom_call.1} parent=5 // pred_check_branch
        %273 = sbr.rel (%p270) target = $region12
      $region11: #{tpu_custom_call.1} parent=5 // pred_region
        %s274 = ssub.s32 %s19, 1
        // Predicated region
        $region13: #{tpu_custom_call.1} parent=11 // pred_check
          %p275 = pneg %p66
        $region14: #{tpu_custom_call.1} parent=11 // pred_check_branch
          %277 = sbr.rel (%p275) target = $region16
        $region15: #{tpu_custom_call.1} parent=11 // pred_region
          _
        $region16: #{tpu_custom_call.1} parent=11 // pred_fallthru
          _
        // Predicated region
        $region17: #{tpu_custom_call.1} parent=11 // pred_check
          %p278 = pneg %p87
        $region18: #{tpu_custom_call.1} parent=11 // pred_check_branch
          %280 = sbr.rel (%p278) target = $region20
        $region19: #{tpu_custom_call.1} parent=11 // pred_region
          _
        $region20: #{tpu_custom_call.1} parent=11 // pred_fallthru
          _
        // Predicated region
        $region21: #{tpu_custom_call.1} parent=11 // pred_check
          %p281 = pneg %p108
        $region22: #{tpu_custom_call.1} parent=11 // pred_check_branch
          %283 = sbr.rel (%p281) target = $region24
        $region23: #{tpu_custom_call.1} parent=11 // pred_region
          _
        $region24: #{tpu_custom_call.1} parent=11 // pred_fallthru
          _
        // Predicated region
        $region25: #{tpu_custom_call.1} parent=11 // pred_check
          %p284 = pneg %p129
        $region26: #{tpu_custom_call.1} parent=11 // pred_check_branch
          %286 = sbr.rel (%p284) target = $region28
        $region27: #{tpu_custom_call.1} parent=11 // pred_region
          _
        $region28: #{tpu_custom_call.1} parent=11 // pred_fallthru
          _
        // Predicated region
        $region29: #{tpu_custom_call.1} parent=11 // pred_check
          %p287 = pneg %p150
        $region30: #{tpu_custom_call.1} parent=11 // pred_check_branch
          %289 = sbr.rel (%p287) target = $region32
        $region31: #{tpu_custom_call.1} parent=11 // pred_region
          _
        $region32: #{tpu_custom_call.1} parent=11 // pred_fallthru
          _
        // Predicated region
        $region33: #{tpu_custom_call.1} parent=11 // pred_check
          %p290 = pneg %p171
        $region34: #{tpu_custom_call.1} parent=11 // pred_check_branch
          %292 = sbr.rel (%p290) target = $region36
        $region35: #{tpu_custom_call.1} parent=11 // pred_region
          _
        $region36: #{tpu_custom_call.1} parent=11 // pred_fallthru
          _
        // Predicated region
        $region37: #{tpu_custom_call.1} parent=11 // pred_check
          %p293 = pneg %p192
        $region38: #{tpu_custom_call.1} parent=11 // pred_check_branch
          %295 = sbr.rel (%p293) target = $region40
        $region39: #{tpu_custom_call.1} parent=11 // pred_region
          _
        $region40: #{tpu_custom_call.1} parent=11 // pred_fallthru
          _
        // Predicated region
        $region41: #{tpu_custom_call.1} parent=11 // pred_check
          %p296 = pneg %p213
        $region42: #{tpu_custom_call.1} parent=11 // pred_check_branch
          %298 = sbr.rel (%p296) target = $region44
        $region43: #{tpu_custom_call.1} parent=11 // pred_region
          _
        $region44: #{tpu_custom_call.1} parent=11 // pred_fallthru
          _
        // Predicated region
        $region45: #{tpu_custom_call.1} parent=11 // pred_check
          %p299 = pneg %p234
        $region46: #{tpu_custom_call.1} parent=11 // pred_check_branch
          %301 = sbr.rel (%p299) target = $region48
        $region47: #{tpu_custom_call.1} parent=11 // pred_region
          _
        $region48: #{tpu_custom_call.1} parent=11 // pred_fallthru
          _
      $region12: #{tpu_custom_call.1} parent=5 // pred_fallthru
        _
      %p302 = scmp.lt.s32.totalorder %s19, 2
      // Predicated region
      $region49: #{tpu_custom_call.1} parent=5 // pred_check
        %p303 = pneg %p302
      $region50: #{tpu_custom_call.1} parent=5 // pred_check_branch
        %305 = sbr.rel (%p303) target = $region52
      $region51: #{tpu_custom_call.1} parent=5 // pred_region
        // Predicated region
        $region53: #{tpu_custom_call.1} parent=51 // pred_check
          %p306 = pneg %p39
        $region54: #{tpu_custom_call.1} parent=51 // pred_check_branch
          %308 = sbr.rel (%p306) target = $region56
        $region55: #{tpu_custom_call.1} parent=51 // pred_region
          %s309 = smul.u32 2, %s19
          %p310 = scmp.lt.s32.totalorder %s309, 3
          %s311 = scalar_select %p310, %s309, 3
          %s312 = smul.addr %s311, 8
          %s313 = scalar_lea.vmem %s0, %s312
          %s314 = smul.u32 2, %s19
        $region56: #{tpu_custom_call.1} parent=51 // pred_fallthru
          _
      $region52: #{tpu_custom_call.1} parent=5 // pred_fallthru
        _
      %p315 = scmp.le.s32.totalorder 1, %s19
      %p316 = scmp.lt.s32.totalorder %s19, 3
      %p317 = pnand %p315, %p316
      %p318 = pneg %p317
      // Predicated region
      $region57: #{tpu_custom_call.1} parent=5 // pred_check
        _
      $region58: #{tpu_custom_call.1} parent=5 // pred_check_branch
        %320 = sbr.rel (%p317) target = $region60
      $region59: #{tpu_custom_call.1} parent=5 // pred_region
        %s321 = ssub.s32 %s19, 1
        %s322 = smul.u32 2, %s24
        %p323 = scmp.lt.s32.totalorder %s322, 3
        %s324 = scalar_select %p323, %s322, 3
        %s325 = smul.addr %s324, 8
        %s326 = scalar_lea.vmem %s0, %s325
        %p327 = pneg %p45
        %p328 = pneg %p42
        %p329 = pneg %p66
        %p330 = pneg %p63
        %p331 = pneg %p87
        %p332 = pneg %p84
        %p333 = pneg %p108
        %p334 = pneg %p105
        %p335 = pneg %p129
        %p336 = pneg %p126
        %p337 = pneg %p150
        %p338 = pneg %p147
        %p339 = pneg %p171
        %p340 = pneg %p168
        %p341 = pneg %p192
        %p342 = pneg %p189
        %p343 = pneg %p213
        %p344 = pneg %p210
        %p345 = pneg %p234
        %p346 = pneg %p231
        %p347 = pneg %p260
        %p348 = pneg %p257
        %s349 = sand.u32 %s247, 1
        %s350 = scalar_lea.sflag [#allocation3], %s349
        %s351 = sand.u32 %s247, 1
        %s352 = smul.addr %s351, 16
        %s353 = scalar_lea.vmem [#allocation2], %s352
        %s354 = smul.u32 2, %s24
        %p355 = scmp.lt.s32.totalorder %s354, 3
        %s356 = scalar_select %p355, %s354, 3
        %s357 = smul.addr %s356, 8
        %s358 = scalar_lea.vmem %s0, %s357
        %s359 = smul.u32 2, %s24
        %s360 = smul.u32 2, %s24
        %v362 = vld [vmem:[%s358] sm:$0xff]
        %v363 = vld [vmem:[%s358 + $0x8] sm:$0xff]
        %v364 = vld [vmem:[%s2] sm:$0x1]
        %v365 = vld [vmem:[%s3] sm:$0x1]
        %vm366 = vcmask 261120
        %v367 = vsel %vm366, %v362, 0.0
        %368 = vadd.xlane.f32.xlu0 %v367
        %v369 = vpop.xlane.xlu0 %368
        %v370 = vsel %vm366, %v363, 0.0
        %371 = vadd.xlane.f32.xlu0 %v370
        %v372 = vpop.xlane.xlu0 %371
        %v373 = vrcp.pop 32.0
        %v374 = vmul.f32 %v369, %v373
        %v375 = vmul.f32 %v372, %v373
        %v376 = vsub.f32 %v362, %v374
        %v377 = vsub.f32 %v363, %v375
        %v378 = vmul.f32 %v376, %v376
        %v379 = vmul.f32 %v377, %v377
        %v380 = vsel %vm366, %v378, 0.0
        %381 = vadd.xlane.f32.xlu0 %v380
        %v382 = vpop.xlane.xlu0 %381
        %v383 = vsel %vm366, %v379, 0.0
        %384 = vadd.xlane.f32.xlu0 %v383
        %v385 = vpop.xlane.xlu0 %384
        %v386 = vmul.f32 %v382, %v373
        %v387 = vmul.f32 %v385, %v373
        %v388 = vadd.f32 %v386, 1e-05
        %v389 = vadd.f32 %v387, 1e-05
        %v390 = vrsqrt.pop %v388
        %v391 = vrsqrt.pop %v389
        %v392 = vmul.f32 %v376, %v390
        %v393 = vmul.f32 %v377, %v391
        %v395 = vlaneseq
        %v396 = vshrl.u32 %v395, 7
        %v397 = vsub.s32 0, %v396
        %v398 = vrot.slane %v364, %v397
        %v400 = vmul.f32 %v392, %v398
        %v401 = vmul.f32 %v393, %v398
        %v403 = vlaneseq
        %v404 = vshrl.u32 %v403, 7
        %v405 = vsub.s32 0, %v404
        %v406 = vrot.slane %v365, %v405
        %v408 = vadd.f32 %v400, %v406
        %v409 = vadd.f32 %v401, %v406
        %v410 = vpack.c.bf16 %v409, %v408
        %v411 = vld [vmem:[%s1] sm:$0xff]
        %v412 = vld [vmem:[%s1 + $0x8] sm:$0xff]
        %v413 = vld [vmem:[%s1 + $0x10] sm:$0xff]
        %v414 = vld [vmem:[%s1 + $0x18] sm:$0xff]
        %v419 = vunpack.c.l.b16 %v411
        %v420 = vunpack.c.h.b16 %v411
        %v421 = vunpack.c.l.b16 %v412
        %v422 = vunpack.c.h.b16 %v412
        %v423 = vunpack.c.l.b16 %v413
        %v424 = vunpack.c.h.b16 %v413
        %v425 = vunpack.c.l.b16 %v414
        %v426 = vunpack.c.h.b16 %v414
        %v427 = vpack.c.b16 %v421, %v419
        %v428 = vpack.c.b16 %v422, %v420
        %v429 = vpack.c.b16 %v425, %v423
        %v430 = vpack.c.b16 %v426, %v424
        %v436 = vsel %vm366, %v410, 0
        %438 = vmatprep.subr.bf16.mxu0 %v428
        %439 = vmatpush1.bf16.msra.mxu0 %v427
        %440 = vmatprep.subr.bf16.mxu0 %v430
        %441 = vmatpush1.bf16.msra.mxu0 %v429
        %442 = vmatprep.subr.bf16.mxu0 0
        %443 = vmatpush1.bf16.msra.mxu0 0
        %444 = vmatprep.subr.bf16.mxu0 0
        %445 = vmatpush1.bf16.msra.mxu0 0
        %446 = vmatprep.subr.bf16.mxu0 0
        %447 = vmatpush1.bf16.msra.mxu0 0
        %448 = vmatprep.subr.bf16.mxu0 0
        %449 = vmatpush1.bf16.msra.mxu0 0
        %450 = vmatprep.subr.bf16.mxu0 0
        %451 = vmatpush1.bf16.msra.mxu0 0
        %452 = vmatprep.subr.bf16.mxu0 0
        %453 = vmatpush1.bf16.msra.mxu0 0
        %454 = vmatprep.subr.bf16.mxu0 0
        %455 = vmatpush1.bf16.msra.mxu0 0
        %456 = vmatprep.subr.bf16.mxu0 0
        %457 = vmatpush1.bf16.msra.mxu0 0
        %458 = vmatprep.subr.bf16.mxu0 0
        %459 = vmatpush1.bf16.msra.mxu0 0
        %460 = vmatprep.subr.bf16.mxu0 0
        %461 = vmatpush1.bf16.msra.mxu0 0
        %462 = vmatprep.subr.bf16.mxu0 0
        %463 = vmatpush1.bf16.msra.mxu0 0
        %464 = vmatprep.subr.bf16.mxu0 0
        %465 = vmatpush1.bf16.msra.mxu0 0
        %466 = vmatprep.subr.bf16.mxu0 0
        %467 = vmatpush1.bf16.msra.mxu0 0
        %468 = vmatprep.subr.bf16.mxu0 0
        %469 = vmatpush1.bf16.msra.mxu0 0
        %470 = vmatprep.mubr.bf16.mxu0 0
        %471 = vmatmul.mubr.bf16.gmra.mrb[0].mxu0 %v436
        %v472 = vpop.f32.mrb[0].mxu0
        %v473 = vadd.f32 0.0, %v472
        %v474 = vpop.f32.mrb[0].mxu0
        %v475 = vadd.f32 0.0, %v474
        %v476 = vpop.f32.mrb[0].mxu0
        %v477 = vadd.f32 0.0, %v476
        %v478 = vpop.f32.mrb[0].mxu0
        %v479 = vadd.f32 0.0, %v478
        %480 = vdwg.mxu0
        %483 = vrot.lane.b32.xlu0 %v473, 96
        %v484 = vpop.permute.xlu0 %483
        %485 = vrot.lane.b32.xlu0 %v477, 96
        %v486 = vpop.permute.xlu0 %485
        %489 = vrot.lane.b32.xlu0 %v473, 64
        %v490 = vpop.permute.xlu0 %489
        %491 = vrot.lane.b32.xlu0 %v477, 64
        %v492 = vpop.permute.xlu0 %491
        %495 = vrot.lane.b32.xlu0 %v473, 32
        %v496 = vpop.permute.xlu0 %495
        %497 = vrot.lane.b32.xlu0 %v477, 32
        %v498 = vpop.permute.xlu0 %497
        %503 = vrot.lane.b32.xlu0 %v475, 96
        %v504 = vpop.permute.xlu0 %503
        %505 = vrot.lane.b32.xlu0 %v479, 96
        %v506 = vpop.permute.xlu0 %505
        %v509 = vcombine.low %v473, %v490
        %v510 = vcombine.high %v473, %v490
        %v512 = vunpack.c.l.s4 1983009808
        %v513 = vunpack.c.0.s8 %v512
        %v514 = vlaneseq
        %v515 = vshrl.u32 %v514, 7
        %v516 = vsub.s32 %v513, %v515
        %v517 = vrot.slane %v509, %v516
        %v519 = vunpack.c.l.s4 1983009808
        %v520 = vunpack.c.0.s8 %v519
        %v521 = vlaneseq
        %v522 = vshrl.u32 %v521, 7
        %v523 = vsub.s32 %v520, %v522
        %v524 = vrot.slane %v510, %v523
        %v525 = vcombine.low %v484, %v496
        %v526 = vcombine.high %v484, %v496
        %v528 = vunpack.c.l.s4 1983009808
        %v529 = vunpack.c.0.s8 %v528
        %v530 = vlaneseq
        %v531 = vshrl.u32 %v530, 7
        %v532 = vsub.s32 %v529, %v531
        %v533 = vrot.slane %v525, %v532
        %v535 = vunpack.c.l.s4 1983009808
        %v536 = vunpack.c.0.s8 %v535
        %v537 = vlaneseq
        %v538 = vshrl.u32 %v537, 7
        %v539 = vsub.s32 %v536, %v538
        %v540 = vrot.slane %v526, %v539
        %v541 = vcombine.high %v475, 0.0
        %v543 = vunpack.c.l.s4 1983009808
        %v544 = vunpack.c.0.s8 %v543
        %v545 = vlaneseq
        %v546 = vshrl.u32 %v545, 7
        %v547 = vsub.s32 %v544, %v546
        %v548 = vrot.slane %v475, %v547
        %v550 = vunpack.c.l.s4 1983009808
        %v551 = vunpack.c.0.s8 %v550
        %v552 = vlaneseq
        %v553 = vshrl.u32 %v552, 7
        %v554 = vsub.s32 %v551, %v553
        %v555 = vrot.slane %v541, %v554
        %v556 = vcombine.high %v504, 0.0
        %v558 = vunpack.c.l.s4 1983009808
        %v559 = vunpack.c.0.s8 %v558
        %v560 = vlaneseq
        %v561 = vshrl.u32 %v560, 7
        %v562 = vsub.s32 %v559, %v561
        %v563 = vrot.slane %v504, %v562
        %v565 = vunpack.c.l.s4 1983009808
        %v566 = vunpack.c.0.s8 %v565
        %v567 = vlaneseq
        %v568 = vshrl.u32 %v567, 7
        %v569 = vsub.s32 %v566, %v568
        %v570 = vrot.slane %v556, %v569
        %v571 = vcombine.low %v517, %v533
        %v572 = vcombine.high %v517, %v533
        %v574 = vunpack.c.l.s4 1934713408
        %v575 = vunpack.c.0.s8 %v574
        %v576 = vlaneseq
        %v577 = vshrl.u32 %v576, 7
        %v578 = vsub.s32 %v575, %v577
        %v579 = vrot.slane %v571, %v578
        %v581 = vunpack.c.l.s4 1934713408
        %v582 = vunpack.c.0.s8 %v581
        %v583 = vlaneseq
        %v584 = vshrl.u32 %v583, 7
        %v585 = vsub.s32 %v582, %v584
        %v586 = vrot.slane %v572, %v585
        %v587 = vcombine.low %v524, %v540
        %v588 = vcombine.high %v524, %v540
        %v590 = vunpack.c.l.s4 1934713408
        %v591 = vunpack.c.0.s8 %v590
        %v592 = vlaneseq
        %v593 = vshrl.u32 %v592, 7
        %v594 = vsub.s32 %v591, %v593
        %v595 = vrot.slane %v587, %v594
        %v597 = vunpack.c.l.s4 1934713408
        %v598 = vunpack.c.0.s8 %v597
        %v599 = vlaneseq
        %v600 = vshrl.u32 %v599, 7
        %v601 = vsub.s32 %v598, %v600
        %v602 = vrot.slane %v588, %v601
        %v603 = vcombine.low %v548, %v563
        %v604 = vcombine.high %v548, %v563
        %v606 = vunpack.c.l.s4 1934713408
        %v607 = vunpack.c.0.s8 %v606
        %v608 = vlaneseq
        %v609 = vshrl.u32 %v608, 7
        %v610 = vsub.s32 %v607, %v609
        %v611 = vrot.slane %v603, %v610
        %v613 = vunpack.c.l.s4 1934713408
        %v614 = vunpack.c.0.s8 %v613
        %v615 = vlaneseq
        %v616 = vshrl.u32 %v615, 7
        %v617 = vsub.s32 %v614, %v616
        %v618 = vrot.slane %v604, %v617
        %v619 = vcombine.low %v555, %v570
        %v620 = vcombine.high %v555, %v570
        %v622 = vunpack.c.l.s4 1934713408
        %v623 = vunpack.c.0.s8 %v622
        %v624 = vlaneseq
        %v625 = vshrl.u32 %v624, 7
        %v626 = vsub.s32 %v623, %v625
        %v627 = vrot.slane %v619, %v626
        %v629 = vunpack.c.l.s4 1934713408
        %v630 = vunpack.c.0.s8 %v629
        %v631 = vlaneseq
        %v632 = vshrl.u32 %v631, 7
        %v633 = vsub.s32 %v630, %v632
        %v634 = vrot.slane %v620, %v633
        %v635 = vcombine.low %v579, %v611
        %v636 = vcombine.high %v579, %v611
        %v637 = vcombine.low %v586, %v618
        %v638 = vcombine.high %v586, %v618
        %v639 = vcombine.low %v595, %v627
        %v640 = vcombine.high %v595, %v627
        %v641 = vcombine.low %v602, %v634
        %v642 = vcombine.high %v602, %v634
        %v643 = vcombine.low %v477, %v492
        %v644 = vcombine.high %v477, %v492
        %v646 = vunpack.c.l.s4 1983009808
        %v647 = vunpack.c.0.s8 %v646
        %v648 = vlaneseq
        %v649 = vshrl.u32 %v648, 7
        %v650 = vsub.s32 %v647, %v649
        %v651 = vrot.slane %v643, %v650
        %v653 = vunpack.c.l.s4 1983009808
        %v654 = vunpack.c.0.s8 %v653
        %v655 = vlaneseq
        %v656 = vshrl.u32 %v655, 7
        %v657 = vsub.s32 %v654, %v656
        %v658 = vrot.slane %v644, %v657
        %v659 = vcombine.low %v486, %v498
        %v660 = vcombine.high %v486, %v498
        %v662 = vunpack.c.l.s4 1983009808
        %v663 = vunpack.c.0.s8 %v662
        %v664 = vlaneseq
        %v665 = vshrl.u32 %v664, 7
        %v666 = vsub.s32 %v663, %v665
        %v667 = vrot.slane %v659, %v666
        %v669 = vunpack.c.l.s4 1983009808
        %v670 = vunpack.c.0.s8 %v669
        %v671 = vlaneseq
        %v672 = vshrl.u32 %v671, 7
        %v673 = vsub.s32 %v670, %v672
        %v674 = vrot.slane %v660, %v673
        %v675 = vcombine.high %v479, 0.0
        %v677 = vunpack.c.l.s4 1983009808
        %v678 = vunpack.c.0.s8 %v677
        %v679 = vlaneseq
        %v680 = vshrl.u32 %v679, 7
        %v681 = vsub.s32 %v678, %v680
        %v682 = vrot.slane %v479, %v681
        %v684 = vunpack.c.l.s4 1983009808
        %v685 = vunpack.c.0.s8 %v684
        %v686 = vlaneseq
        %v687 = vshrl.u32 %v686, 7
        %v688 = vsub.s32 %v685, %v687
        %v689 = vrot.slane %v675, %v688
        %v690 = vcombine.high %v506, 0.0
        %v692 = vunpack.c.l.s4 1983009808
        %v693 = vunpack.c.0.s8 %v692
        %v694 = vlaneseq
        %v695 = vshrl.u32 %v694, 7
        %v696 = vsub.s32 %v693, %v695
        %v697 = vrot.slane %v506, %v696
        %v699 = vunpack.c.l.s4 1983009808
        %v700 = vunpack.c.0.s8 %v699
        %v701 = vlaneseq
        %v702 = vshrl.u32 %v701, 7
        %v703 = vsub.s32 %v700, %v702
        %v704 = vrot.slane %v690, %v703
        %v705 = vcombine.low %v651, %v667
        %v706 = vcombine.high %v651, %v667
        %v708 = vunpack.c.l.s4 1934713408
        %v709 = vunpack.c.0.s8 %v708
        %v710 = vlaneseq
        %v711 = vshrl.u32 %v710, 7
        %v712 = vsub.s32 %v709, %v711
        %v713 = vrot.slane %v705, %v712
        %v715 = vunpack.c.l.s4 1934713408
        %v716 = vunpack.c.0.s8 %v715
        %v717 = vlaneseq
        %v718 = vshrl.u32 %v717, 7
        %v719 = vsub.s32 %v716, %v718
        %v720 = vrot.slane %v706, %v719
        %v721 = vcombine.low %v658, %v674
        %v722 = vcombine.high %v658, %v674
        %v724 = vunpack.c.l.s4 1934713408
        %v725 = vunpack.c.0.s8 %v724
        %v726 = vlaneseq
        %v727 = vshrl.u32 %v726, 7
        %v728 = vsub.s32 %v725, %v727
        %v729 = vrot.slane %v721, %v728
        %v731 = vunpack.c.l.s4 1934713408
        %v732 = vunpack.c.0.s8 %v731
        %v733 = vlaneseq
        %v734 = vshrl.u32 %v733, 7
        %v735 = vsub.s32 %v732, %v734
        %v736 = vrot.slane %v722, %v735
        %v737 = vcombine.low %v682, %v697
        %v738 = vcombine.high %v682, %v697
        %v740 = vunpack.c.l.s4 1934713408
        %v741 = vunpack.c.0.s8 %v740
        %v742 = vlaneseq
        %v743 = vshrl.u32 %v742, 7
        %v744 = vsub.s32 %v741, %v743
        %v745 = vrot.slane %v737, %v744
        %v747 = vunpack.c.l.s4 1934713408
        %v748 = vunpack.c.0.s8 %v747
        %v749 = vlaneseq
        %v750 = vshrl.u32 %v749, 7
        %v751 = vsub.s32 %v748, %v750
        %v752 = vrot.slane %v738, %v751
        %v753 = vcombine.low %v689, %v704
        %v754 = vcombine.high %v689, %v704
        %v756 = vunpack.c.l.s4 1934713408
        %v757 = vunpack.c.0.s8 %v756
        %v758 = vlaneseq
        %v759 = vshrl.u32 %v758, 7
        %v760 = vsub.s32 %v757, %v759
        %v761 = vrot.slane %v753, %v760
        %v763 = vunpack.c.l.s4 1934713408
        %v764 = vunpack.c.0.s8 %v763
        %v765 = vlaneseq
        %v766 = vshrl.u32 %v765, 7
        %v767 = vsub.s32 %v764, %v766
        %v768 = vrot.slane %v754, %v767
        %v769 = vcombine.low %v713, %v745
        %v770 = vcombine.high %v713, %v745
        %v771 = vcombine.low %v720, %v752
        %v772 = vcombine.high %v720, %v752
        %v773 = vcombine.low %v729, %v761
        %v774 = vcombine.high %v729, %v761
        %v775 = vcombine.low %v736, %v768
        %v776 = vcombine.high %v736, %v768
        %v777 = vcombine.low %v635, %v637
        %v778 = vcombine.high %v635, %v637
        %v780 = vunpack.c.l.s4 1983009808
        %v781 = vunpack.c.0.s8 %v780
        %v782 = vlaneseq
        %v783 = vshrl.u32 %v782, 7
        %v784 = vsub.s32 %v781, %v783
        %v785 = vrot.slane %v777, %v784
        %v787 = vunpack.c.l.s4 1983009808
        %v788 = vunpack.c.0.s8 %v787
        %v789 = vlaneseq
        %v790 = vshrl.u32 %v789, 7
        %v791 = vsub.s32 %v788, %v790
        %v792 = vrot.slane %v778, %v791
        %v793 = vcombine.low %v636, %v638
        %v794 = vcombine.high %v636, %v638
        %v796 = vunpack.c.l.s4 1983009808
        %v797 = vunpack.c.0.s8 %v796
        %v798 = vlaneseq
        %v799 = vshrl.u32 %v798, 7
        %v800 = vsub.s32 %v797, %v799
        %v801 = vrot.slane %v793, %v800
        %v803 = vunpack.c.l.s4 1983009808
        %v804 = vunpack.c.0.s8 %v803
        %v805 = vlaneseq
        %v806 = vshrl.u32 %v805, 7
        %v807 = vsub.s32 %v804, %v806
        %v808 = vrot.slane %v794, %v807
        %v809 = vcombine.low %v639, %v641
        %v810 = vcombine.high %v639, %v641
        %v812 = vunpack.c.l.s4 1983009808
        %v813 = vunpack.c.0.s8 %v812
        %v814 = vlaneseq
        %v815 = vshrl.u32 %v814, 7
        %v816 = vsub.s32 %v813, %v815
        %v817 = vrot.slane %v809, %v816
        %v819 = vunpack.c.l.s4 1983009808
        %v820 = vunpack.c.0.s8 %v819
        %v821 = vlaneseq
        %v822 = vshrl.u32 %v821, 7
        %v823 = vsub.s32 %v820, %v822
        %v824 = vrot.slane %v810, %v823
        %v825 = vcombine.low %v640, %v642
        %v826 = vcombine.high %v640, %v642
        %v828 = vunpack.c.l.s4 1983009808
        %v829 = vunpack.c.0.s8 %v828
        %v830 = vlaneseq
        %v831 = vshrl.u32 %v830, 7
        %v832 = vsub.s32 %v829, %v831
        %v833 = vrot.slane %v825, %v832
        %v835 = vunpack.c.l.s4 1983009808
        %v836 = vunpack.c.0.s8 %v835
        %v837 = vlaneseq
        %v838 = vshrl.u32 %v837, 7
        %v839 = vsub.s32 %v836, %v838
        %v840 = vrot.slane %v826, %v839
        %v841 = vcombine.low %v785, %v801
        %v842 = vcombine.high %v785, %v801
        %v844 = vunpack.c.l.s4 1934713408
        %v845 = vunpack.c.0.s8 %v844
        %v846 = vlaneseq
        %v847 = vshrl.u32 %v846, 7
        %v848 = vsub.s32 %v845, %v847
        %v849 = vrot.slane %v841, %v848
        %v851 = vunpack.c.l.s4 1934713408
        %v852 = vunpack.c.0.s8 %v851
        %v853 = vlaneseq
        %v854 = vshrl.u32 %v853, 7
        %v855 = vsub.s32 %v852, %v854
        %v856 = vrot.slane %v842, %v855
        %v857 = vcombine.low %v792, %v808
        %v859 = vunpack.c.l.s4 1934713408
        %v860 = vunpack.c.0.s8 %v859
        %v861 = vlaneseq
        %v862 = vshrl.u32 %v861, 7
        %v863 = vsub.s32 %v860, %v862
        %v864 = vrot.slane %v857, %v863
        %v865 = vcombine.low %v817, %v833
        %v866 = vcombine.high %v817, %v833
        %v868 = vunpack.c.l.s4 1934713408
        %v869 = vunpack.c.0.s8 %v868
        %v870 = vlaneseq
        %v871 = vshrl.u32 %v870, 7
        %v872 = vsub.s32 %v869, %v871
        %v873 = vrot.slane %v865, %v872
        %v875 = vunpack.c.l.s4 1934713408
        %v876 = vunpack.c.0.s8 %v875
        %v877 = vlaneseq
        %v878 = vshrl.u32 %v877, 7
        %v879 = vsub.s32 %v876, %v878
        %v880 = vrot.slane %v866, %v879
        %v881 = vcombine.low %v824, %v840
        %v883 = vunpack.c.l.s4 1934713408
        %v884 = vunpack.c.0.s8 %v883
        %v885 = vlaneseq
        %v886 = vshrl.u32 %v885, 7
        %v887 = vsub.s32 %v884, %v886
        %v888 = vrot.slane %v881, %v887
        %v889 = vcombine.low %v849, %v873
        %v890 = vcombine.high %v849, %v873
        %v891 = vcombine.low %v856, %v880
        %v892 = vcombine.high %v856, %v880
        %v893 = vcombine.low %v864, %v888
        %v894 = vcombine.high %v864, %v888
        %v895 = vcombine.low %v769, %v771
        %v896 = vcombine.high %v769, %v771
        %v898 = vunpack.c.l.s4 1983009808
        %v899 = vunpack.c.0.s8 %v898
        %v900 = vlaneseq
        %v901 = vshrl.u32 %v900, 7
        %v902 = vsub.s32 %v899, %v901
        %v903 = vrot.slane %v895, %v902
        %v905 = vunpack.c.l.s4 1983009808
        %v906 = vunpack.c.0.s8 %v905
        %v907 = vlaneseq
        %v908 = vshrl.u32 %v907, 7
        %v909 = vsub.s32 %v906, %v908
        %v910 = vrot.slane %v896, %v909
        %v911 = vcombine.low %v770, %v772
        %v912 = vcombine.high %v770, %v772
        %v914 = vunpack.c.l.s4 1983009808
        %v915 = vunpack.c.0.s8 %v914
        %v916 = vlaneseq
        %v917 = vshrl.u32 %v916, 7
        %v918 = vsub.s32 %v915, %v917
        %v919 = vrot.slane %v911, %v918
        %v921 = vunpack.c.l.s4 1983009808
        %v922 = vunpack.c.0.s8 %v921
        %v923 = vlaneseq
        %v924 = vshrl.u32 %v923, 7
        %v925 = vsub.s32 %v922, %v924
        %v926 = vrot.slane %v912, %v925
        %v927 = vcombine.low %v773, %v775
        %v928 = vcombine.high %v773, %v775
        %v930 = vunpack.c.l.s4 1983009808
        %v931 = vunpack.c.0.s8 %v930
        %v932 = vlaneseq
        %v933 = vshrl.u32 %v932, 7
        %v934 = vsub.s32 %v931, %v933
        %v935 = vrot.slane %v927, %v934
        %v937 = vunpack.c.l.s4 1983009808
        %v938 = vunpack.c.0.s8 %v937
        %v939 = vlaneseq
        %v940 = vshrl.u32 %v939, 7
        %v941 = vsub.s32 %v938, %v940
        %v942 = vrot.slane %v928, %v941
        %v943 = vcombine.low %v774, %v776
        %v944 = vcombine.high %v774, %v776
        %v946 = vunpack.c.l.s4 1983009808
        %v947 = vunpack.c.0.s8 %v946
        %v948 = vlaneseq
        %v949 = vshrl.u32 %v948, 7
        %v950 = vsub.s32 %v947, %v949
        %v951 = vrot.slane %v943, %v950
        %v953 = vunpack.c.l.s4 1983009808
        %v954 = vunpack.c.0.s8 %v953
        %v955 = vlaneseq
        %v956 = vshrl.u32 %v955, 7
        %v957 = vsub.s32 %v954, %v956
        %v958 = vrot.slane %v944, %v957
        %v959 = vcombine.low %v903, %v919
        %v960 = vcombine.high %v903, %v919
        %v962 = vunpack.c.l.s4 1934713408
        %v963 = vunpack.c.0.s8 %v962
        %v964 = vlaneseq
        %v965 = vshrl.u32 %v964, 7
        %v966 = vsub.s32 %v963, %v965
        %v967 = vrot.slane %v959, %v966
        %v969 = vunpack.c.l.s4 1934713408
        %v970 = vunpack.c.0.s8 %v969
        %v971 = vlaneseq
        %v972 = vshrl.u32 %v971, 7
        %v973 = vsub.s32 %v970, %v972
        %v974 = vrot.slane %v960, %v973
        %v975 = vcombine.low %v910, %v926
        %v977 = vunpack.c.l.s4 1934713408
        %v978 = vunpack.c.0.s8 %v977
        %v979 = vlaneseq
        %v980 = vshrl.u32 %v979, 7
        %v981 = vsub.s32 %v978, %v980
        %v982 = vrot.slane %v975, %v981
        %v983 = vcombine.low %v935, %v951
        %v984 = vcombine.high %v935, %v951
        %v986 = vunpack.c.l.s4 1934713408
        %v987 = vunpack.c.0.s8 %v986
        %v988 = vlaneseq
        %v989 = vshrl.u32 %v988, 7
        %v990 = vsub.s32 %v987, %v989
        %v991 = vrot.slane %v983, %v990
        %v993 = vunpack.c.l.s4 1934713408
        %v994 = vunpack.c.0.s8 %v993
        %v995 = vlaneseq
        %v996 = vshrl.u32 %v995, 7
        %v997 = vsub.s32 %v994, %v996
        %v998 = vrot.slane %v984, %v997
        %v999 = vcombine.low %v942, %v958
        %v1001 = vunpack.c.l.s4 1934713408
        %v1002 = vunpack.c.0.s8 %v1001
        %v1003 = vlaneseq
        %v1004 = vshrl.u32 %v1003, 7
        %v1005 = vsub.s32 %v1002, %v1004
        %v1006 = vrot.slane %v999, %v1005
        %v1007 = vcombine.low %v967, %v991
        %v1008 = vcombine.high %v967, %v991
        %v1009 = vcombine.low %v974, %v998
        %v1010 = vcombine.high %v974, %v998
        %v1011 = vcombine.low %v982, %v1006
        %v1012 = vcombine.high %v982, %v1006
        %v1013 = vpack.c.bf16 %v1007, %v889
        %v1014 = vpack.c.bf16 %v1008, %v890
        %v1015 = vpack.c.bf16 %v1009, %v891
        %v1016 = vpack.c.bf16 %v1010, %v892
        %v1017 = vpack.c.bf16 %v1011, %v893
        %v1018 = vpack.c.bf16 %v1012, %v894
        %v1021 = vunpack.c.l.b16 %v1013
        %v1022 = vunpack.c.h.b16 %v1013
        %v1023 = vunpack.c.l.b16 %v1014
        %v1024 = vunpack.c.h.b16 %v1014
        %v1025 = vpack.c.b16 %v1021, %v1021
        %v1026 = vpack.c.b16 %v1022, %v1022
        %v1027 = vpack.c.b16 %v1023, %v1023
        %v1028 = vpack.c.b16 %v1024, %v1024
        %v1031 = vunpack.c.l.b16 %v1015
        %v1032 = vunpack.c.h.b16 %v1015
        %v1033 = vunpack.c.l.b16 %v1016
        %v1034 = vunpack.c.h.b16 %v1016
        %v1035 = vpack.c.b16 %v1031, %v1031
        %v1036 = vpack.c.b16 %v1032, %v1032
        %v1037 = vpack.c.b16 %v1033, %v1033
        %v1038 = vpack.c.b16 %v1034, %v1034
        %v1041 = vunpack.c.l.b16 %v1017
        %v1042 = vunpack.c.h.b16 %v1017
        %v1043 = vunpack.c.l.b16 %v1018
        %v1044 = vunpack.c.h.b16 %v1018
        %v1045 = vpack.c.b16 %v1041, %v1041
        %v1046 = vpack.c.b16 %v1042, %v1042
        %v1047 = vpack.c.b16 %v1043, %v1043
        %v1048 = vpack.c.b16 %v1044, %v1044
        %v1049 = vlaneseq
        %v1050 = vshrl.u32 %v1049, 7
        %v1051 = vlaneseq
        %v1052 = vand.u32 %v1051, 127
        %vm1053 = vcmp.ge.s32.totalorder %v1050, %v1052
        %v1054 = vsel %vm1053, 0.0, -1e+30
        %v1056 = vsel %vm366, %v1025, 0
        %v1059 = vsel %vm366, %v1035, 0
        %1061 = vmatprep.subr.bf16.mxu0 0
        %1062 = vmatpush1.bf16.xpose.msra.mxu0 %v1059
        %1063 = vmatprep.subr.bf16.mxu0 0
        %1064 = vmatpush1.bf16.xpose.msra.mxu0 0
        %1065 = vmatprep.subr.bf16.mxu0 0
        %1066 = vmatpush1.bf16.xpose.msra.mxu0 0
        %1067 = vmatprep.subr.bf16.mxu0 0
        %1068 = vmatpush1.bf16.xpose.msra.mxu0 0
        %1069 = vmatprep.subr.bf16.mxu0 0
        %1070 = vmatpush1.bf16.xpose.msra.mxu0 0
        %1071 = vmatprep.subr.bf16.mxu0 0
        %1072 = vmatpush1.bf16.xpose.msra.mxu0 0
        %1073 = vmatprep.subr.bf16.mxu0 0
        %1074 = vmatpush1.bf16.xpose.msra.mxu0 0
        %1075 = vmatprep.subr.bf16.mxu0 0
        %1076 = vmatpush1.bf16.xpose.msra.mxu0 0
        %1077 = vmatprep.subr.bf16.mxu0 0
        %1078 = vmatpush1.bf16.xpose.msra.mxu0 0
        %1079 = vmatprep.subr.bf16.mxu0 0
        %1080 = vmatpush1.bf16.xpose.msra.mxu0 0
        %1081 = vmatprep.subr.bf16.mxu0 0
        %1082 = vmatpush1.bf16.xpose.msra.mxu0 0
        %1083 = vmatprep.subr.bf16.mxu0 0
        %1084 = vmatpush1.bf16.xpose.msra.mxu0 0
        %1085 = vmatprep.subr.bf16.mxu0 0
        %1086 = vmatpush1.bf16.xpose.msra.mxu0 0
        %1087 = vmatprep.subr.bf16.mxu0 0
        %1088 = vmatpush1.bf16.xpose.msra.mxu0 0
        %1089 = vmatprep.subr.bf16.mxu0 0
        %1090 = vmatpush1.bf16.xpose.msra.mxu0 0
        %1091 = vmatprep.subr.bf16.mxu0 0
        %1092 = vmatpush1.bf16.xpose.msra.mxu0 0
        %1093 = vmatprep.mubr.bf16.mxu0 0
        %1094 = vmatmul.mubr.bf16.gmra.mrb[0].mxu0 %v1056
        %v1095 = vpop.f32.mrb[0].mxu0
        %v1096 = vadd.f32 %v1054, %v1095
        %v1097 = vpop.f32.mrb[0].mxu0
        %v1098 = vpop.f32.mrb[0].mxu0
        %v1099 = vpop.f32.mrb[0].mxu0
        %1100 = vdwg.mxu0
        %v1102 = vsel %vm366, %v1026, 0
        %v1105 = vsel %vm366, %v1036, 0
        %1107 = vmatprep.subr.bf16.mxu0 0
        %1108 = vmatpush1.bf16.xpose.msra.mxu0 %v1105
        %1109 = vmatprep.subr.bf16.mxu0 0
        %1110 = vmatpush1.bf16.xpose.msra.mxu0 0
        %1111 = vmatprep.subr.bf16.mxu0 0
        %1112 = vmatpush1.bf16.xpose.msra.mxu0 0
        %1113 = vmatprep.subr.bf16.mxu0 0
        %1114 = vmatpush1.bf16.xpose.msra.mxu0 0
        %1115 = vmatprep.subr.bf16.mxu0 0
        %1116 = vmatpush1.bf16.xpose.msra.mxu0 0
        %1117 = vmatprep.subr.bf16.mxu0 0
        %1118 = vmatpush1.bf16.xpose.msra.mxu0 0
        %1119 = vmatprep.subr.bf16.mxu0 0
        %1120 = vmatpush1.bf16.xpose.msra.mxu0 0
        %1121 = vmatprep.subr.bf16.mxu0 0
        %1122 = vmatpush1.bf16.xpose.msra.mxu0 0
        %1123 = vmatprep.subr.bf16.mxu0 0
        %1124 = vmatpush1.bf16.xpose.msra.mxu0 0
        %1125 = vmatprep.subr.bf16.mxu0 0
        %1126 = vmatpush1.bf16.xpose.msra.mxu0 0
        %1127 = vmatprep.subr.bf16.mxu0 0
        %1128 = vmatpush1.bf16.xpose.msra.mxu0 0
        %1129 = vmatprep.subr.bf16.mxu0 0
        %1130 = vmatpush1.bf16.xpose.msra.mxu0 0
        %1131 = vmatprep.subr.bf16.mxu0 0
        %1132 = vmatpush1.bf16.xpose.msra.mxu0 0
        %1133 = vmatprep.subr.bf16.mxu0 0
        %1134 = vmatpush1.bf16.xpose.msra.mxu0 0
        %1135 = vmatprep.subr.bf16.mxu0 0
        %1136 = vmatpush1.bf16.xpose.msra.mxu0 0
        %1137 = vmatprep.subr.bf16.mxu0 0
        %1138 = vmatpush1.bf16.xpose.msra.mxu0 0
        %1139 = vmatprep.mubr.bf16.mxu0 0
        %1140 = vmatmul.mubr.bf16.gmra.mrb[0].mxu0 %v1102
        %v1141 = vpop.f32.mrb[0].mxu0
        %v1142 = vadd.f32 %v1054, %v1141
        %v1143 = vpop.f32.mrb[0].mxu0
        %v1144 = vpop.f32.mrb[0].mxu0
        %v1145 = vpop.f32.mrb[0].mxu0
        %1146 = vdwg.mxu0
        %v1148 = vsel %vm366, %v1027, 0
        %v1151 = vsel %vm366, %v1037, 0
        %1153 = vmatprep.subr.bf16.mxu0 0
        %1154 = vmatpush1.bf16.xpose.msra.mxu0 %v1151
        %1155 = vmatprep.subr.bf16.mxu0 0
        %1156 = vmatpush1.bf16.xpose.msra.mxu0 0
        %1157 = vmatprep.subr.bf16.mxu0 0
        %1158 = vmatpush1.bf16.xpose.msra.mxu0 0
        %1159 = vmatprep.subr.bf16.mxu0 0
        %1160 = vmatpush1.bf16.xpose.msra.mxu0 0
        %1161 = vmatprep.subr.bf16.mxu0 0
        %1162 = vmatpush1.bf16.xpose.msra.mxu0 0
        %1163 = vmatprep.subr.bf16.mxu0 0
        %1164 = vmatpush1.bf16.xpose.msra.mxu0 0
        %1165 = vmatprep.subr.bf16.mxu0 0
        %1166 = vmatpush1.bf16.xpose.msra.mxu0 0
        %1167 = vmatprep.subr.bf16.mxu0 0
        %1168 = vmatpush1.bf16.xpose.msra.mxu0 0
        %1169 = vmatprep.subr.bf16.mxu0 0
        %1170 = vmatpush1.bf16.xpose.msra.mxu0 0
        %1171 = vmatprep.subr.bf16.mxu0 0
        %1172 = vmatpush1.bf16.xpose.msra.mxu0 0
        %1173 = vmatprep.subr.bf16.mxu0 0
        %1174 = vmatpush1.bf16.xpose.msra.mxu0 0
        %1175 = vmatprep.subr.bf16.mxu0 0
        %1176 = vmatpush1.bf16.xpose.msra.mxu0 0
        %1177 = vmatprep.subr.bf16.mxu0 0
        %1178 = vmatpush1.bf16.xpose.msra.mxu0 0
        %1179 = vmatprep.subr.bf16.mxu0 0
        %1180 = vmatpush1.bf16.xpose.msra.mxu0 0
        %1181 = vmatprep.subr.bf16.mxu0 0
        %1182 = vmatpush1.bf16.xpose.msra.mxu0 0
        %1183 = vmatprep.subr.bf16.mxu0 0
        %1184 = vmatpush1.bf16.xpose.msra.mxu0 0
        %1185 = vmatprep.mubr.bf16.mxu0 0
        %1186 = vmatmul.mubr.bf16.gmra.mrb[0].mxu0 %v1148
        %v1187 = vpop.f32.mrb[0].mxu0
        %v1188 = vadd.f32 %v1054, %v1187
        %v1189 = vpop.f32.mrb[0].mxu0
        %v1190 = vpop.f32.mrb[0].mxu0
        %v1191 = vpop.f32.mrb[0].mxu0
        %1192 = vdwg.mxu0
        %v1194 = vsel %vm366, %v1028, 0
        %v1197 = vsel %vm366, %v1038, 0
        %1199 = vmatprep.subr.bf16.mxu0 0
        %1200 = vmatpush1.bf16.xpose.msra.mxu0 %v1197
        %1201 = vmatprep.subr.bf16.mxu0 0
        %1202 = vmatpush1.bf16.xpose.msra.mxu0 0
        %1203 = vmatprep.subr.bf16.mxu0 0
        %1204 = vmatpush1.bf16.xpose.msra.mxu0 0
        %1205 = vmatprep.subr.bf16.mxu0 0
        %1206 = vmatpush1.bf16.xpose.msra.mxu0 0
        %1207 = vmatprep.subr.bf16.mxu0 0
        %1208 = vmatpush1.bf16.xpose.msra.mxu0 0
        %1209 = vmatprep.subr.bf16.mxu0 0
        %1210 = vmatpush1.bf16.xpose.msra.mxu0 0
        %1211 = vmatprep.subr.bf16.mxu0 0
        %1212 = vmatpush1.bf16.xpose.msra.mxu0 0
        %1213 = vmatprep.subr.bf16.mxu0 0
        %1214 = vmatpush1.bf16.xpose.msra.mxu0 0
        %1215 = vmatprep.subr.bf16.mxu0 0
        %1216 = vmatpush1.bf16.xpose.msra.mxu0 0
        %1217 = vmatprep.subr.bf16.mxu0 0
        %1218 = vmatpush1.bf16.xpose.msra.mxu0 0
        %1219 = vmatprep.subr.bf16.mxu0 0
        %1220 = vmatpush1.bf16.xpose.msra.mxu0 0
        %1221 = vmatprep.subr.bf16.mxu0 0
        %1222 = vmatpush1.bf16.xpose.msra.mxu0 0
        %1223 = vmatprep.subr.bf16.mxu0 0
        %1224 = vmatpush1.bf16.xpose.msra.mxu0 0
        %1225 = vmatprep.subr.bf16.mxu0 0
        %1226 = vmatpush1.bf16.xpose.msra.mxu0 0
        %1227 = vmatprep.subr.bf16.mxu0 0
        %1228 = vmatpush1.bf16.xpose.msra.mxu0 0
        %1229 = vmatprep.subr.bf16.mxu0 0
        %1230 = vmatpush1.bf16.xpose.msra.mxu0 0
        %1231 = vmatprep.mubr.bf16.mxu0 0
        %1232 = vmatmul.mubr.bf16.gmra.mrb[0].mxu0 %v1194
        %v1233 = vpop.f32.mrb[0].mxu0
        %v1234 = vadd.f32 %v1054, %v1233
        %v1235 = vpop.f32.mrb[0].mxu0
        %v1236 = vpop.f32.mrb[0].mxu0
        %v1237 = vpop.f32.mrb[0].mxu0
        %1238 = vdwg.mxu0
        %vm1239 = vcmask 64512
        %v1240 = vsel %vm1239, %v1096, -inf
        %1241 = vmax.xlane.f32.xlu0 %v1240
        %v1242 = vpop.xlane.xlu0 %1241
        %v1243 = vsel %vm1239, %v1142, -inf
        %1244 = vmax.xlane.f32.xlu0 %v1243
        %v1245 = vpop.xlane.xlu0 %1244
        %v1246 = vsel %vm1239, %v1188, -inf
        %1247 = vmax.xlane.f32.xlu0 %v1246
        %v1248 = vpop.xlane.xlu0 %1247
        %v1249 = vsel %vm1239, %v1234, -inf
        %1250 = vmax.xlane.f32.xlu0 %v1249
        %v1251 = vpop.xlane.xlu0 %1250
        %v1252 = vsub.f32 %v1096, %v1242
        %v1253 = vsub.f32 %v1142, %v1245
        %v1254 = vsub.f32 %v1188, %v1248
        %v1255 = vsub.f32 %v1234, %v1251
        %v1256 = vmul.f32 %v1252, 1.442695
        %v1257 = vpow.pop %v1256
        %v1258 = vmul.f32 %v1253, 1.442695
        %v1259 = vpow.pop %v1258
        %v1260 = vmul.f32 %v1254, 1.442695
        %v1261 = vpow.pop %v1260
        %v1262 = vmul.f32 %v1255, 1.442695
        %v1263 = vpow.pop %v1262
        %v1264 = vsel %vm1239, %v1257, 0.0
        %1265 = vadd.xlane.f32.xlu0 %v1264
        %v1266 = vpop.xlane.xlu0 %1265
        %v1267 = vsel %vm1239, %v1259, 0.0
        %1268 = vadd.xlane.f32.xlu0 %v1267
        %v1269 = vpop.xlane.xlu0 %1268
        %v1270 = vsel %vm1239, %v1261, 0.0
        %1271 = vadd.xlane.f32.xlu0 %v1270
        %v1272 = vpop.xlane.xlu0 %1271
        %v1273 = vsel %vm1239, %v1263, 0.0
        %1274 = vadd.xlane.f32.xlu0 %v1273
        %v1275 = vpop.xlane.xlu0 %1274
        %v1276 = vrcp.pop %v1266
        %v1277 = vrcp.pop %v1269
        %v1278 = vrcp.pop %v1272
        %v1279 = vrcp.pop %v1275
        %v1280 = vmul.f32 %v1257, %v1276
        %v1281 = vmul.f32 %v1259, %v1277
        %v1282 = vmul.f32 %v1261, %v1278
        %v1283 = vmul.f32 %v1263, %v1279
        %v1284 = vpack.c.bf16 %v1280, %v1280
        %v1285 = vpack.c.bf16 %v1281, %v1281
        %v1286 = vpack.c.bf16 %v1282, %v1282
        %v1287 = vpack.c.bf16 %v1283, %v1283
        %v1289 = vsel %vm1239, %v1284, 0
        %vm1291 = vcmask 1043456
        %v1293 = vsel %vm1291, %v1045, 0
        %1295 = vmatprep.subr.bf16.mxu0 0
        %1296 = vmatpush1.bf16.msra.mxu0 %v1293
        %1297 = vmatprep.subr.bf16.mxu0 0
        %1298 = vmatpush1.bf16.msra.mxu0 0
        %1299 = vmatprep.subr.bf16.mxu0 0
        %1300 = vmatpush1.bf16.msra.mxu0 0
        %1301 = vmatprep.subr.bf16.mxu0 0
        %1302 = vmatpush1.bf16.msra.mxu0 0
        %1303 = vmatprep.subr.bf16.mxu0 0
        %1304 = vmatpush1.bf16.msra.mxu0 0
        %1305 = vmatprep.subr.bf16.mxu0 0
        %1306 = vmatpush1.bf16.msra.mxu0 0
        %1307 = vmatprep.subr.bf16.mxu0 0
        %1308 = vmatpush1.bf16.msra.mxu0 0
        %1309 = vmatprep.subr.bf16.mxu0 0
        %1310 = vmatpush1.bf16.msra.mxu0 0
        %1311 = vmatprep.subr.bf16.mxu0 0
        %1312 = vmatpush1.bf16.msra.mxu0 0
        %1313 = vmatprep.subr.bf16.mxu0 0
        %1314 = vmatpush1.bf16.msra.mxu0 0
        %1315 = vmatprep.subr.bf16.mxu0 0
        %1316 = vmatpush1.bf16.msra.mxu0 0
        %1317 = vmatprep.subr.bf16.mxu0 0
        %1318 = vmatpush1.bf16.msra.mxu0 0
        %1319 = vmatprep.subr.bf16.mxu0 0
        %1320 = vmatpush1.bf16.msra.mxu0 0
        %1321 = vmatprep.subr.bf16.mxu0 0
        %1322 = vmatpush1.bf16.msra.mxu0 0
        %1323 = vmatprep.subr.bf16.mxu0 0
        %1324 = vmatpush1.bf16.msra.mxu0 0
        %1325 = vmatprep.subr.bf16.mxu0 0
        %1326 = vmatpush1.bf16.msra.mxu0 0
        %1327 = vmatprep.mubr.bf16.mxu0 0
        %1328 = vmatmul.mubr.bf16.gmra.mrb[0].mxu0 %v1289
        %v1329 = vpop.f32.mrb[0].mxu0
        %v1330 = vadd.f32 0.0, %v1329
        %v1331 = vpop.f32.mrb[0].mxu0
        %v1332 = vpop.f32.mrb[0].mxu0
        %v1333 = vpop.f32.mrb[0].mxu0
        %1334 = vdwg.mxu0
        %v1336 = vsel %vm1239, %v1285, 0
        %v1339 = vsel %vm1291, %v1046, 0
        %1341 = vmatprep.subr.bf16.mxu0 0
        %1342 = vmatpush1.bf16.msra.mxu0 %v1339
        %1343 = vmatprep.subr.bf16.mxu0 0
        %1344 = vmatpush1.bf16.msra.mxu0 0
        %1345 = vmatprep.subr.bf16.mxu0 0
        %1346 = vmatpush1.bf16.msra.mxu0 0
        %1347 = vmatprep.subr.bf16.mxu0 0
        %1348 = vmatpush1.bf16.msra.mxu0 0
        %1349 = vmatprep.subr.bf16.mxu0 0
        %1350 = vmatpush1.bf16.msra.mxu0 0
        %1351 = vmatprep.subr.bf16.mxu0 0
        %1352 = vmatpush1.bf16.msra.mxu0 0
        %1353 = vmatprep.subr.bf16.mxu0 0
        %1354 = vmatpush1.bf16.msra.mxu0 0
        %1355 = vmatprep.subr.bf16.mxu0 0
        %1356 = vmatpush1.bf16.msra.mxu0 0
        %1357 = vmatprep.subr.bf16.mxu0 0
        %1358 = vmatpush1.bf16.msra.mxu0 0
        %1359 = vmatprep.subr.bf16.mxu0 0
        %1360 = vmatpush1.bf16.msra.mxu0 0
        %1361 = vmatprep.subr.bf16.mxu0 0
        %1362 = vmatpush1.bf16.msra.mxu0 0
        %1363 = vmatprep.subr.bf16.mxu0 0
        %1364 = vmatpush1.bf16.msra.mxu0 0
        %1365 = vmatprep.subr.bf16.mxu0 0
        %1366 = vmatpush1.bf16.msra.mxu0 0
        %1367 = vmatprep.subr.bf16.mxu0 0
        %1368 = vmatpush1.bf16.msra.mxu0 0
        %1369 = vmatprep.subr.bf16.mxu0 0
        %1370 = vmatpush1.bf16.msra.mxu0 0
        %1371 = vmatprep.subr.bf16.mxu0 0
        %1372 = vmatpush1.bf16.msra.mxu0 0
        %1373 = vmatprep.mubr.bf16.mxu0 0
        %1374 = vmatmul.mubr.bf16.gmra.mrb[0].mxu0 %v1336
        %v1375 = vpop.f32.mrb[0].mxu0
        %v1376 = vadd.f32 0.0, %v1375
        %v1377 = vpop.f32.mrb[0].mxu0
        %v1378 = vpop.f32.mrb[0].mxu0
        %v1379 = vpop.f32.mrb[0].mxu0
        %1380 = vdwg.mxu0
        %v1382 = vsel %vm1239, %v1286, 0
        %v1385 = vsel %vm1291, %v1047, 0
        %1387 = vmatprep.subr.bf16.mxu0 0
        %1388 = vmatpush1.bf16.msra.mxu0 %v1385
        %1389 = vmatprep.subr.bf16.mxu0 0
        %1390 = vmatpush1.bf16.msra.mxu0 0
        %1391 = vmatprep.subr.bf16.mxu0 0
        %1392 = vmatpush1.bf16.msra.mxu0 0
        %1393 = vmatprep.subr.bf16.mxu0 0
        %1394 = vmatpush1.bf16.msra.mxu0 0
        %1395 = vmatprep.subr.bf16.mxu0 0
        %1396 = vmatpush1.bf16.msra.mxu0 0
        %1397 = vmatprep.subr.bf16.mxu0 0
        %1398 = vmatpush1.bf16.msra.mxu0 0
        %1399 = vmatprep.subr.bf16.mxu0 0
        %1400 = vmatpush1.bf16.msra.mxu0 0
        %1401 = vmatprep.subr.bf16.mxu0 0
        %1402 = vmatpush1.bf16.msra.mxu0 0
        %1403 = vmatprep.subr.bf16.mxu0 0
        %1404 = vmatpush1.bf16.msra.mxu0 0
        %1405 = vmatprep.subr.bf16.mxu0 0
        %1406 = vmatpush1.bf16.msra.mxu0 0
        %1407 = vmatprep.subr.bf16.mxu0 0
        %1408 = vmatpush1.bf16.msra.mxu0 0
        %1409 = vmatprep.subr.bf16.mxu0 0
        %1410 = vmatpush1.bf16.msra.mxu0 0
        %1411 = vmatprep.subr.bf16.mxu0 0
        %1412 = vmatpush1.bf16.msra.mxu0 0
        %1413 = vmatprep.subr.bf16.mxu0 0
        %1414 = vmatpush1.bf16.msra.mxu0 0
        %1415 = vmatprep.subr.bf16.mxu0 0
        %1416 = vmatpush1.bf16.msra.mxu0 0
        %1417 = vmatprep.subr.bf16.mxu0 0
        %1418 = vmatpush1.bf16.msra.mxu0 0
        %1419 = vmatprep.mubr.bf16.mxu0 0
        %1420 = vmatmul.mubr.bf16.gmra.mrb[0].mxu0 %v1382
        %v1421 = vpop.f32.mrb[0].mxu0
        %v1422 = vadd.f32 0.0, %v1421
        %v1423 = vpop.f32.mrb[0].mxu0
        %v1424 = vpop.f32.mrb[0].mxu0
        %v1425 = vpop.f32.mrb[0].mxu0
        %1426 = vdwg.mxu0
        %v1428 = vsel %vm1239, %v1287, 0
        %v1431 = vsel %vm1291, %v1048, 0
        %1433 = vmatprep.subr.bf16.mxu0 0
        %1434 = vmatpush1.bf16.msra.mxu0 %v1431
        %1435 = vmatprep.subr.bf16.mxu0 0
        %1436 = vmatpush1.bf16.msra.mxu0 0
        %1437 = vmatprep.subr.bf16.mxu0 0
        %1438 = vmatpush1.bf16.msra.mxu0 0
        %1439 = vmatprep.subr.bf16.mxu0 0
        %1440 = vmatpush1.bf16.msra.mxu0 0
        %1441 = vmatprep.subr.bf16.mxu0 0
        %1442 = vmatpush1.bf16.msra.mxu0 0
        %1443 = vmatprep.subr.bf16.mxu0 0
        %1444 = vmatpush1.bf16.msra.mxu0 0
        %1445 = vmatprep.subr.bf16.mxu0 0
        %1446 = vmatpush1.bf16.msra.mxu0 0
        %1447 = vmatprep.subr.bf16.mxu0 0
        %1448 = vmatpush1.bf16.msra.mxu0 0
        %1449 = vmatprep.subr.bf16.mxu0 0
        %1450 = vmatpush1.bf16.msra.mxu0 0
        %1451 = vmatprep.subr.bf16.mxu0 0
        %1452 = vmatpush1.bf16.msra.mxu0 0
        %1453 = vmatprep.subr.bf16.mxu0 0
        %1454 = vmatpush1.bf16.msra.mxu0 0
        %1455 = vmatprep.subr.bf16.mxu0 0
        %1456 = vmatpush1.bf16.msra.mxu0 0
        %1457 = vmatprep.subr.bf16.mxu0 0
        %1458 = vmatpush1.bf16.msra.mxu0 0
        %1459 = vmatprep.subr.bf16.mxu0 0
        %1460 = vmatpush1.bf16.msra.mxu0 0
        %1461 = vmatprep.subr.bf16.mxu0 0
        %1462 = vmatpush1.bf16.msra.mxu0 0
        %1463 = vmatprep.subr.bf16.mxu0 0
        %1464 = vmatpush1.bf16.msra.mxu0 0
        %1465 = vmatprep.mubr.bf16.mxu0 0
        %1466 = vmatmul.mubr.bf16.gmra.mrb[0].mxu0 %v1428
        %v1467 = vpop.f32.mrb[0].mxu0
        %v1468 = vadd.f32 0.0, %v1467
        %v1469 = vpop.f32.mrb[0].mxu0
        %v1470 = vpop.f32.mrb[0].mxu0
        %v1471 = vpop.f32.mrb[0].mxu0
        %1472 = vdwg.mxu0
        %v1473 = vsel %vm366, %v1330, 0.0
        %v1474 = vsel %vm366, %v1422, 0.0
        %v1475 = vadd.f32 %v1473, %v1474
        %v1476 = vsel %vm366, %v1376, 0.0
        %v1477 = vsel %vm366, %v1468, 0.0
        %v1478 = vadd.f32 %v1476, %v1477
        %v1479 = vadd.f32 %v1475, %v362
        %v1480 = vadd.f32 %v1478, %v363
        %v1481 = vld [vmem:[%s4] sm:$0x1]
        %v1482 = vld [vmem:[%s5] sm:$0x1]
        %v1483 = vsel %vm366, %v1479, 0.0
        %1484 = vadd.xlane.f32.xlu0 %v1483
        %v1485 = vpop.xlane.xlu0 %1484
        %v1486 = vsel %vm366, %v1480, 0.0
        %1487 = vadd.xlane.f32.xlu0 %v1486
        %v1488 = vpop.xlane.xlu0 %1487
        %v1489 = vmul.f32 %v1485, %v373
        %v1490 = vmul.f32 %v1488, %v373
        %v1491 = vsub.f32 %v1479, %v1489
        %v1492 = vsub.f32 %v1480, %v1490
        %v1493 = vmul.f32 %v1491, %v1491
        %v1494 = vmul.f32 %v1492, %v1492
        %v1495 = vsel %vm366, %v1493, 0.0
        %1496 = vadd.xlane.f32.xlu0 %v1495
        %v1497 = vpop.xlane.xlu0 %1496
        %v1498 = vsel %vm366, %v1494, 0.0
        %1499 = vadd.xlane.f32.xlu0 %v1498
        %v1500 = vpop.xlane.xlu0 %1499
        %v1501 = vmul.f32 %v1497, %v373
        %v1502 = vmul.f32 %v1500, %v373
        %v1503 = vadd.f32 %v1501, 1e-05
        %v1504 = vadd.f32 %v1502, 1e-05
        %v1505 = vrsqrt.pop %v1503
        %v1506 = vrsqrt.pop %v1504
        %v1507 = vmul.f32 %v1491, %v1505
        %v1508 = vmul.f32 %v1492, %v1506
        %v1510 = vlaneseq
        %v1511 = vshrl.u32 %v1510, 7
        %v1512 = vsub.s32 0, %v1511
        %v1513 = vrot.slane %v1481, %v1512
        %v1515 = vmul.f32 %v1507, %v1513
        %v1516 = vmul.f32 %v1508, %v1513
        %v1518 = vlaneseq
        %v1519 = vshrl.u32 %v1518, 7
        %v1520 = vsub.s32 0, %v1519
        %v1521 = vrot.slane %v1482, %v1520
        %v1523 = vadd.f32 %v1515, %v1521
        %v1524 = vadd.f32 %v1516, %v1521
        %v1525 = vpack.c.bf16 %v1524, %v1523
        %v1526 = vld [vmem:[%s6] sm:$0xf]
        %v1527 = vld [vmem:[%s6 + $0x4] sm:$0xf]
        %v1528 = vld [vmem:[%s6 + $0x8] sm:$0xf]
        %v1529 = vld [vmem:[%s6 + $0xc] sm:$0xf]
        %v1530 = vld [vmem:[%s7] sm:$0x1]
        %v1532 = vlaneseq
        %v1533 = vshrl.u32 %v1532, 7
        %v1534 = vsub.s32 0, %v1533
        %v1535 = vrot.slane %v1530, %v1534
        %v1541 = vunpack.c.l.b16 %v1526
        %v1542 = vunpack.c.l.b16 %v1527
        %v1543 = vunpack.c.l.b16 %v1528
        %v1544 = vunpack.c.l.b16 %v1529
        %v1545 = vpack.c.b16 %v1542, %v1541
        %v1546 = vpack.c.b16 %v1544, %v1543
        %v1550 = vsel %vm366, %v1525, 0
        %1552 = vmatprep.subr.bf16.mxu0 0
        %1553 = vmatpush1.bf16.msra.mxu0 %v1545
        %1554 = vmatprep.subr.bf16.mxu0 0
        %1555 = vmatpush1.bf16.msra.mxu0 %v1546
        %1556 = vmatprep.subr.bf16.mxu0 0
        %1557 = vmatpush1.bf16.msra.mxu0 0
        %1558 = vmatprep.subr.bf16.mxu0 0
        %1559 = vmatpush1.bf16.msra.mxu0 0
        %1560 = vmatprep.subr.bf16.mxu0 0
        %1561 = vmatpush1.bf16.msra.mxu0 0
        %1562 = vmatprep.subr.bf16.mxu0 0
        %1563 = vmatpush1.bf16.msra.mxu0 0
        %1564 = vmatprep.subr.bf16.mxu0 0
        %1565 = vmatpush1.bf16.msra.mxu0 0
        %1566 = vmatprep.subr.bf16.mxu0 0
        %1567 = vmatpush1.bf16.msra.mxu0 0
        %1568 = vmatprep.subr.bf16.mxu0 0
        %1569 = vmatpush1.bf16.msra.mxu0 0
        %1570 = vmatprep.subr.bf16.mxu0 0
        %1571 = vmatpush1.bf16.msra.mxu0 0
        %1572 = vmatprep.subr.bf16.mxu0 0
        %1573 = vmatpush1.bf16.msra.mxu0 0
        %1574 = vmatprep.subr.bf16.mxu0 0
        %1575 = vmatpush1.bf16.msra.mxu0 0
        %1576 = vmatprep.subr.bf16.mxu0 0
        %1577 = vmatpush1.bf16.msra.mxu0 0
        %1578 = vmatprep.subr.bf16.mxu0 0
        %1579 = vmatpush1.bf16.msra.mxu0 0
        %1580 = vmatprep.subr.bf16.mxu0 0
        %1581 = vmatpush1.bf16.msra.mxu0 0
        %1582 = vmatprep.subr.bf16.mxu0 0
        %1583 = vmatpush1.bf16.msra.mxu0 0
        %1584 = vmatprep.mubr.bf16.mxu0 0
        %1585 = vmatmul.mubr.bf16.gmra.mrb[0].mxu0 %v1550
        %v1586 = vpop.f32.mrb[0].mxu0
        %v1587 = vadd.f32 %v1535, %v1586
        %v1588 = vpop.f32.mrb[0].mxu0
        %v1589 = vpop.f32.mrb[0].mxu0
        %v1590 = vadd.f32 %v1535, %v1589
        %v1591 = vpop.f32.mrb[0].mxu0
        %1592 = vdwg.mxu0
        %v1593 = vmax.f32 %v1587, 0.0
        %v1594 = vmax.f32 %v1590, 0.0
        %v1595 = vpack.c.bf16 %v1594, %v1593
        %v1596 = vld [vmem:[%s8] sm:$0xf]
        %v1597 = vld [vmem:[%s8 + $0x4] sm:$0xf]
        %v1598 = vld [vmem:[%s8 + $0x8] sm:$0xf]
        %v1599 = vld [vmem:[%s8 + $0xc] sm:$0xf]
        %v1600 = vld [vmem:[%s8 + $0x10] sm:$0xf]
        %v1601 = vld [vmem:[%s8 + $0x14] sm:$0xf]
        %v1602 = vld [vmem:[%s8 + $0x18] sm:$0xf]
        %v1603 = vld [vmem:[%s8 + $0x1c] sm:$0xf]
        %v1604 = vld [vmem:[%s8 + $0x20] sm:$0xf]
        %v1605 = vld [vmem:[%s8 + $0x24] sm:$0xf]
        %v1606 = vld [vmem:[%s8 + $0x28] sm:$0xf]
        %v1607 = vld [vmem:[%s8 + $0x2c] sm:$0xf]
        %v1608 = vld [vmem:[%s8 + $0x30] sm:$0xf]
        %v1609 = vld [vmem:[%s8 + $0x34] sm:$0xf]
        %v1610 = vld [vmem:[%s8 + $0x38] sm:$0xf]
        %v1611 = vld [vmem:[%s8 + $0x3c] sm:$0xf]
        %v1612 = vld [vmem:[%s9] sm:$0x1]
        %v1614 = vlaneseq
        %v1615 = vshrl.u32 %v1614, 7
        %v1616 = vsub.s32 0, %v1615
        %v1617 = vrot.slane %v1612, %v1616
        %v1635 = vunpack.c.l.b16 %v1596
        %v1636 = vunpack.c.l.b16 %v1597
        %v1637 = vunpack.c.l.b16 %v1598
        %v1638 = vunpack.c.l.b16 %v1599
        %v1639 = vunpack.c.l.b16 %v1600
        %v1640 = vunpack.c.l.b16 %v1601
        %v1641 = vunpack.c.l.b16 %v1602
        %v1642 = vunpack.c.l.b16 %v1603
        %v1643 = vunpack.c.l.b16 %v1604
        %v1644 = vunpack.c.l.b16 %v1605
        %v1645 = vunpack.c.l.b16 %v1606
        %v1646 = vunpack.c.l.b16 %v1607
        %v1647 = vunpack.c.l.b16 %v1608
        %v1648 = vunpack.c.l.b16 %v1609
        %v1649 = vunpack.c.l.b16 %v1610
        %v1650 = vunpack.c.l.b16 %v1611
        %v1651 = vpack.c.b16 %v1636, %v1635
        %v1652 = vpack.c.b16 %v1638, %v1637
        %v1653 = vpack.c.b16 %v1640, %v1639
        %v1654 = vpack.c.b16 %v1642, %v1641
        %v1655 = vpack.c.b16 %v1644, %v1643
        %v1656 = vpack.c.b16 %v1646, %v1645
        %v1657 = vpack.c.b16 %v1648, %v1647
        %v1658 = vpack.c.b16 %v1650, %v1649
        %1667 = vmatprep.subr.bf16.mxu0 0
        %1668 = vmatpush1.bf16.msra.mxu0 %v1651
        %1669 = vmatprep.subr.bf16.mxu0 0
        %1670 = vmatpush1.bf16.msra.mxu0 %v1652
        %1671 = vmatprep.subr.bf16.mxu0 0
        %1672 = vmatpush1.bf16.msra.mxu0 %v1653
        %1673 = vmatprep.subr.bf16.mxu0 0
        %1674 = vmatpush1.bf16.msra.mxu0 %v1654
        %1675 = vmatprep.subr.bf16.mxu0 0
        %1676 = vmatpush1.bf16.msra.mxu0 %v1655
        %1677 = vmatprep.subr.bf16.mxu0 0
        %1678 = vmatpush1.bf16.msra.mxu0 %v1656
        %1679 = vmatprep.subr.bf16.mxu0 0
        %1680 = vmatpush1.bf16.msra.mxu0 %v1657
        %1681 = vmatprep.subr.bf16.mxu0 0
        %1682 = vmatpush1.bf16.msra.mxu0 %v1658
        %1683 = vmatprep.subr.bf16.mxu0 0
        %1684 = vmatpush1.bf16.msra.mxu0 0
        %1685 = vmatprep.subr.bf16.mxu0 0
        %1686 = vmatpush1.bf16.msra.mxu0 0
        %1687 = vmatprep.subr.bf16.mxu0 0
        %1688 = vmatpush1.bf16.msra.mxu0 0
        %1689 = vmatprep.subr.bf16.mxu0 0
        %1690 = vmatpush1.bf16.msra.mxu0 0
        %1691 = vmatprep.subr.bf16.mxu0 0
        %1692 = vmatpush1.bf16.msra.mxu0 0
        %1693 = vmatprep.subr.bf16.mxu0 0
        %1694 = vmatpush1.bf16.msra.mxu0 0
        %1695 = vmatprep.subr.bf16.mxu0 0
        %1696 = vmatpush1.bf16.msra.mxu0 0
        %1697 = vmatprep.subr.bf16.mxu0 0
        %1698 = vmatpush1.bf16.msra.mxu0 0
        %1699 = vmatprep.mubr.bf16.mxu0 0
        %1700 = vmatmul.mubr.bf16.gmra.mrb[0].mxu0 %v1595
        %v1701 = vpop.f32.mrb[0].mxu0
        %v1702 = vadd.f32 %v1617, %v1701
        %v1703 = vpop.f32.mrb[0].mxu0
        %v1704 = vpop.f32.mrb[0].mxu0
        %v1705 = vadd.f32 %v1617, %v1704
        %v1706 = vpop.f32.mrb[0].mxu0
        %1707 = vdwg.mxu0
        %v1708 = vadd.f32 %v1702, %v1479
        %v1709 = vadd.f32 %v1705, %v1480
        %1710 = vst.msk [vmem:[%s353] sm:$0xff] %vm366, %v1708
        %1711 = vst.msk [vmem:[%s353 + $0x8] sm:$0xff] %vm366, %v1709
        %s1712 = sand.u32 %s247, 1
        %s1713 = scalar_lea.sflag [#allocation3], %s1712
        %s1714 = sand.u32 %s247, 1
        %s1715 = smul.addr %s1714, 16
        %s1716 = scalar_lea.vmem [#allocation2], %s1715
        // Predicated region
        $region61: #{tpu_custom_call.1} parent=59 // pred_check
          %p1717 = pneg %p257
        $region62: #{tpu_custom_call.1} parent=59 // pred_check_branch
          %1719 = sbr.rel (%p1717) target = $region64
        $region63: #{tpu_custom_call.1} parent=59 // pred_region
          %s1720 = smul.u32 2, %s24
          %s1722 = ssub.s32 256, 256
          %1723 = vsyncadd %s1713, %s1722
          %s1724 = smul.addr %s1720, 128
          %s1725 = scalar_lea.hbm %s10, %s1724
          %s1726 = sshll.u32 %s1716, 4
          %s1727 = int_to_ptr.vmem [resolvable:$true] %s1726
          %1732 = dma.vmem_to_hbm [thread:$0]  %s1727, 256, %s1725, %s1713, 128, 128, 8
        $region64: #{tpu_custom_call.1} parent=59 // pred_fallthru
          _
      $region60: #{tpu_custom_call.1} parent=5 // pred_fallthru
        _
      %p1733 = scmp.le.s32.totalorder 2, %s19
      // Predicated region
      $region65: #{tpu_custom_call.1} parent=5 // pred_check
        %p1734 = pneg %p1733
      $region66: #{tpu_custom_call.1} parent=5 // pred_check_branch
        %1736 = sbr.rel (%p1734) target = $region68
      $region67: #{tpu_custom_call.1} parent=5 // pred_region
        %s1737 = ssub.s32 %s19, 2
        // Predicated region
        $region69: #{tpu_custom_call.1} parent=67 // pred_check
          %p1738 = pneg %p263
        $region70: #{tpu_custom_call.1} parent=67 // pred_check_branch
          %1740 = sbr.rel (%p1738) target = $region72
        $region71: #{tpu_custom_call.1} parent=67 // pred_region
          %s1741 = sand.u32 %s248, 1
          %s1742 = scalar_lea.sflag [#allocation3], %s1741
          %s1743 = sand.u32 %s248, 1
          %s1744 = smul.addr %s1743, 16
          %s1745 = scalar_lea.vmem [#allocation2], %s1744
          %1746 = dma.done %s1742, 256
        $region72: #{tpu_custom_call.1} parent=67 // pred_fallthru
          _
      $region68: #{tpu_custom_call.1} parent=5 // pred_fallthru
        _
    $region6: #{tpu_custom_call.1} parent=1 // loop_footer
      %s23 = sadd.s32 1, %s19
    $region7: #{tpu_custom_call.1} parent=1 // loop_footer_branch
      %18 = sbr.rel target = $region3
    $region8: #{tpu_custom_call.1} parent=1 // loop_exit
      _
    %1747 = vsyncpa [#allocation3], 1
    %s1748 = scalar_lea.sflag [#allocation3], 1
    %1749 = vsyncpa %s1748, 1

// kernel: tpu_custom_call.1
$region0: #{tpu_custom_call.1}
  #allocation0 [shape = 'u32[]', space=smem, size = 0x4, offset = 0x4, fixed_abs, tag = 'smem constant byte address 0x4 - core index']
  #allocation1 [shape = 'u32[144,128]{1,0:T(1,128)}', space=vmem, size = 0x12000, scoped, tag = 'internal scratch']
  %s0 = inlined_call_operand.vmem [shape: f32[32,32], index: 0, kind: input, shape index: {}]
  %s1 = inlined_call_operand.vmem [shape: bf16[32,192], index: 1, kind: input, shape index: {}]
  %s2 = inlined_call_operand.vmem [shape: f32[1,32], index: 2, kind: input, shape index: {}]
  %s3 = inlined_call_operand.vmem [shape: f32[1,32], index: 3, kind: input, shape index: {}]
  %s4 = inlined_call_operand.vmem [shape: f32[1,32], index: 4, kind: input, shape index: {}]
  %s5 = inlined_call_operand.vmem [shape: f32[1,32], index: 5, kind: input, shape index: {}]
  %s6 = inlined_call_operand.vmem [shape: bf16[32,128], index: 6, kind: input, shape index: {}]
  %s7 = inlined_call_operand.vmem [shape: f32[1,128], index: 7, kind: input, shape index: {}]
  %s8 = inlined_call_operand.vmem [shape: bf16[128,32], index: 8, kind: input, shape index: {}]
  %s9 = inlined_call_operand.vmem [shape: f32[1,32], index: 9, kind: input, shape index: {}]
  %s10 = inlined_call_operand.hbm [shape: f32[32,32], index: 10, kind: output, shape index: {}]
  %s11 = sld [smem:[#allocation0]]
  $region73: #{tpu_custom_call.1} parent=0
    _
  %s13 = ssub.s32 1, %s11
  %s14 = scalar_select 0, %s13, %s11
  $region1: #{tpu_custom_call.1} parent=0
    #allocation2 [shape = 'u8[16384]{0}', space=vmem, size = 0x4000, scoped, tag = 'output window, operand 0']
    #allocation3 [shape = 's32[2]{0}', space=sflag, size = 0x8, scoped, tag = 'scoped memory for tpu_custom_call.1']
    %15 = vsyncpa [#allocation3], 0
    %s16 = scalar_lea.sflag [#allocation3], 1
    %17 = vsyncpa %s16, 0
    loop: start=0, step=1, limit=4
    $region2: #{tpu_custom_call.1} parent=1 // loop_pre_header
      _
    $region3: #{tpu_custom_call.1} parent=1 // loop_header
      %s19 = sphi 0, %s23
      %p20 = scmp.ge.s32.totalorder %s19, 4
      %s29 = sphi 0, %s31
      %s32 = sphi 0, %s29
      %s33 = sphi 0, %s32
      %s49 = sphi 0, %s33
      %s53 = sphi 0, %s53
      %s55 = sphi 0, %s53
      %s56 = sphi 0, %s55
      %s70 = sphi 0, %s56
      %s74 = sphi 0, %s74
      %s76 = sphi 0, %s74
      %s77 = sphi 0, %s76
      %s91 = sphi 0, %s77
      %s95 = sphi 0, %s95
      %s97 = sphi 0, %s95
      %s98 = sphi 0, %s97
      %s112 = sphi 0, %s98
      %s116 = sphi 0, %s116
      %s118 = sphi 0, %s116
      %s119 = sphi 0, %s118
      %s133 = sphi 0, %s119
      %s137 = sphi 0, %s137
      %s139 = sphi 0, %s137
      %s140 = sphi 0, %s139
      %s154 = sphi 0, %s140
      %s158 = sphi 0, %s158
      %s160 = sphi 0, %s158
      %s161 = sphi 0, %s160
      %s175 = sphi 0, %s161
      %s179 = sphi 0, %s179
      %s181 = sphi 0, %s179
      %s182 = sphi 0, %s181
      %s196 = sphi 0, %s182
      %s200 = sphi 0, %s200
      %s202 = sphi 0, %s200
      %s203 = sphi 0, %s202
      %s217 = sphi 0, %s203
      %s221 = sphi 0, %s221
      %s223 = sphi 0, %s221
      %s224 = sphi 0, %s223
      %s238 = sphi 0, %s224
      %s244 = sphi 0, %s246
      %s247 = sphi 0, %s244
      %s248 = sphi 0, %s247
      %s264 = sphi 0, %s248
    $region4: #{tpu_custom_call.1} parent=1 // loop_header_branch
      %22 = sbr.rel (%p20) target = $region8
    $region5: #{tpu_custom_call.1} parent=1 // loop_body
      %s24 = ssub.s32 %s19, 1
      %s25 = ssub.s32 %s19, 2
      %s26 = sadd.s32 %s19, 1
      %s27 = ssub.s32 %s19, %s26
      %p28 = scmp.eq.s32.totalorder %s27, 0
      %s30 = sadd.s32 %s29, 1
      %s31 = scalar_select %p28, %s29, %s30
      %p34 = pneg %p28
      %p35 = scmp.eq.s32.totalorder %s19, 1
      %p36 = por %p34, %p35
      %p37 = scmp.ne.s32.totalorder %s29, %s32
      %p38 = scmp.eq.s32.totalorder %s19, 0
      %p39 = por %p37, %p38
      %p40 = scmp.ne.s32.totalorder %s29, %s32
      %p41 = scmp.eq.s32.totalorder %s24, 1
      %p42 = por %p40, %p41
      %p43 = scmp.ne.s32.totalorder %s32, %s33
      %p44 = scmp.eq.s32.totalorder %s24, 0
      %p45 = por %p43, %p44
      %p46 = scmp.ne.s32.totalorder %s32, %s33
      %p47 = scmp.eq.s32.totalorder %s25, 1
      %p48 = por %p46, %p47
      %p50 = scmp.ne.s32.totalorder %s33, %s49
      %p51 = scmp.eq.s32.totalorder %s25, 0
      %p52 = por %p50, %p51
      %s54 = sadd.s32 %s53, 1
      %p57 = scmp.eq.s32.totalorder %s19, 1
      %p58 = scmp.ne.s32.totalorder %s53, %s55
      %p59 = scmp.eq.s32.totalorder %s19, 0
      %p60 = por %p58, %p59
      %p61 = scmp.ne.s32.totalorder %s53, %s55
      %p62 = scmp.eq.s32.totalorder %s24, 1
      %p63 = por %p61, %p62
      %p64 = scmp.ne.s32.totalorder %s55, %s56
      %p65 = scmp.eq.s32.totalorder %s24, 0
      %p66 = por %p64, %p65
      %p67 = scmp.ne.s32.totalorder %s55, %s56
      %p68 = scmp.eq.s32.totalorder %s25, 1
      %p69 = por %p67, %p68
      %p71 = scmp.ne.s32.totalorder %s56, %s70
      %p72 = scmp.eq.s32.totalorder %s25, 0
      %p73 = por %p71, %p72
      %s75 = sadd.s32 %s74, 1
      %p78 = scmp.eq.s32.totalorder %s19, 1
      %p79 = scmp.ne.s32.totalorder %s74, %s76
      %p80 = scmp.eq.s32.totalorder %s19, 0
      %p81 = por %p79, %p80
      %p82 = scmp.ne.s32.totalorder %s74, %s76
      %p83 = scmp.eq.s32.totalorder %s24, 1
      %p84 = por %p82, %p83
      %p85 = scmp.ne.s32.totalorder %s76, %s77
      %p86 = scmp.eq.s32.totalorder %s24, 0
      %p87 = por %p85, %p86
      %p88 = scmp.ne.s32.totalorder %s76, %s77
      %p89 = scmp.eq.s32.totalorder %s25, 1
      %p90 = por %p88, %p89
      %p92 = scmp.ne.s32.totalorder %s77, %s91
      %p93 = scmp.eq.s32.totalorder %s25, 0
      %p94 = por %p92, %p93
      %s96 = sadd.s32 %s95, 1
      %p99 = scmp.eq.s32.totalorder %s19, 1
      %p100 = scmp.ne.s32.totalorder %s95, %s97
      %p101 = scmp.eq.s32.totalorder %s19, 0
      %p102 = por %p100, %p101
      %p103 = scmp.ne.s32.totalorder %s95, %s97
      %p104 = scmp.eq.s32.totalorder %s24, 1
      %p105 = por %p103, %p104
      %p106 = scmp.ne.s32.totalorder %s97, %s98
      %p107 = scmp.eq.s32.totalorder %s24, 0
      %p108 = por %p106, %p107
      %p109 = scmp.ne.s32.totalorder %s97, %s98
      %p110 = scmp.eq.s32.totalorder %s25, 1
      %p111 = por %p109, %p110
      %p113 = scmp.ne.s32.totalorder %s98, %s112
      %p114 = scmp.eq.s32.totalorder %s25, 0
      %p115 = por %p113, %p114
      %s117 = sadd.s32 %s116, 1
      %p120 = scmp.eq.s32.totalorder %s19, 1
      %p121 = scmp.ne.s32.totalorder %s116, %s118
      %p122 = scmp.eq.s32.totalorder %s19, 0
      %p123 = por %p121, %p122
      %p124 = scmp.ne.s32.totalorder %s116, %s118
      %p125 = scmp.eq.s32.totalorder %s24, 1
      %p126 = por %p124, %p125
      %p127 = scmp.ne.s32.totalorder %s118, %s119
      %p128 = scmp.eq.s32.totalorder %s24, 0
      %p129 = por %p127, %p128
      %p130 = scmp.ne.s32.totalorder %s118, %s119
      %p131 = scmp.eq.s32.totalorder %s25, 1
      %p132 = por %p130, %p131
      %p134 = scmp.ne.s32.totalorder %s119, %s133
      %p135 = scmp.eq.s32.totalorder %s25, 0
      %p136 = por %p134, %p135
      %s138 = sadd.s32 %s137, 1
      %p141 = scmp.eq.s32.totalorder %s19, 1
      %p142 = scmp.ne.s32.totalorder %s137, %s139
      %p143 = scmp.eq.s32.totalorder %s19, 0
      %p144 = por %p142, %p143
      %p145 = scmp.ne.s32.totalorder %s137, %s139
      %p146 = scmp.eq.s32.totalorder %s24, 1
      %p147 = por %p145, %p146
      %p148 = scmp.ne.s32.totalorder %s139, %s140
      %p149 = scmp.eq.s32.totalorder %s24, 0
      %p150 = por %p148, %p149
      %p151 = scmp.ne.s32.totalorder %s139, %s140
      %p152 = scmp.eq.s32.totalorder %s25, 1
      %p153 = por %p151, %p152
      %p155 = scmp.ne.s32.totalorder %s140, %s154
      %p156 = scmp.eq.s32.totalorder %s25, 0
      %p157 = por %p155, %p156
      %s159 = sadd.s32 %s158, 1
      %p162 = scmp.eq.s32.totalorder %s19, 1
      %p163 = scmp.ne.s32.totalorder %s158, %s160
      %p164 = scmp.eq.s32.totalorder %s19, 0
      %p165 = por %p163, %p164
      %p166 = scmp.ne.s32.totalorder %s158, %s160
      %p167 = scmp.eq.s32.totalorder %s24, 1
      %p168 = por %p166, %p167
      %p169 = scmp.ne.s32.totalorder %s160, %s161
      %p170 = scmp.eq.s32.totalorder %s24, 0
      %p171 = por %p169, %p170
      %p172 = scmp.ne.s32.totalorder %s160, %s161
      %p173 = scmp.eq.s32.totalorder %s25, 1
      %p174 = por %p172, %p173
      %p176 = scmp.ne.s32.totalorder %s161, %s175
      %p177 = scmp.eq.s32.totalorder %s25, 0
      %p178 = por %p176, %p177
      %s180 = sadd.s32 %s179, 1
      %p183 = scmp.eq.s32.totalorder %s19, 1
      %p184 = scmp.ne.s32.totalorder %s179, %s181
      %p185 = scmp.eq.s32.totalorder %s19, 0
      %p186 = por %p184, %p185
      %p187 = scmp.ne.s32.totalorder %s179, %s181
      %p188 = scmp.eq.s32.totalorder %s24, 1
      %p189 = por %p187, %p188
      %p190 = scmp.ne.s32.totalorder %s181, %s182
      %p191 = scmp.eq.s32.totalorder %s24, 0
      %p192 = por %p190, %p191
      %p193 = scmp.ne.s32.totalorder %s181, %s182
      %p194 = scmp.eq.s32.totalorder %s25, 1
      %p195 = por %p193, %p194
      %p197 = scmp.ne.s32.totalorder %s182, %s196
      %p198 = scmp.eq.s32.totalorder %s25, 0
      %p199 = por %p197, %p198
      %s201 = sadd.s32 %s200, 1
      %p204 = scmp.eq.s32.totalorder %s19, 1
      %p205 = scmp.ne.s32.totalorder %s200, %s202
      %p206 = scmp.eq.s32.totalorder %s19, 0
      %p207 = por %p205, %p206
      %p208 = scmp.ne.s32.totalorder %s200, %s202
      %p209 = scmp.eq.s32.totalorder %s24, 1
      %p210 = por %p208, %p209
      %p211 = scmp.ne.s32.totalorder %s202, %s203
      %p212 = scmp.eq.s32.totalorder %s24, 0
      %p213 = por %p211, %p212
      %p214 = scmp.ne.s32.totalorder %s202, %s203
      %p215 = scmp.eq.s32.totalorder %s25, 1
      %p216 = por %p214, %p215
      %p218 = scmp.ne.s32.totalorder %s203, %s217
      %p219 = scmp.eq.s32.totalorder %s25, 0
      %p220 = por %p218, %p219
      %s222 = sadd.s32 %s221, 1
      %p225 = scmp.eq.s32.totalorder %s19, 1
      %p226 = scmp.ne.s32.totalorder %s221, %s223
      %p227 = scmp.eq.s32.totalorder %s19, 0
      %p228 = por %p226, %p227
      %p229 = scmp.ne.s32.totalorder %s221, %s223
      %p230 = scmp.eq.s32.totalorder %s24, 1
      %p231 = por %p229, %p230
      %p232 = scmp.ne.s32.totalorder %s223, %s224
      %p233 = scmp.eq.s32.totalorder %s24, 0
      %p234 = por %p232, %p233
      %p235 = scmp.ne.s32.totalorder %s223, %s224
      %p236 = scmp.eq.s32.totalorder %s25, 1
      %p237 = por %p235, %p236
      %p239 = scmp.ne.s32.totalorder %s224, %s238
      %p240 = scmp.eq.s32.totalorder %s25, 0
      %p241 = por %p239, %p240
      %s242 = ssub.s32 %s19, %s26
      %p243 = scmp.eq.s32.totalorder %s242, 0
      %s245 = sadd.s32 %s244, 1
      %s246 = scalar_select %p243, %s244, %s245
      %p249 = pneg %p243
      %p250 = scmp.eq.s32.totalorder %s19, 1
      %p251 = por %p249, %p250
      %p252 = scmp.ne.s32.totalorder %s244, %s247
      %p253 = scmp.eq.s32.totalorder %s19, 0
      %p254 = por %p252, %p253
      %p255 = scmp.ne.s32.totalorder %s244, %s247
      %p256 = scmp.eq.s32.totalorder %s24, 1
      %p257 = por %p255, %p256
      %p258 = scmp.ne.s32.totalorder %s247, %s248
      %p259 = scmp.eq.s32.totalorder %s24, 0
      %p260 = por %p258, %p259
      %p261 = scmp.ne.s32.totalorder %s247, %s248
      %p262 = scmp.eq.s32.totalorder %s25, 1
      %p263 = por %p261, %p262
      %p265 = scmp.ne.s32.totalorder %s248, %s264
      %p266 = scmp.eq.s32.totalorder %s25, 0
      %p267 = por %p265, %p266
      %p268 = scmp.le.s32.totalorder 1, %s19
      %p269 = scmp.lt.s32.totalorder %s19, 3
      %p270 = pnand %p268, %p269
      %p271 = pneg %p270
      // Predicated region
      $region9: #{tpu_custom_call.1} parent=5 // pred_check
        _
      $region10: #{tpu_custom_call.1} parent=5 // pred_check_branch
        %273 = sbr.rel (%p270) target = $region12
      $region11: #{tpu_custom_call.1} parent=5 // pred_region
        %s274 = ssub.s32 %s19, 1
        // Predicated region
        $region13: #{tpu_custom_call.1} parent=11 // pred_check
          %p275 = pneg %p66
        $region14: #{tpu_custom_call.1} parent=11 // pred_check_branch
          %277 = sbr.rel (%p275) target = $region16
        $region15: #{tpu_custom_call.1} parent=11 // pred_region
          _
        $region16: #{tpu_custom_call.1} parent=11 // pred_fallthru
          _
        // Predicated region
        $region17: #{tpu_custom_call.1} parent=11 // pred_check
          %p278 = pneg %p87
        $region18: #{tpu_custom_call.1} parent=11 // pred_check_branch
          %280 = sbr.rel (%p278) target = $region20
        $region19: #{tpu_custom_call.1} parent=11 // pred_region
          _
        $region20: #{tpu_custom_call.1} parent=11 // pred_fallthru
          _
        // Predicated region
        $region21: #{tpu_custom_call.1} parent=11 // pred_check
          %p281 = pneg %p108
        $region22: #{tpu_custom_call.1} parent=11 // pred_check_branch
          %283 = sbr.rel (%p281) target = $region24
        $region23: #{tpu_custom_call.1} parent=11 // pred_region
          _
        $region24: #{tpu_custom_call.1} parent=11 // pred_fallthru
          _
        // Predicated region
        $region25: #{tpu_custom_call.1} parent=11 // pred_check
          %p284 = pneg %p129
        $region26: #{tpu_custom_call.1} parent=11 // pred_check_branch
          %286 = sbr.rel (%p284) target = $region28
        $region27: #{tpu_custom_call.1} parent=11 // pred_region
          _
        $region28: #{tpu_custom_call.1} parent=11 // pred_fallthru
          _
        // Predicated region
        $region29: #{tpu_custom_call.1} parent=11 // pred_check
          %p287 = pneg %p150
        $region30: #{tpu_custom_call.1} parent=11 // pred_check_branch
          %289 = sbr.rel (%p287) target = $region32
        $region31: #{tpu_custom_call.1} parent=11 // pred_region
          _
        $region32: #{tpu_custom_call.1} parent=11 // pred_fallthru
          _
        // Predicated region
        $region33: #{tpu_custom_call.1} parent=11 // pred_check
          %p290 = pneg %p171
        $region34: #{tpu_custom_call.1} parent=11 // pred_check_branch
          %292 = sbr.rel (%p290) target = $region36
        $region35: #{tpu_custom_call.1} parent=11 // pred_region
          _
        $region36: #{tpu_custom_call.1} parent=11 // pred_fallthru
          _
        // Predicated region
        $region37: #{tpu_custom_call.1} parent=11 // pred_check
          %p293 = pneg %p192
        $region38: #{tpu_custom_call.1} parent=11 // pred_check_branch
          %295 = sbr.rel (%p293) target = $region40
        $region39: #{tpu_custom_call.1} parent=11 // pred_region
          _
        $region40: #{tpu_custom_call.1} parent=11 // pred_fallthru
          _
        // Predicated region
        $region41: #{tpu_custom_call.1} parent=11 // pred_check
          %p296 = pneg %p213
        $region42: #{tpu_custom_call.1} parent=11 // pred_check_branch
          %298 = sbr.rel (%p296) target = $region44
        $region43: #{tpu_custom_call.1} parent=11 // pred_region
          _
        $region44: #{tpu_custom_call.1} parent=11 // pred_fallthru
          _
        // Predicated region
        $region45: #{tpu_custom_call.1} parent=11 // pred_check
          %p299 = pneg %p234
        $region46: #{tpu_custom_call.1} parent=11 // pred_check_branch
          %301 = sbr.rel (%p299) target = $region48
        $region47: #{tpu_custom_call.1} parent=11 // pred_region
          _
        $region48: #{tpu_custom_call.1} parent=11 // pred_fallthru
          _
      $region12: #{tpu_custom_call.1} parent=5 // pred_fallthru
        _
      %p302 = scmp.lt.s32.totalorder %s19, 2
      // Predicated region
      $region49: #{tpu_custom_call.1} parent=5 // pred_check
        %p303 = pneg %p302
      $region50: #{tpu_custom_call.1} parent=5 // pred_check_branch
        %305 = sbr.rel (%p303) target = $region52
      $region51: #{tpu_custom_call.1} parent=5 // pred_region
        // Predicated region
        $region53: #{tpu_custom_call.1} parent=51 // pred_check
          %p306 = pneg %p39
        $region54: #{tpu_custom_call.1} parent=51 // pred_check_branch
          %308 = sbr.rel (%p306) target = $region56
        $region55: #{tpu_custom_call.1} parent=51 // pred_region
          %s309 = smul.u32 2, %s19
          %p310 = scmp.lt.s32.totalorder %s309, 3
          %s311 = scalar_select %p310, %s309, 3
          %s312 = smul.addr %s311, 8
          %s313 = scalar_lea.vmem %s0, %s312
          %s314 = smul.u32 2, %s19
        $region56: #{tpu_custom_call.1} parent=51 // pred_fallthru
          _
      $region52: #{tpu_custom_call.1} parent=5 // pred_fallthru
        _
      %p315 = scmp.le.s32.totalorder 1, %s19
      %p316 = scmp.lt.s32.totalorder %s19, 3
      %p317 = pnand %p315, %p316
      %p318 = pneg %p317
      // Predicated region
      $region57: #{tpu_custom_call.1} parent=5 // pred_check
        _
      $region58: #{tpu_custom_call.1} parent=5 // pred_check_branch
        %320 = sbr.rel (%p317) target = $region60
      $region59: #{tpu_custom_call.1} parent=5 // pred_region
        %s321 = ssub.s32 %s19, 1
        %s322 = smul.u32 2, %s24
        %p323 = scmp.lt.s32.totalorder %s322, 3
        %s324 = scalar_select %p323, %s322, 3
        %s325 = smul.addr %s324, 8
        %s326 = scalar_lea.vmem %s0, %s325
        %p327 = pneg %p45
        %p328 = pneg %p42
        %p329 = pneg %p66
        %p330 = pneg %p63
        %p331 = pneg %p87
        %p332 = pneg %p84
        %p333 = pneg %p108
        %p334 = pneg %p105
        %p335 = pneg %p129
        %p336 = pneg %p126
        %p337 = pneg %p150
        %p338 = pneg %p147
        %p339 = pneg %p171
        %p340 = pneg %p168
        %p341 = pneg %p192
        %p342 = pneg %p189
        %p343 = pneg %p213
        %p344 = pneg %p210
        %p345 = pneg %p234
        %p346 = pneg %p231
        %p347 = pneg %p260
        %p348 = pneg %p257
        %s349 = sand.u32 %s247, 1
        %s350 = scalar_lea.sflag [#allocation3], %s349
        %s351 = sand.u32 %s247, 1
        %s352 = smul.addr %s351, 16
        %s353 = scalar_lea.vmem [#allocation2], %s352
        %s354 = smul.u32 2, %s24
        %p355 = scmp.lt.s32.totalorder %s354, 3
        %s356 = scalar_select %p355, %s354, 3
        %s357 = smul.addr %s356, 8
        %s358 = scalar_lea.vmem %s0, %s357
        %s359 = smul.u32 2, %s24
        %s360 = smul.u32 2, %s24
        %v362 = vld [vmem:[%s358] sm:$0xff]
        %v363 = vld [vmem:[%s358 + $0x8] sm:$0xff]
        %v364 = vld [vmem:[%s2] sm:$0x1]
        %v365 = vld [vmem:[%s3] sm:$0x1]
        %vm366 = vcmask 261120
        %v367 = vsel %vm366, %v362, 0.0
        %368 = vadd.xlane.f32.xlu0 %v367
        %v369 = vpop.xlane.xlu0 %368
        %v370 = vsel %vm366, %v363, 0.0
        %371 = vadd.xlane.f32.xlu0 %v370
        %v372 = vpop.xlane.xlu0 %371
        %v373 = vrcp.pop 32.0
        %v374 = vmul.f32 %v369, %v373
        %v375 = vmul.f32 %v372, %v373
        %v376 = vsub.f32 %v362, %v374
        %v377 = vsub.f32 %v363, %v375
        %v378 = vmul.f32 %v376, %v376
        %v379 = vmul.f32 %v377, %v377
        %v380 = vsel %vm366, %v378, 0.0
        %381 = vadd.xlane.f32.xlu0 %v380
        %v382 = vpop.xlane.xlu0 %381
        %v383 = vsel %vm366, %v379, 0.0
        %384 = vadd.xlane.f32.xlu0 %v383
        %v385 = vpop.xlane.xlu0 %384
        %v386 = vmul.f32 %v382, %v373
        %v387 = vmul.f32 %v385, %v373
        %v388 = vadd.f32 %v386, 1e-05
        %v389 = vadd.f32 %v387, 1e-05
        %v390 = vrsqrt.pop %v388
        %v391 = vrsqrt.pop %v389
        %v392 = vmul.f32 %v376, %v390
        %v393 = vmul.f32 %v377, %v391
        %v395 = vlaneseq
        %v396 = vshrl.u32 %v395, 7
        %v397 = vsub.s32 0, %v396
        %v398 = vrot.slane %v364, %v397
        %v400 = vmul.f32 %v392, %v398
        %v401 = vmul.f32 %v393, %v398
        %v403 = vlaneseq
        %v404 = vshrl.u32 %v403, 7
        %v405 = vsub.s32 0, %v404
        %v406 = vrot.slane %v365, %v405
        %v408 = vadd.f32 %v400, %v406
        %v409 = vadd.f32 %v401, %v406
        %v410 = vpack.c.bf16 %v409, %v408
        %v411 = vld [vmem:[%s1] sm:$0xff]
        %v412 = vld [vmem:[%s1 + $0x8] sm:$0xff]
        %v413 = vld [vmem:[%s1 + $0x10] sm:$0xff]
        %v414 = vld [vmem:[%s1 + $0x18] sm:$0xff]
        %v419 = vunpack.c.l.b16 %v411
        %v420 = vunpack.c.h.b16 %v411
        %v421 = vunpack.c.l.b16 %v412
        %v422 = vunpack.c.h.b16 %v412
        %v423 = vunpack.c.l.b16 %v413
        %v424 = vunpack.c.h.b16 %v413
        %v425 = vunpack.c.l.b16 %v414
        %v426 = vunpack.c.h.b16 %v414
        %v427 = vpack.c.b16 %v421, %v419
        %v428 = vpack.c.b16 %v422, %v420
        %v429 = vpack.c.b16 %v425, %v423
        %v430 = vpack.c.b16 %v426, %v424
        %v436 = vsel %vm366, %v410, 0
        %438 = vmatprep.subr.bf16.mxu0 %v428
        %439 = vmatpush1.bf16.msra.mxu0 %v427
        %440 = vmatprep.subr.bf16.mxu0 %v430
        %441 = vmatpush1.bf16.msra.mxu0 %v429
        %442 = vmatprep.subr.bf16.mxu0 0
        %443 = vmatpush1.bf16.msra.mxu0 0
        %444 = vmatprep.subr.bf16.mxu0 0
        %445 = vmatpush1.bf16.msra.mxu0 0
        %446 = vmatprep.subr.bf16.mxu0 0
        %447 = vmatpush1.bf16.msra.mxu0 0
        %448 = vmatprep.subr.bf16.mxu0 0
        %449 = vmatpush1.bf16.msra.mxu0 0
        %450 = vmatprep.subr.bf16.mxu0 0
        %451 = vmatpush1.bf16.msra.mxu0 0
        %452 = vmatprep.subr.bf16.mxu0 0
        %453 = vmatpush1.bf16.msra.mxu0 0
        %454 = vmatprep.subr.bf16.mxu0 0
        %455 = vmatpush1.bf16.msra.mxu0 0
        %456 = vmatprep.subr.bf16.mxu0 0
        %457 = vmatpush1.bf16.msra.mxu0 0
        %458 = vmatprep.subr.bf16.mxu0 0
        %459 = vmatpush1.bf16.msra.mxu0 0
        %460 = vmatprep.subr.bf16.mxu0 0
        %461 = vmatpush1.bf16.msra.mxu0 0
        %462 = vmatprep.subr.bf16.mxu0 0
        %463 = vmatpush1.bf16.msra.mxu0 0
        %464 = vmatprep.subr.bf16.mxu0 0
        %465 = vmatpush1.bf16.msra.mxu0 0
        %466 = vmatprep.subr.bf16.mxu0 0
        %467 = vmatpush1.bf16.msra.mxu0 0
        %468 = vmatprep.subr.bf16.mxu0 0
        %469 = vmatpush1.bf16.msra.mxu0 0
        %470 = vmatprep.mubr.bf16.mxu0 0
        %471 = vmatmul.mubr.bf16.gmra.mrb[0].mxu0 %v436
        %v472 = vpop.f32.mrb[0].mxu0
        %v473 = vadd.f32 0.0, %v472
        %v474 = vpop.f32.mrb[0].mxu0
        %v475 = vadd.f32 0.0, %v474
        %v476 = vpop.f32.mrb[0].mxu0
        %v477 = vadd.f32 0.0, %v476
        %v478 = vpop.f32.mrb[0].mxu0
        %v479 = vadd.f32 0.0, %v478
        %480 = vdwg.mxu0
        %483 = vrot.lane.b32.xlu0 %v473, 96
        %v484 = vpop.permute.xlu0 %483
        %485 = vrot.lane.b32.xlu0 %v477, 96
        %v486 = vpop.permute.xlu0 %485
        %489 = vrot.lane.b32.xlu0 %v473, 64
        %v490 = vpop.permute.xlu0 %489
        %491 = vrot.lane.b32.xlu0 %v477, 64
        %v492 = vpop.permute.xlu0 %491
        %495 = vrot.lane.b32.xlu0 %v473, 32
        %v496 = vpop.permute.xlu0 %495
        %497 = vrot.lane.b32.xlu0 %v477, 32
        %v498 = vpop.permute.xlu0 %497
        %503 = vrot.lane.b32.xlu0 %v475, 96
        %v504 = vpop.permute.xlu0 %503
        %505 = vrot.lane.b32.xlu0 %v479, 96
        %v506 = vpop.permute.xlu0 %505
        %v509 = vcombine.low %v473, %v490
        %v510 = vcombine.high %v473, %v490
        %v512 = vunpack.c.l.s4 1983009808
        %v513 = vunpack.c.0.s8 %v512
        %v514 = vlaneseq
        %v515 = vshrl.u32 %v514, 7
        %v516 = vsub.s32 %v513, %v515
        %v517 = vrot.slane %v509, %v516
        %v519 = vunpack.c.l.s4 1983009808
        %v520 = vunpack.c.0.s8 %v519
        %v521 = vlaneseq
        %v522 = vshrl.u32 %v521, 7
        %v523 = vsub.s32 %v520, %v522
        %v524 = vrot.slane %v510, %v523
        %v525 = vcombine.low %v484, %v496
        %v526 = vcombine.high %v484, %v496
        %v528 = vunpack.c.l.s4 1983009808
        %v529 = vunpack.c.0.s8 %v528
        %v530 = vlaneseq
        %v531 = vshrl.u32 %v530, 7
        %v532 = vsub.s32 %v529, %v531
        %v533 = vrot.slane %v525, %v532
        %v535 = vunpack.c.l.s4 1983009808
        %v536 = vunpack.c.0.s8 %v535
        %v537 = vlaneseq
        %v538 = vshrl.u32 %v537, 7
        %v539 = vsub.s32 %v536, %v538
        %v540 = vrot.slane %v526, %v539
        %v541 = vcombine.high %v475, 0.0
        %v543 = vunpack.c.l.s4 1983009808
        %v544 = vunpack.c.0.s8 %v543
        %v545 = vlaneseq
        %v546 = vshrl.u32 %v545, 7
        %v547 = vsub.s32 %v544, %v546
        %v548 = vrot.slane %v475, %v547
        %v550 = vunpack.c.l.s4 1983009808
        %v551 = vunpack.c.0.s8 %v550
        %v552 = vlaneseq
        %v553 = vshrl.u32 %v552, 7
        %v554 = vsub.s32 %v551, %v553
        %v555 = vrot.slane %v541, %v554
        %v556 = vcombine.high %v504, 0.0
        %v558 = vunpack.c.l.s4 1983009808
        %v559 = vunpack.c.0.s8 %v558
        %v560 = vlaneseq
        %v561 = vshrl.u32 %v560, 7
        %v562 = vsub.s32 %v559, %v561
        %v563 = vrot.slane %v504, %v562
        %v565 = vunpack.c.l.s4 1983009808
        %v566 = vunpack.c.0.s8 %v565
        %v567 = vlaneseq
        %v568 = vshrl.u32 %v567, 7
        %v569 = vsub.s32 %v566, %v568
        %v570 = vrot.slane %v556, %v569
        %v571 = vcombine.low %v517, %v533
        %v572 = vcombine.high %v517, %v533
        %v574 = vunpack.c.l.s4 1934713408
        %v575 = vunpack.c.0.s8 %v574
        %v576 = vlaneseq
        %v577 = vshrl.u32 %v576, 7
        %v578 = vsub.s32 %v575, %v577
        %v579 = vrot.slane %v571, %v578
        %v581 = vunpack.c.l.s4 1934713408
        %v582 = vunpack.c.0.s8 %v581
        %v583 = vlaneseq
        %v584 = vshrl.u32 %v583, 7
        %v585 = vsub.s32 %v582, %v584
        %v586 = vrot.slane %v572, %v585
        %v587 = vcombine.low %v524, %v540
        %v588 = vcombine.high %v524, %v540
        %v590 = vunpack.c.l.s4 1934713408
        %v591 = vunpack.c.0.s8 %v590
        %v592 = vlaneseq
        %v593 = vshrl.u32 %v592, 7
        %v594 = vsub.s32 %v591, %v593
        %v595 = vrot.slane %v587, %v594
        %v597 = vunpack.c.l.s4 1934713408
        %v598 = vunpack.c.0.s8 %v597
        %v599 = vlaneseq
        %v600 = vshrl.u32 %v599, 7
        %v601 = vsub.s32 %v598, %v600
        %v602 = vrot.slane %v588, %v601
        %v603 = vcombine.low %v548, %v563
        %v604 = vcombine.high %v548, %v563
        %v606 = vunpack.c.l.s4 1934713408
        %v607 = vunpack.c.0.s8 %v606
        %v608 = vlaneseq
        %v609 = vshrl.u32 %v608, 7
        %v610 = vsub.s32 %v607, %v609
        %v611 = vrot.slane %v603, %v610
        %v613 = vunpack.c.l.s4 1934713408
        %v614 = vunpack.c.0.s8 %v613
        %v615 = vlaneseq
        %v616 = vshrl.u32 %v615, 7
        %v617 = vsub.s32 %v614, %v616
        %v618 = vrot.slane %v604, %v617
        %v619 = vcombine.low %v555, %v570
        %v620 = vcombine.high %v555, %v570
        %v622 = vunpack.c.l.s4 1934713408
        %v623 = vunpack.c.0.s8 %v622
        %v624 = vlaneseq
        %v625 = vshrl.u32 %v624, 7
        %v626 = vsub.s32 %v623, %v625
        %v627 = vrot.slane %v619, %v626
        %v629 = vunpack.c.l.s4 1934713408
        %v630 = vunpack.c.0.s8 %v629
        %v631 = vlaneseq
        %v632 = vshrl.u32 %v631, 7
        %v633 = vsub.s32 %v630, %v632
        %v634 = vrot.slane %v620, %v633
        %v635 = vcombine.low %v579, %v611
        %v636 = vcombine.high %v579, %v611
        %v637 = vcombine.low %v586, %v618
        %v638 = vcombine.high %v586, %v618
        %v639 = vcombine.low %v595, %v627
        %v640 = vcombine.high %v595, %v627
        %v641 = vcombine.low %v602, %v634
        %v642 = vcombine.high %v602, %v634
        %v643 = vcombine.low %v477, %v492
        %v644 = vcombine.high %v477, %v492
        %v646 = vunpack.c.l.s4 1983009808
        %v647 = vunpack.c.0.s8 %v646
        %v648 = vlaneseq
        %v649 = vshrl.u32 %v648, 7
        %v650 = vsub.s32 %v647, %v649
        %v651 = vrot.slane %v643, %v650
        %v653 = vunpack.c.l.s4 1983009808
        %v654 = vunpack.c.0.s8 %v653
        %v655 = vlaneseq
        %v656 = vshrl.u32 %v655, 7
        %v657 = vsub.s32 %v654, %v656
        %v658 = vrot.slane %v644, %v657
        %v659 = vcombine.low %v486, %v498
        %v660 = vcombine.high %v486, %v498
        %v662 = vunpack.c.l.s4 1983009808
        %v663 = vunpack.c.0.s8 %v662
        %v664 = vlaneseq
        %v665 = vshrl.u32 %v664, 7
        %v666 = vsub.s32 %v663, %v665
        %v667 = vrot.slane %v659, %v666
        %v669 = vunpack.c.l.s4 1983009808
        %v670 = vunpack.c.0.s8 %v669
        %v671 = vlaneseq
        %v672 = vshrl.u32 %v671, 7
        %v673 = vsub.s32 %v670, %v672
        %v674 = vrot.slane %v660, %v673
        %v675 = vcombine.high %v479, 0.0
        %v677 = vunpack.c.l.s4 1983009808
        %v678 = vunpack.c.0.s8 %v677
        %v679 = vlaneseq
        %v680 = vshrl.u32 %v679, 7
        %v681 = vsub.s32 %v678, %v680
        %v682 = vrot.slane %v479, %v681
        %v684 = vunpack.c.l.s4 1983009808
        %v685 = vunpack.c.0.s8 %v684
        %v686 = vlaneseq
        %v687 = vshrl.u32 %v686, 7
        %v688 = vsub.s32 %v685, %v687
        %v689 = vrot.slane %v675, %v688
        %v690 = vcombine.high %v506, 0.0
        %v692 = vunpack.c.l.s4 1983009808
        %v693 = vunpack.c.0.s8 %v692
        %v694 = vlaneseq
        %v695 = vshrl.u32 %v694, 7
        %v696 = vsub.s32 %v693, %v695
        %v697 = vrot.slane %v506, %v696
        %v699 = vunpack.c.l.s4 1983009808
        %v700 = vunpack.c.0.s8 %v699
        %v701 = vlaneseq
        %v702 = vshrl.u32 %v701, 7
        %v703 = vsub.s32 %v700, %v702
        %v704 = vrot.slane %v690, %v703
        %v705 = vcombine.low %v651, %v667
        %v706 = vcombine.high %v651, %v667
        %v708 = vunpack.c.l.s4 1934713408
        %v709 = vunpack.c.0.s8 %v708
        %v710 = vlaneseq
        %v711 = vshrl.u32 %v710, 7
        %v712 = vsub.s32 %v709, %v711
        %v713 = vrot.slane %v705, %v712
        %v715 = vunpack.c.l.s4 1934713408
        %v716 = vunpack.c.0.s8 %v715
        %v717 = vlaneseq
        %v718 = vshrl.u32 %v717, 7
        %v719 = vsub.s32 %v716, %v718
        %v720 = vrot.slane %v706, %v719
        %v721 = vcombine.low %v658, %v674
        %v722 = vcombine.high %v658, %v674
        %v724 = vunpack.c.l.s4 1934713408
        %v725 = vunpack.c.0.s8 %v724
        %v726 = vlaneseq
        %v727 = vshrl.u32 %v726, 7
        %v728 = vsub.s32 %v725, %v727
        %v729 = vrot.slane %v721, %v728
        %v731 = vunpack.c.l.s4 1934713408
        %v732 = vunpack.c.0.s8 %v731
        %v733 = vlaneseq
        %v734 = vshrl.u32 %v733, 7
        %v735 = vsub.s32 %v732, %v734
        %v736 = vrot.slane %v722, %v735
        %v737 = vcombine.low %v682, %v697
        %v738 = vcombine.high %v682, %v697
        %v740 = vunpack.c.l.s4 1934713408
        %v741 = vunpack.c.0.s8 %v740
        %v742 = vlaneseq
        %v743 = vshrl.u32 %v742, 7
        %v744 = vsub.s32 %v741, %v743
        %v745 = vrot.slane %v737, %v744
        %v747 = vunpack.c.l.s4 1934713408
        %v748 = vunpack.c.0.s8 %v747
        %v749 = vlaneseq
        %v750 = vshrl.u32 %v749, 7
        %v751 = vsub.s32 %v748, %v750
        %v752 = vrot.slane %v738, %v751
        %v753 = vcombine.low %v689, %v704
        %v754 = vcombine.high %v689, %v704
        %v756 = vunpack.c.l.s4 1934713408
        %v757 = vunpack.c.0.s8 %v756
        %v758 = vlaneseq
        %v759 = vshrl.u32 %v758, 7
        %v760 = vsub.s32 %v757, %v759
        %v761 = vrot.slane %v753, %v760
        %v763 = vunpack.c.l.s4 1934713408
        %v764 = vunpack.c.0.s8 %v763
        %v765 = vlaneseq
        %v766 = vshrl.u32 %v765, 7
        %v767 = vsub.s32 %v764, %v766
        %v768 = vrot.slane %v754, %v767
        %v769 = vcombine.low %v713, %v745
        %v770 = vcombine.high %v713, %v745
        %v771 = vcombine.low %v720, %v752
        %v772 = vcombine.high %v720, %v752
        %v773 = vcombine.low %v729, %v761
        %v774 = vcombine.high %v729, %v761
        %v775 = vcombine.low %v736, %v768
        %v776 = vcombine.high %v736, %v768
        %v777 = vcombine.low %v635, %v637
        %v778 = vcombine.high %v635, %v637
        %v780 = vunpack.c.l.s4 1983009808
        %v781 = vunpack.c.0.s8 %v780
        %v782 = vlaneseq
        %v783 = vshrl.u32 %v782, 7
        %v784 = vsub.s32 %v781, %v783
        %v785 = vrot.slane %v777, %v784
        %v787 = vunpack.c.l.s4 1983009808
        %v788 = vunpack.c.0.s8 %v787
        %v789 = vlaneseq
        %v790 = vshrl.u32 %v789, 7
        %v791 = vsub.s32 %v788, %v790
        %v792 = vrot.slane %v778, %v791
        %v793 = vcombine.low %v636, %v638
        %v794 = vcombine.high %v636, %v638
        %v796 = vunpack.c.l.s4 1983009808
        %v797 = vunpack.c.0.s8 %v796
        %v798 = vlaneseq
        %v799 = vshrl.u32 %v798, 7
        %v800 = vsub.s32 %v797, %v799
        %v801 = vrot.slane %v793, %v800
        %v803 = vunpack.c.l.s4 1983009808
        %v804 = vunpack.c.0.s8 %v803
        %v805 = vlaneseq
        %v806 = vshrl.u32 %v805, 7
        %v807 = vsub.s32 %v804, %v806
        %v808 = vrot.slane %v794, %v807
        %v809 = vcombine.low %v639, %v641
        %v810 = vcombine.high %v639, %v641
        %v812 = vunpack.c.l.s4 1983009808
        %v813 = vunpack.c.0.s8 %v812
        %v814 = vlaneseq
        %v815 = vshrl.u32 %v814, 7
        %v816 = vsub.s32 %v813, %v815
        %v817 = vrot.slane %v809, %v816
        %v819 = vunpack.c.l.s4 1983009808
        %v820 = vunpack.c.0.s8 %v819
        %v821 = vlaneseq
        %v822 = vshrl.u32 %v821, 7
        %v823 = vsub.s32 %v820, %v822
        %v824 = vrot.slane %v810, %v823
        %v825 = vcombine.low %v640, %v642
        %v826 = vcombine.high %v640, %v642
        %v828 = vunpack.c.l.s4 1983009808
        %v829 = vunpack.c.0.s8 %v828
        %v830 = vlaneseq
        %v831 = vshrl.u32 %v830, 7
        %v832 = vsub.s32 %v829, %v831
        %v833 = vrot.slane %v825, %v832
        %v835 = vunpack.c.l.s4 1983009808
        %v836 = vunpack.c.0.s8 %v835
        %v837 = vlaneseq
        %v838 = vshrl.u32 %v837, 7
        %v839 = vsub.s32 %v836, %v838
        %v840 = vrot.slane %v826, %v839
        %v841 = vcombine.low %v785, %v801
        %v842 = vcombine.high %v785, %v801
        %v844 = vunpack.c.l.s4 1934713408
        %v845 = vunpack.c.0.s8 %v844
        %v846 = vlaneseq
        %v847 = vshrl.u32 %v846, 7
        %v848 = vsub.s32 %v845, %v847
        %v849 = vrot.slane %v841, %v848
        %v851 = vunpack.c.l.s4 1934713408
        %v852 = vunpack.c.0.s8 %v851
        %v853 = vlaneseq
        %v854 = vshrl.u32 %v853, 7
        %v855 = vsub.s32 %v852, %v854
        %v856 = vrot.slane %v842, %v855
        %v857 = vcombine.low %v792, %v808
        %v859 = vunpack.c.l.s4 1934713408
        %v860 = vunpack.c.0.s8 %v859
        %v861 = vlaneseq
        %v862 = vshrl.u32 %v861, 7
        %v863 = vsub.s32 %v860, %v862
        %v864 = vrot.slane %v857, %v863
        %v865 = vcombine.low %v817, %v833
        %v866 = vcombine.high %v817, %v833
        %v868 = vunpack.c.l.s4 1934713408
        %v869 = vunpack.c.0.s8 %v868
        %v870 = vlaneseq
        %v871 = vshrl.u32 %v870, 7
        %v872 = vsub.s32 %v869, %v871
        %v873 = vrot.slane %v865, %v872
        %v875 = vunpack.c.l.s4 1934713408
        %v876 = vunpack.c.0.s8 %v875
        %v877 = vlaneseq
        %v878 = vshrl.u32 %v877, 7
        %v879 = vsub.s32 %v876, %v878
        %v880 = vrot.slane %v866, %v879
        %v881 = vcombine.low %v824, %v840
        %v883 = vunpack.c.l.s4 1934713408
        %v884 = vunpack.c.0.s8 %v883
        %v885 = vlaneseq
        %v886 = vshrl.u32 %v885, 7
        %v887 = vsub.s32 %v884, %v886
        %v888 = vrot.slane %v881, %v887
        %v889 = vcombine.low %v849, %v873
        %v890 = vcombine.high %v849, %v873
        %v891 = vcombine.low %v856, %v880
        %v892 = vcombine.high %v856, %v880
        %v893 = vcombine.low %v864, %v888
        %v894 = vcombine.high %v864, %v888
        %v895 = vcombine.low %v769, %v771
        %v896 = vcombine.high %v769, %v771
        %v898 = vunpack.c.l.s4 1983009808
        %v899 = vunpack.c.0.s8 %v898
        %v900 = vlaneseq
        %v901 = vshrl.u32 %v900, 7
        %v902 = vsub.s32 %v899, %v901
        %v903 = vrot.slane %v895, %v902
        %v905 = vunpack.c.l.s4 1983009808
        %v906 = vunpack.c.0.s8 %v905
        %v907 = vlaneseq
        %v908 = vshrl.u32 %v907, 7
        %v909 = vsub.s32 %v906, %v908
        %v910 = vrot.slane %v896, %v909
        %v911 = vcombine.low %v770, %v772
        %v912 = vcombine.high %v770, %v772
        %v914 = vunpack.c.l.s4 1983009808
        %v915 = vunpack.c.0.s8 %v914
        %v916 = vlaneseq
        %v917 = vshrl.u32 %v916, 7
        %v918 = vsub.s32 %v915, %v917
        %v919 = vrot.slane %v911, %v918
        %v921 = vunpack.c.l.s4 1983009808
        %v922 = vunpack.c.0.s8 %v921
        %v923 = vlaneseq
        %v924 = vshrl.u32 %v923, 7
        %v925 = vsub.s32 %v922, %v924
        %v926 = vrot.slane %v912, %v925
        %v927 = vcombine.low %v773, %v775
        %v928 = vcombine.high %v773, %v775
        %v930 = vunpack.c.l.s4 1983009808
        %v931 = vunpack.c.0.s8 %v930
        %v932 = vlaneseq
        %v933 = vshrl.u32 %v932, 7
        %v934 = vsub.s32 %v931, %v933
        %v935 = vrot.slane %v927, %v934
        %v937 = vunpack.c.l.s4 1983009808
        %v938 = vunpack.c.0.s8 %v937
        %v939 = vlaneseq
        %v940 = vshrl.u32 %v939, 7
        %v941 = vsub.s32 %v938, %v940
        %v942 = vrot.slane %v928, %v941
        %v943 = vcombine.low %v774, %v776
        %v944 = vcombine.high %v774, %v776
        %v946 = vunpack.c.l.s4 1983009808
        %v947 = vunpack.c.0.s8 %v946
        %v948 = vlaneseq
        %v949 = vshrl.u32 %v948, 7
        %v950 = vsub.s32 %v947, %v949
        %v951 = vrot.slane %v943, %v950
        %v953 = vunpack.c.l.s4 1983009808
        %v954 = vunpack.c.0.s8 %v953
        %v955 = vlaneseq
        %v956 = vshrl.u32 %v955, 7
        %v957 = vsub.s32 %v954, %v956
        %v958 = vrot.slane %v944, %v957
        %v959 = vcombine.low %v903, %v919
        %v960 = vcombine.high %v903, %v919
        %v962 = vunpack.c.l.s4 1934713408
        %v963 = vunpack.c.0.s8 %v962
        %v964 = vlaneseq
        %v965 = vshrl.u32 %v964, 7
        %v966 = vsub.s32 %v963, %v965
        %v967 = vrot.slane %v959, %v966
        %v969 = vunpack.c.l.s4 1934713408
        %v970 = vunpack.c.0.s8 %v969
        %v971 = vlaneseq
        %v972 = vshrl.u32 %v971, 7
        %v973 = vsub.s32 %v970, %v972
        %v974 = vrot.slane %v960, %v973
        %v975 = vcombine.low %v910, %v926
        %v977 = vunpack.c.l.s4 1934713408
        %v978 = vunpack.c.0.s8 %v977
        %v979 = vlaneseq
        %v980 = vshrl.u32 %v979, 7
        %v981 = vsub.s32 %v978, %v980
        %v982 = vrot.slane %v975, %v981
        %v983 = vcombine.low %v935, %v951
        %v984 = vcombine.high %v935, %v951
        %v986 = vunpack.c.l.s4 1934713408
        %v987 = vunpack.c.0.s8 %v986
        %v988 = vlaneseq
        %v989 = vshrl.u32 %v988, 7
        %v990 = vsub.s32 %v987, %v989
        %v991 = vrot.slane %v983, %v990
        %v993 = vunpack.c.l.s4 1934713408
        %v994 = vunpack.c.0.s8 %v993
        %v995 = vlaneseq
        %v996 = vshrl.u32 %v995, 7
        %v997 = vsub.s32 %v994, %v996
        %v998 = vrot.slane %v984, %v997
        %v999 = vcombine.low %v942, %v958
        %v1001 = vunpack.c.l.s4 1934713408
        %v1002 = vunpack.c.0.s8 %v1001
        %v1003 = vlaneseq
        %v1004 = vshrl.u32 %v1003, 7
        %v1005 = vsub.s32 %v1002, %v1004
        %v1006 = vrot.slane %v999, %v1005
        %v1007 = vcombine.low %v967, %v991
        %v1008 = vcombine.high %v967, %v991
        %v1009 = vcombine.low %v974, %v998
        %v1010 = vcombine.high %v974, %v998
        %v1011 = vcombine.low %v982, %v1006
        %v1012 = vcombine.high %v982, %v1006
        %v1013 = vpack.c.bf16 %v1007, %v889
        %v1014 = vpack.c.bf16 %v1008, %v890
        %v1015 = vpack.c.bf16 %v1009, %v891
        %v1016 = vpack.c.bf16 %v1010, %v892
        %v1017 = vpack.c.bf16 %v1011, %v893
        %v1018 = vpack.c.bf16 %v1012, %v894
        %v1021 = vunpack.c.l.b16 %v1013
        %v1022 = vunpack.c.h.b16 %v1013
        %v1023 = vunpack.c.l.b16 %v1014
        %v1024 = vunpack.c.h.b16 %v1014
        %v1025 = vpack.c.b16 %v1021, %v1021
        %v1026 = vpack.c.b16 %v1022, %v1022
        %v1027 = vpack.c.b16 %v1023, %v1023
        %v1028 = vpack.c.b16 %v1024, %v1024
        %v1031 = vunpack.c.l.b16 %v1015
        %v1032 = vunpack.c.h.b16 %v1015
        %v1033 = vunpack.c.l.b16 %v1016
        %v1034 = vunpack.c.h.b16 %v1016
        %v1035 = vpack.c.b16 %v1031, %v1031
        %v1036 = vpack.c.b16 %v1032, %v1032
        %v1037 = vpack.c.b16 %v1033, %v1033
        %v1038 = vpack.c.b16 %v1034, %v1034
        %v1041 = vunpack.c.l.b16 %v1017
        %v1042 = vunpack.c.h.b16 %v1017
        %v1043 = vunpack.c.l.b16 %v1018
        %v1044 = vunpack.c.h.b16 %v1018
        %v1045 = vpack.c.b16 %v1041, %v1041
        %v1046 = vpack.c.b16 %v1042, %v1042
        %v1047 = vpack.c.b16 %v1043, %v1043
        %v1048 = vpack.c.b16 %v1044, %v1044
        %v1049 = vlaneseq
        %v1050 = vshrl.u32 %v1049, 7
        %v1051 = vlaneseq
        %v1052 = vand.u32 %v1051, 127
        %vm1053 = vcmp.ge.s32.totalorder %v1050, %v1052
        %v1054 = vsel %vm1053, 0.0, -1e+30
        %v1056 = vsel %vm366, %v1025, 0
        %v1059 = vsel %vm366, %v1035, 0
        %1061 = vmatprep.subr.bf16.mxu0 0
        %1062 = vmatpush1.bf16.xpose.msra.mxu0 %v1059
        %1063 = vmatprep.subr.bf16.mxu0 0
        %1064 = vmatpush1.bf16.xpose.msra.mxu0 0
        %1065 = vmatprep.subr.bf16.mxu0 0
        %1066 = vmatpush1.bf16.xpose.msra.mxu0 0
        %1067 = vmatprep.subr.bf16.mxu0 0
        %1068 = vmatpush1.bf16.xpose.msra.mxu0 0
        %1069 = vmatprep.subr.bf16.mxu0 0
        %1070 = vmatpush1.bf16.xpose.msra.mxu0 0
        %1071 = vmatprep.subr.bf16.mxu0 0
        %1072 = vmatpush1.bf16.xpose.msra.mxu0 0
        %1073 = vmatprep.subr.bf16.mxu0 0
        %1074 = vmatpush1.bf16.xpose.msra.mxu0 0
        %1075 = vmatprep.subr.bf16.mxu0 0
        %1076 = vmatpush1.bf16.xpose.msra.mxu0 0
        %1077 = vmatprep.subr.bf16.mxu0 0
        %1078 = vmatpush1.bf16.xpose.msra.mxu0 0
        %1079 = vmatprep.subr.bf16.mxu0 0
        %1080 = vmatpush1.bf16.xpose.msra.mxu0 0
        %1081 = vmatprep.subr.bf16.mxu0 0
        %1082 = vmatpush1.bf16.xpose.msra.mxu0 0
        %1083 = vmatprep.subr.bf16.mxu0 0
        %1084 = vmatpush1.bf16.xpose.msra.mxu0 0
        %1085 = vmatprep.subr.bf16.mxu0 0
        %1086 = vmatpush1.bf16.xpose.msra.mxu0 0
        %1087 = vmatprep.subr.bf16.mxu0 0
        %1088 = vmatpush1.bf16.xpose.msra.mxu0 0
        %1089 = vmatprep.subr.bf16.mxu0 0
        %1090 = vmatpush1.bf16.xpose.msra.mxu0 0
        %1091 = vmatprep.subr.bf16.mxu0 0
        %1092 = vmatpush1.bf16.xpose.msra.mxu0 0
        %1093 = vmatprep.mubr.bf16.mxu0 0
        %1094 = vmatmul.mubr.bf16.gmra.mrb[0].mxu0 %v1056
        %v1095 = vpop.f32.mrb[0].mxu0
        %v1096 = vadd.f32 %v1054, %v1095
        %v1097 = vpop.f32.mrb[0].mxu0
        %v1098 = vpop.f32.mrb[0].mxu0
        %v1099 = vpop.f32.mrb[0].mxu0
        %1100 = vdwg.mxu0
        %v1102 = vsel %vm366, %v1026, 0
        %v1105 = vsel %vm366, %v1036, 0
        %1107 = vmatprep.subr.bf16.mxu0 0
        %1108 = vmatpush1.bf16.xpose.msra.mxu0 %v1105
        %1109 = vmatprep.subr.bf16.mxu0 0
        %1110 = vmatpush1.bf16.xpose.msra.mxu0 0
        %1111 = vmatprep.subr.bf16.mxu0 0
        %1112 = vmatpush1.bf16.xpose.msra.mxu0 0
        %1113 = vmatprep.subr.bf16.mxu0 0
        %1114 = vmatpush1.bf16.xpose.msra.mxu0 0
        %1115 = vmatprep.subr.bf16.mxu0 0
        %1116 = vmatpush1.bf16.xpose.msra.mxu0 0
        %1117 = vmatprep.subr.bf16.mxu0 0
        %1118 = vmatpush1.bf16.xpose.msra.mxu0 0
        %1119 = vmatprep.subr.bf16.mxu0 0
        %1120 = vmatpush1.bf16.xpose.msra.mxu0 0
        %1121 = vmatprep.subr.bf16.mxu0 0
        %1122 = vmatpush1.bf16.xpose.msra.mxu0 0
        %1123 = vmatprep.subr.bf16.mxu0 0
        %1124 = vmatpush1.bf16.xpose.msra.mxu0 0
        %1125 = vmatprep.subr.bf16.mxu0 0
        %1126 = vmatpush1.bf16.xpose.msra.mxu0 0
        %1127 = vmatprep.subr.bf16.mxu0 0
        %1128 = vmatpush1.bf16.xpose.msra.mxu0 0
        %1129 = vmatprep.subr.bf16.mxu0 0
        %1130 = vmatpush1.bf16.xpose.msra.mxu0 0
        %1131 = vmatprep.subr.bf16.mxu0 0
        %1132 = vmatpush1.bf16.xpose.msra.mxu0 0
        %1133 = vmatprep.subr.bf16.mxu0 0
        %1134 = vmatpush1.bf16.xpose.msra.mxu0 0
        %1135 = vmatprep.subr.bf16.mxu0 0
        %1136 = vmatpush1.bf16.xpose.msra.mxu0 0
        %1137 = vmatprep.subr.bf16.mxu0 0
        %1138 = vmatpush1.bf16.xpose.msra.mxu0 0
        %1139 = vmatprep.mubr.bf16.mxu0 0
        %1140 = vmatmul.mubr.bf16.gmra.mrb[0].mxu0 %v1102
        %v1141 = vpop.f32.mrb[0].mxu0
        %v1142 = vadd.f32 %v1054, %v1141
        %v1143 = vpop.f32.mrb[0].mxu0
        %v1144 = vpop.f32.mrb[0].mxu0
        %v1145 = vpop.f32.mrb[0].mxu0
        %1146 = vdwg.mxu0
        %v1148 = vsel %vm366, %v1027, 0
        %v1151 = vsel %vm366, %v1037, 0
        %1153 = vmatprep.subr.bf16.mxu0 0
        %1154 = vmatpush1.bf16.xpose.msra.mxu0 %v1151
        %1155 = vmatprep.subr.bf16.mxu0 0
        %1156 = vmatpush1.bf16.xpose.msra.mxu0 0
        %1157 = vmatprep.subr.bf16.mxu0 0
        %1158 = vmatpush1.bf16.xpose.msra.mxu0 0
        %1159 = vmatprep.subr.bf16.mxu0 0
        %1160 = vmatpush1.bf16.xpose.msra.mxu0 0
        %1161 = vmatprep.subr.bf16.mxu0 0
        %1162 = vmatpush1.bf16.xpose.msra.mxu0 0
        %1163 = vmatprep.subr.bf16.mxu0 0
        %1164 = vmatpush1.bf16.xpose.msra.mxu0 0
        %1165 = vmatprep.subr.bf16.mxu0 0
        %1166 = vmatpush1.bf16.xpose.msra.mxu0 0
        %1167 = vmatprep.subr.bf16.mxu0 0
        %1168 = vmatpush1.bf16.xpose.msra.mxu0 0
        %1169 = vmatprep.subr.bf16.mxu0 0
        %1170 = vmatpush1.bf16.xpose.msra.mxu0 0
        %1171 = vmatprep.subr.bf16.mxu0 0
        %1172 = vmatpush1.bf16.xpose.msra.mxu0 0
        %1173 = vmatprep.subr.bf16.mxu0 0
        %1174 = vmatpush1.bf16.xpose.msra.mxu0 0
        %1175 = vmatprep.subr.bf16.mxu0 0
        %1176 = vmatpush1.bf16.xpose.msra.mxu0 0
        %1177 = vmatprep.subr.bf16.mxu0 0
        %1178 = vmatpush1.bf16.xpose.msra.mxu0 0
        %1179 = vmatprep.subr.bf16.mxu0 0
        %1180 = vmatpush1.bf16.xpose.msra.mxu0 0
        %1181 = vmatprep.subr.bf16.mxu0 0
        %1182 = vmatpush1.bf16.xpose.msra.mxu0 0
        %1183 = vmatprep.subr.bf16.mxu0 0
        %1184 = vmatpush1.bf16.xpose.msra.mxu0 0
        %1185 = vmatprep.mubr.bf16.mxu0 0
        %1186 = vmatmul.mubr.bf16.gmra.mrb[0].mxu0 %v1148
        %v1187 = vpop.f32.mrb[0].mxu0
        %v1188 = vadd.f32 %v1054, %v1187
        %v1189 = vpop.f32.mrb[0].mxu0
        %v1190 = vpop.f32.mrb[0].mxu0
        %v1191 = vpop.f32.mrb[0].mxu0
        %1192 = vdwg.mxu0
        %v1194 = vsel %vm366, %v1028, 0
        %v1197 = vsel %vm366, %v1038, 0
        %1199 = vmatprep.subr.bf16.mxu0 0
        %1200 = vmatpush1.bf16.xpose.msra.mxu0 %v1197
        %1201 = vmatprep.subr.bf16.mxu0 0
        %1202 = vmatpush1.bf16.xpose.msra.mxu0 0
        %1203 = vmatprep.subr.bf16.mxu0 0
        %1204 = vmatpush1.bf16.xpose.msra.mxu0 0
        %1205 = vmatprep.subr.bf16.mxu0 0
        %1206 = vmatpush1.bf16.xpose.msra.mxu0 0
        %1207 = vmatprep.subr.bf16.mxu0 0
        %1208 = vmatpush1.bf16.xpose.msra.mxu0 0
        %1209 = vmatprep.subr.bf16.mxu0 0
        %1210 = vmatpush1.bf16.xpose.msra.mxu0 0
        %1211 = vmatprep.subr.bf16.mxu0 0
        %1212 = vmatpush1.bf16.xpose.msra.mxu0 0
        %1213 = vmatprep.subr.bf16.mxu0 0
        %1214 = vmatpush1.bf16.xpose.msra.mxu0 0
        %1215 = vmatprep.subr.bf16.mxu0 0
        %1216 = vmatpush1.bf16.xpose.msra.mxu0 0
        %1217 = vmatprep.subr.bf16.mxu0 0
        %1218 = vmatpush1.bf16.xpose.msra.mxu0 0
        %1219 = vmatprep.subr.bf16.mxu0 0
        %1220 = vmatpush1.bf16.xpose.msra.mxu0 0
        %1221 = vmatprep.subr.bf16.mxu0 0
        %1222 = vmatpush1.bf16.xpose.msra.mxu0 0
        %1223 = vmatprep.subr.bf16.mxu0 0
        %1224 = vmatpush1.bf16.xpose.msra.mxu0 0
        %1225 = vmatprep.subr.bf16.mxu0 0
        %1226 = vmatpush1.bf16.xpose.msra.mxu0 0
        %1227 = vmatprep.subr.bf16.mxu0 0
        %1228 = vmatpush1.bf16.xpose.msra.mxu0 0
        %1229 = vmatprep.subr.bf16.mxu0 0
        %1230 = vmatpush1.bf16.xpose.msra.mxu0 0
        %1231 = vmatprep.mubr.bf16.mxu0 0
        %1232 = vmatmul.mubr.bf16.gmra.mrb[0].mxu0 %v1194
        %v1233 = vpop.f32.mrb[0].mxu0
        %v1234 = vadd.f32 %v1054, %v1233
        %v1235 = vpop.f32.mrb[0].mxu0
        %v1236 = vpop.f32.mrb[0].mxu0
        %v1237 = vpop.f32.mrb[0].mxu0
        %1238 = vdwg.mxu0
        %vm1239 = vcmask 64512
        %v1240 = vsel %vm1239, %v1096, -inf
        %1241 = vmax.xlane.f32.xlu0 %v1240
        %v1242 = vpop.xlane.xlu0 %1241
        %v1243 = vsel %vm1239, %v1142, -inf
        %1244 = vmax.xlane.f32.xlu0 %v1243
        %v1245 = vpop.xlane.xlu0 %1244
        %v1246 = vsel %vm1239, %v1188, -inf
        %1247 = vmax.xlane.f32.xlu0 %v1246
        %v1248 = vpop.xlane.xlu0 %1247
        %v1249 = vsel %vm1239, %v1234, -inf
        %1250 = vmax.xlane.f32.xlu0 %v1249
        %v1251 = vpop.xlane.xlu0 %1250
        %v1252 = vsub.f32 %v1096, %v1242
        %v1253 = vsub.f32 %v1142, %v1245
        %v1254 = vsub.f32 %v1188, %v1248
        %v1255 = vsub.f32 %v1234, %v1251
        %v1256 = vmul.f32 %v1252, 1.442695
        %v1257 = vpow.pop %v1256
        %v1258 = vmul.f32 %v1253, 1.442695
        %v1259 = vpow.pop %v1258
        %v1260 = vmul.f32 %v1254, 1.442695
        %v1261 = vpow.pop %v1260
        %v1262 = vmul.f32 %v1255, 1.442695
        %v1263 = vpow.pop %v1262
        %v1264 = vsel %vm1239, %v1257, 0.0
        %1265 = vadd.xlane.f32.xlu0 %v1264
        %v1266 = vpop.xlane.xlu0 %1265
        %v1267 = vsel %vm1239, %v1259, 0.0
        %1268 = vadd.xlane.f32.xlu0 %v1267
        %v1269 = vpop.xlane.xlu0 %1268
        %v1270 = vsel %vm1239, %v1261, 0.0
        %1271 = vadd.xlane.f32.xlu0 %v1270
        %v1272 = vpop.xlane.xlu0 %1271
        %v1273 = vsel %vm1239, %v1263, 0.0
        %1274 = vadd.xlane.f32.xlu0 %v1273
        %v1275 = vpop.xlane.xlu0 %1274
        %v1276 = vrcp.pop %v1266
        %v1277 = vrcp.pop %v1269
        %v1278 = vrcp.pop %v1272
        %v1279 = vrcp.pop %v1275
        %v1280 = vmul.f32 %v1257, %v1276
        %v1281 = vmul.f32 %v1259, %v1277
        %v1282 = vmul.f32 %v1261, %v1278
        %v1283 = vmul.f32 %v1263, %v1279
        %v1284 = vpack.c.bf16 %v1280, %v1280
        %v1285 = vpack.c.bf16 %v1281, %v1281
        %v1286 = vpack.c.bf16 %v1282, %v1282
        %v1287 = vpack.c.bf16 %v1283, %v1283
        %v1289 = vsel %vm1239, %v1284, 0
        %vm1291 = vcmask 1043456
        %v1293 = vsel %vm1291, %v1045, 0
        %1295 = vmatprep.subr.bf16.mxu0 0
        %1296 = vmatpush1.bf16.msra.mxu0 %v1293
        %1297 = vmatprep.subr.bf16.mxu0 0
        %1298 = vmatpush1.bf16.msra.mxu0 0
        %1299 = vmatprep.subr.bf16.mxu0 0
        %1300 = vmatpush1.bf16.msra.mxu0 0
        %1301 = vmatprep.subr.bf16.mxu0 0
        %1302 = vmatpush1.bf16.msra.mxu0 0
        %1303 = vmatprep.subr.bf16.mxu0 0
        %1304 = vmatpush1.bf16.msra.mxu0 0
        %1305 = vmatprep.subr.bf16.mxu0 0
        %1306 = vmatpush1.bf16.msra.mxu0 0
        %1307 = vmatprep.subr.bf16.mxu0 0
        %1308 = vmatpush1.bf16.msra.mxu0 0
        %1309 = vmatprep.subr.bf16.mxu0 0
        %1310 = vmatpush1.bf16.msra.mxu0 0
        %1311 = vmatprep.subr.bf16.mxu0 0
        %1312 = vmatpush1.bf16.msra.mxu0 0
        %1313 = vmatprep.subr.bf16.mxu0 0
        %1314 = vmatpush1.bf16.msra.mxu0 0
        %1315 = vmatprep.subr.bf16.mxu0 0
        %1316 = vmatpush1.bf16.msra.mxu0 0
        %1317 = vmatprep.subr.bf16.mxu0 0
        %1318 = vmatpush1.bf16.msra.mxu0 0
        %1319 = vmatprep.subr.bf16.mxu0 0
        %1320 = vmatpush1.bf16.msra.mxu0 0
        %1321 = vmatprep.subr.bf16.mxu0 0
        %1322 = vmatpush1.bf16.msra.mxu0 0
        %1323 = vmatprep.subr.bf16.mxu0 0
        %1324 = vmatpush1.bf16.msra.mxu0 0
        %1325 = vmatprep.subr.bf16.mxu0 0
        %1326 = vmatpush1.bf16.msra.mxu0 0
        %1327 = vmatprep.mubr.bf16.mxu0 0
        %1328 = vmatmul.mubr.bf16.gmra.mrb[0].mxu0 %v1289
        %v1329 = vpop.f32.mrb[0].mxu0
        %v1330 = vadd.f32 0.0, %v1329
        %v1331 = vpop.f32.mrb[0].mxu0
        %v1332 = vpop.f32.mrb[0].mxu0
        %v1333 = vpop.f32.mrb[0].mxu0
        %1334 = vdwg.mxu0
        %v1336 = vsel %vm1239, %v1285, 0
        %v1339 = vsel %vm1291, %v1046, 0
        %1341 = vmatprep.subr.bf16.mxu0 0
        %1342 = vmatpush1.bf16.msra.mxu0 %v1339
        %1343 = vmatprep.subr.bf16.mxu0 0
        %1344 = vmatpush1.bf16.msra.mxu0 0
        %1345 = vmatprep.subr.bf16.mxu0 0
        %1346 = vmatpush1.bf16.msra.mxu0 0
        %1347 = vmatprep.subr.bf16.mxu0 0
        %1348 = vmatpush1.bf16.msra.mxu0 0
        %1349 = vmatprep.subr.bf16.mxu0 0
        %1350 = vmatpush1.bf16.msra.mxu0 0
        %1351 = vmatprep.subr.bf16.mxu0 0
        %1352 = vmatpush1.bf16.msra.mxu0 0
        %1353 = vmatprep.subr.bf16.mxu0 0
        %1354 = vmatpush1.bf16.msra.mxu0 0
        %1355 = vmatprep.subr.bf16.mxu0 0
        %1356 = vmatpush1.bf16.msra.mxu0 0
        %1357 = vmatprep.subr.bf16.mxu0 0
        %1358 = vmatpush1.bf16.msra.mxu0 0
        %1359 = vmatprep.subr.bf16.mxu0 0
        %1360 = vmatpush1.bf16.msra.mxu0 0
        %1361 = vmatprep.subr.bf16.mxu0 0
        %1362 = vmatpush1.bf16.msra.mxu0 0
        %1363 = vmatprep.subr.bf16.mxu0 0
        %1364 = vmatpush1.bf16.msra.mxu0 0
        %1365 = vmatprep.subr.bf16.mxu0 0
        %1366 = vmatpush1.bf16.msra.mxu0 0
        %1367 = vmatprep.subr.bf16.mxu0 0
        %1368 = vmatpush1.bf16.msra.mxu0 0
        %1369 = vmatprep.subr.bf16.mxu0 0
        %1370 = vmatpush1.bf16.msra.mxu0 0
        %1371 = vmatprep.subr.bf16.mxu0 0
        %1372 = vmatpush1.bf16.msra.mxu0 0
        %1373 = vmatprep.mubr.bf16.mxu0 0
        %1374 = vmatmul.mubr.bf16.gmra.mrb[0].mxu0 %v1336
        %v1375 = vpop.f32.mrb[0].mxu0
        %v1376 = vadd.f32 0.0, %v1375
        %v1377 = vpop.f32.mrb[0].mxu0
        %v1378 = vpop.f32.mrb[0].mxu0
        %v1379 = vpop.f32.mrb[0].mxu0
        %1380 = vdwg.mxu0
        %v1382 = vsel %vm1239, %v1286, 0
        %v1385 = vsel %vm1291, %v1047, 0
        %1387 = vmatprep.subr.bf16.mxu0 0
        %1388 = vmatpush1.bf16.msra.mxu0 %v1385
        %1389 = vmatprep.subr.bf16.mxu0 0
        %1390 = vmatpush1.bf16.msra.mxu0 0
        %1391 = vmatprep.subr.bf16.mxu0 0
        %1392 = vmatpush1.bf16.msra.mxu0 0
        %1393 = vmatprep.subr.bf16.mxu0 0
        %1394 = vmatpush1.bf16.msra.mxu0 0
        %1395 = vmatprep.subr.bf16.mxu0 0
        %1396 = vmatpush1.bf16.msra.mxu0 0
        %1397 = vmatprep.subr.bf16.mxu0 0
        %1398 = vmatpush1.bf16.msra.mxu0 0
        %1399 = vmatprep.subr.bf16.mxu0 0
        %1400 = vmatpush1.bf16.msra.mxu0 0
        %1401 = vmatprep.subr.bf16.mxu0 0
        %1402 = vmatpush1.bf16.msra.mxu0 0
        %1403 = vmatprep.subr.bf16.mxu0 0
        %1404 = vmatpush1.bf16.msra.mxu0 0
        %1405 = vmatprep.subr.bf16.mxu0 0
        %1406 = vmatpush1.bf16.msra.mxu0 0
        %1407 = vmatprep.subr.bf16.mxu0 0
        %1408 = vmatpush1.bf16.msra.mxu0 0
        %1409 = vmatprep.subr.bf16.mxu0 0
        %1410 = vmatpush1.bf16.msra.mxu0 0
        %1411 = vmatprep.subr.bf16.mxu0 0
        %1412 = vmatpush1.bf16.msra.mxu0 0
        %1413 = vmatprep.subr.bf16.mxu0 0
        %1414 = vmatpush1.bf16.msra.mxu0 0
        %1415 = vmatprep.subr.bf16.mxu0 0
        %1416 = vmatpush1.bf16.msra.mxu0 0
        %1417 = vmatprep.subr.bf16.mxu0 0
        %1418 = vmatpush1.bf16.msra.mxu0 0
        %1419 = vmatprep.mubr.bf16.mxu0 0
        %1420 = vmatmul.mubr.bf16.gmra.mrb[0].mxu0 %v1382
        %v1421 = vpop.f32.mrb[0].mxu0
        %v1422 = vadd.f32 0.0, %v1421
        %v1423 = vpop.f32.mrb[0].mxu0
        %v1424 = vpop.f32.mrb[0].mxu0
        %v1425 = vpop.f32.mrb[0].mxu0
        %1426 = vdwg.mxu0
        %v1428 = vsel %vm1239, %v1287, 0
        %v1431 = vsel %vm1291, %v1048, 0
        %1433 = vmatprep.subr.bf16.mxu0 0
        %1434 = vmatpush1.bf16.msra.mxu0 %v1431
        %1435 = vmatprep.subr.bf16.mxu0 0
        %1436 = vmatpush1.bf16.msra.mxu0 0
        %1437 = vmatprep.subr.bf16.mxu0 0
        %1438 = vmatpush1.bf16.msra.mxu0 0
        %1439 = vmatprep.subr.bf16.mxu0 0
        %1440 = vmatpush1.bf16.msra.mxu0 0
        %1441 = vmatprep.subr.bf16.mxu0 0
        %1442 = vmatpush1.bf16.msra.mxu0 0
        %1443 = vmatprep.subr.bf16.mxu0 0
        %1444 = vmatpush1.bf16.msra.mxu0 0
        %1445 = vmatprep.subr.bf16.mxu0 0
        %1446 = vmatpush1.bf16.msra.mxu0 0
        %1447 = vmatprep.subr.bf16.mxu0 0
        %1448 = vmatpush1.bf16.msra.mxu0 0
        %1449 = vmatprep.subr.bf16.mxu0 0
        %1450 = vmatpush1.bf16.msra.mxu0 0
        %1451 = vmatprep.subr.bf16.mxu0 0
        %1452 = vmatpush1.bf16.msra.mxu0 0
        %1453 = vmatprep.subr.bf16.mxu0 0
        %1454 = vmatpush1.bf16.msra.mxu0 0
        %1455 = vmatprep.subr.bf16.mxu0 0
        %1456 = vmatpush1.bf16.msra.mxu0 0
        %1457 = vmatprep.subr.bf16.mxu0 0
        %1458 = vmatpush1.bf16.msra.mxu0 0
        %1459 = vmatprep.subr.bf16.mxu0 0
        %1460 = vmatpush1.bf16.msra.mxu0 0
        %1461 = vmatprep.subr.bf16.mxu0 0
        %1462 = vmatpush1.bf16.msra.mxu0 0
        %1463 = vmatprep.subr.bf16.mxu0 0
        %1464 = vmatpush1.bf16.msra.mxu0 0
        %1465 = vmatprep.mubr.bf16.mxu0 0
        %1466 = vmatmul.mubr.bf16.gmra.mrb[0].mxu0 %v1428
        %v1467 = vpop.f32.mrb[0].mxu0
        %v1468 = vadd.f32 0.0, %v1467
        %v1469 = vpop.f32.mrb[0].mxu0
        %v1470 = vpop.f32.mrb[0].mxu0
        %v1471 = vpop.f32.mrb[0].mxu0
        %1472 = vdwg.mxu0
        %v1473 = vsel %vm366, %v1330, 0.0
        %v1474 = vsel %vm366, %v1422, 0.0
        %v1475 = vadd.f32 %v1473, %v1474
        %v1476 = vsel %vm366, %v1376, 0.0
        %v1477 = vsel %vm366, %v1468, 0.0
        %v1478 = vadd.f32 %v1476, %v1477
        %v1479 = vadd.f32 %v1475, %v362
        %v1480 = vadd.f32 %v1478, %v363
        %v1481 = vld [vmem:[%s4] sm:$0x1]
        %v1482 = vld [vmem:[%s5] sm:$0x1]
        %v1483 = vsel %vm366, %v1479, 0.0
        %1484 = vadd.xlane.f32.xlu0 %v1483
        %v1485 = vpop.xlane.xlu0 %1484
        %v1486 = vsel %vm366, %v1480, 0.0
        %1487 = vadd.xlane.f32.xlu0 %v1486
        %v1488 = vpop.xlane.xlu0 %1487
        %v1489 = vmul.f32 %v1485, %v373
        %v1490 = vmul.f32 %v1488, %v373
        %v1491 = vsub.f32 %v1479, %v1489
        %v1492 = vsub.f32 %v1480, %v1490
        %v1493 = vmul.f32 %v1491, %v1491
        %v1494 = vmul.f32 %v1492, %v1492
        %v1495 = vsel %vm366, %v1493, 0.0
        %1496 = vadd.xlane.f32.xlu0 %v1495
        %v1497 = vpop.xlane.xlu0 %1496
        %v1498 = vsel %vm366, %v1494, 0.0
        %1499 = vadd.xlane.f32.xlu0 %v1498
        %v1500 = vpop.xlane.xlu0 %1499
        %v1501 = vmul.f32 %v1497, %v373
        %v1502 = vmul.f32 %v1500, %v373
        %v1503 = vadd.f32 %v1501, 1e-05
        %v1504 = vadd.f32 %v1502, 1e-05
        %v1505 = vrsqrt.pop %v1503
        %v1506 = vrsqrt.pop %v1504
        %v1507 = vmul.f32 %v1491, %v1505
        %v1508 = vmul.f32 %v1492, %v1506
        %v1510 = vlaneseq
        %v1511 = vshrl.u32 %v1510, 7
        %v1512 = vsub.s32 0, %v1511
        %v1513 = vrot.slane %v1481, %v1512
        %v1515 = vmul.f32 %v1507, %v1513
        %v1516 = vmul.f32 %v1508, %v1513
        %v1518 = vlaneseq
        %v1519 = vshrl.u32 %v1518, 7
        %v1520 = vsub.s32 0, %v1519
        %v1521 = vrot.slane %v1482, %v1520
        %v1523 = vadd.f32 %v1515, %v1521
        %v1524 = vadd.f32 %v1516, %v1521
        %v1525 = vpack.c.bf16 %v1524, %v1523
        %v1526 = vld [vmem:[%s6] sm:$0xf]
        %v1527 = vld [vmem:[%s6 + $0x4] sm:$0xf]
        %v1528 = vld [vmem:[%s6 + $0x8] sm:$0xf]
        %v1529 = vld [vmem:[%s6 + $0xc] sm:$0xf]
        %v1530 = vld [vmem:[%s7] sm:$0x1]
        %v1532 = vlaneseq
        %v1533 = vshrl.u32 %v1532, 7
        %v1534 = vsub.s32 0, %v1533
        %v1535 = vrot.slane %v1530, %v1534
        %v1541 = vunpack.c.l.b16 %v1526
        %v1542 = vunpack.c.l.b16 %v1527
        %v1543 = vunpack.c.l.b16 %v1528
        %v1544 = vunpack.c.l.b16 %v1529
        %v1545 = vpack.c.b16 %v1542, %v1541
        %v1546 = vpack.c.b16 %v1544, %v1543
        %v1550 = vsel %vm366, %v1525, 0
        %1552 = vmatprep.subr.bf16.mxu0 0
        %1553 = vmatpush1.bf16.msra.mxu0 %v1545
        %1554 = vmatprep.subr.bf16.mxu0 0
        %1555 = vmatpush1.bf16.msra.mxu0 %v1546
        %1556 = vmatprep.subr.bf16.mxu0 0
        %1557 = vmatpush1.bf16.msra.mxu0 0
        %1558 = vmatprep.subr.bf16.mxu0 0
        %1559 = vmatpush1.bf16.msra.mxu0 0
        %1560 = vmatprep.subr.bf16.mxu0 0
        %1561 = vmatpush1.bf16.msra.mxu0 0
        %1562 = vmatprep.subr.bf16.mxu0 0
        %1563 = vmatpush1.bf16.msra.mxu0 0
        %1564 = vmatprep.subr.bf16.mxu0 0
        %1565 = vmatpush1.bf16.msra.mxu0 0
        %1566 = vmatprep.subr.bf16.mxu0 0
        %1567 = vmatpush1.bf16.msra.mxu0 0
        %1568 = vmatprep.subr.bf16.mxu0 0
        %1569 = vmatpush1.bf16.msra.mxu0 0
        %1570 = vmatprep.subr.bf16.mxu0 0
        %1571 = vmatpush1.bf16.msra.mxu0 0
        %1572 = vmatprep.subr.bf16.mxu0 0
        %1573 = vmatpush1.bf16.msra.mxu0 0
        %1574 = vmatprep.subr.bf16.mxu0 0
        %1575 = vmatpush1.bf16.msra.mxu0 0
        %1576 = vmatprep.subr.bf16.mxu0 0
        %1577 = vmatpush1.bf16.msra.mxu0 0
        %1578 = vmatprep.subr.bf16.mxu0 0
        %1579 = vmatpush1.bf16.msra.mxu0 0
        %1580 = vmatprep.subr.bf16.mxu0 0
        %1581 = vmatpush1.bf16.msra.mxu0 0
        %1582 = vmatprep.subr.bf16.mxu0 0
        %1583 = vmatpush1.bf16.msra.mxu0 0
        %1584 = vmatprep.mubr.bf16.mxu0 0
        %1585 = vmatmul.mubr.bf16.gmra.mrb[0].mxu0 %v1550
        %v1586 = vpop.f32.mrb[0].mxu0
        %v1587 = vadd.f32 %v1535, %v1586
        %v1588 = vpop.f32.mrb[0].mxu0
        %v1589 = vpop.f32.mrb[0].mxu0
        %v1590 = vadd.f32 %v1535, %v1589
        %v1591 = vpop.f32.mrb[0].mxu0
        %1592 = vdwg.mxu0
        %v1593 = vmax.f32 %v1587, 0.0
        %v1594 = vmax.f32 %v1590, 0.0
        %v1595 = vpack.c.bf16 %v1594, %v1593
        %v1596 = vld [vmem:[%s8] sm:$0xf]
        %v1597 = vld [vmem:[%s8 + $0x4] sm:$0xf]
        %v1598 = vld [vmem:[%s8 + $0x8] sm:$0xf]
        %v1599 = vld [vmem:[%s8 + $0xc] sm:$0xf]
        %v1600 = vld [vmem:[%s8 + $0x10] sm:$0xf]
        %v1601 = vld [vmem:[%s8 + $0x14] sm:$0xf]
        %v1602 = vld [vmem:[%s8 + $0x18] sm:$0xf]
        %v1603 = vld [vmem:[%s8 + $0x1c] sm:$0xf]
        %v1604 = vld [vmem:[%s8 + $0x20] sm:$0xf]
        %v1605 = vld [vmem:[%s8 + $0x24] sm:$0xf]
        %v1606 = vld [vmem:[%s8 + $0x28] sm:$0xf]
        %v1607 = vld [vmem:[%s8 + $0x2c] sm:$0xf]
        %v1608 = vld [vmem:[%s8 + $0x30] sm:$0xf]
        %v1609 = vld [vmem:[%s8 + $0x34] sm:$0xf]
        %v1610 = vld [vmem:[%s8 + $0x38] sm:$0xf]
        %v1611 = vld [vmem:[%s8 + $0x3c] sm:$0xf]
        %v1612 = vld [vmem:[%s9] sm:$0x1]
        %v1614 = vlaneseq
        %v1615 = vshrl.u32 %v1614, 7
        %v1616 = vsub.s32 0, %v1615
        %v1617 = vrot.slane %v1612, %v1616
        %v1635 = vunpack.c.l.b16 %v1596
        %v1636 = vunpack.c.l.b16 %v1597
        %v1637 = vunpack.c.l.b16 %v1598
        %v1638 = vunpack.c.l.b16 %v1599
        %v1639 = vunpack.c.l.b16 %v1600
        %v1640 = vunpack.c.l.b16 %v1601
        %v1641 = vunpack.c.l.b16 %v1602
        %v1642 = vunpack.c.l.b16 %v1603
        %v1643 = vunpack.c.l.b16 %v1604
        %v1644 = vunpack.c.l.b16 %v1605
        %v1645 = vunpack.c.l.b16 %v1606
        %v1646 = vunpack.c.l.b16 %v1607
        %v1647 = vunpack.c.l.b16 %v1608
        %v1648 = vunpack.c.l.b16 %v1609
        %v1649 = vunpack.c.l.b16 %v1610
        %v1650 = vunpack.c.l.b16 %v1611
        %v1651 = vpack.c.b16 %v1636, %v1635
        %v1652 = vpack.c.b16 %v1638, %v1637
        %v1653 = vpack.c.b16 %v1640, %v1639
        %v1654 = vpack.c.b16 %v1642, %v1641
        %v1655 = vpack.c.b16 %v1644, %v1643
        %v1656 = vpack.c.b16 %v1646, %v1645
        %v1657 = vpack.c.b16 %v1648, %v1647
        %v1658 = vpack.c.b16 %v1650, %v1649
        %1667 = vmatprep.subr.bf16.mxu0 0
        %1668 = vmatpush1.bf16.msra.mxu0 %v1651
        %1669 = vmatprep.subr.bf16.mxu0 0
        %1670 = vmatpush1.bf16.msra.mxu0 %v1652
        %1671 = vmatprep.subr.bf16.mxu0 0
        %1672 = vmatpush1.bf16.msra.mxu0 %v1653
        %1673 = vmatprep.subr.bf16.mxu0 0
        %1674 = vmatpush1.bf16.msra.mxu0 %v1654
        %1675 = vmatprep.subr.bf16.mxu0 0
        %1676 = vmatpush1.bf16.msra.mxu0 %v1655
        %1677 = vmatprep.subr.bf16.mxu0 0
        %1678 = vmatpush1.bf16.msra.mxu0 %v1656
        %1679 = vmatprep.subr.bf16.mxu0 0
        %1680 = vmatpush1.bf16.msra.mxu0 %v1657
        %1681 = vmatprep.subr.bf16.mxu0 0
        %1682 = vmatpush1.bf16.msra.mxu0 %v1658
        %1683 = vmatprep.subr.bf16.mxu0 0
        %1684 = vmatpush1.bf16.msra.mxu0 0
        %1685 = vmatprep.subr.bf16.mxu0 0
        %1686 = vmatpush1.bf16.msra.mxu0 0
        %1687 = vmatprep.subr.bf16.mxu0 0
        %1688 = vmatpush1.bf16.msra.mxu0 0
        %1689 = vmatprep.subr.bf16.mxu0 0
        %1690 = vmatpush1.bf16.msra.mxu0 0
        %1691 = vmatprep.subr.bf16.mxu0 0
        %1692 = vmatpush1.bf16.msra.mxu0 0
        %1693 = vmatprep.subr.bf16.mxu0 0
        %1694 = vmatpush1.bf16.msra.mxu0 0
        %1695 = vmatprep.subr.bf16.mxu0 0
        %1696 = vmatpush1.bf16.msra.mxu0 0
        %1697 = vmatprep.subr.bf16.mxu0 0
        %1698 = vmatpush1.bf16.msra.mxu0 0
        %1699 = vmatprep.mubr.bf16.mxu0 0
        %1700 = vmatmul.mubr.bf16.gmra.mrb[0].mxu0 %v1595
        %v1701 = vpop.f32.mrb[0].mxu0
        %v1702 = vadd.f32 %v1617, %v1701
        %v1703 = vpop.f32.mrb[0].mxu0
        %v1704 = vpop.f32.mrb[0].mxu0
        %v1705 = vadd.f32 %v1617, %v1704
        %v1706 = vpop.f32.mrb[0].mxu0
        %1707 = vdwg.mxu0
        %v1708 = vadd.f32 %v1702, %v1479
        %v1709 = vadd.f32 %v1705, %v1480
        %1710 = vst.msk [vmem:[%s353] sm:$0xff] %vm366, %v1708
        %1711 = vst.msk [vmem:[%s353 + $0x8] sm:$0xff] %vm366, %v1709
        %s1712 = sand.u32 %s247, 1
        %s1713 = scalar_lea.sflag [#allocation3], %s1712
        %s1714 = sand.u32 %s247, 1
        %s1715 = smul.addr %s1714, 16
        %s1716 = scalar_lea.vmem [#allocation2], %s1715
        // Predicated region
        $region61: #{tpu_custom_call.1} parent=59 // pred_check
          %p1717 = pneg %p257
        $region62: #{tpu_custom_call.1} parent=59 // pred_check_branch
          %1719 = sbr.rel (%p1717) target = $region64
        $region63: #{tpu_custom_call.1} parent=59 // pred_region
          %s1720 = smul.u32 2, %s24
          %s1722 = ssub.s32 256, 256
          %1723 = vsyncadd %s1713, %s1722
          %s1724 = smul.addr %s1720, 128
          %s1725 = scalar_lea.hbm %s10, %s1724
          %s1726 = sshll.u32 %s1716, 4
          %s1727 = int_to_ptr.vmem [resolvable:$true] %s1726
          %1732 = dma.vmem_to_hbm [thread:$0]  %s1727, 256, %s1725, %s1713, 128, 128, 8
        $region64: #{tpu_custom_call.1} parent=59 // pred_fallthru
          _
      $region60: #{tpu_custom_call.1} parent=5 // pred_fallthru
        _
      %p1733 = scmp.le.s32.totalorder 2, %s19
      // Predicated region
      $region65: #{tpu_custom_call.1} parent=5 // pred_check
        %p1734 = pneg %p1733
      $region66: #{tpu_custom_call.1} parent=5 // pred_check_branch
        %1736 = sbr.rel (%p1734) target = $region68
      $region67: #{tpu_custom_call.1} parent=5 // pred_region
        %s1737 = ssub.s32 %s19, 2
        // Predicated region
        $region69: #{tpu_custom_call.1} parent=67 // pred_check
          %p1738 = pneg %p263
        $region70: #{tpu_custom_call.1} parent=67 // pred_check_branch
          %1740 = sbr.rel (%p1738) target = $region72
        $region71: #{tpu_custom_call.1} parent=67 // pred_region
          %s1741 = sand.u32 %s248, 1
          %s1742 = scalar_lea.sflag [#allocation3], %s1741
          %s1743 = sand.u32 %s248, 1
          %s1744 = smul.addr %s1743, 16
          %s1745 = scalar_lea.vmem [#allocation2], %s1744
          %1746 = dma.done %s1742, 256
        $region72: #{tpu_custom_call.1} parent=67 // pred_fallthru
          _
      $region68: #{tpu_custom_call.1} parent=5 // pred_fallthru
        _
    $region6: #{tpu_custom_call.1} parent=1 // loop_footer
      %s23 = sadd.s32 1, %s19
    $region7: #{tpu_custom_call.1} parent=1 // loop_footer_branch
      %18 = sbr.rel target = $region3
    $region8: #{tpu_custom_call.1} parent=1 // loop_exit
      _
    %1747 = vsyncpa [#allocation3], 1
    %s1748 = scalar_lea.sflag [#allocation3], 1
    %1749 = vsyncpa %s1748, 1

</llo_original>
